<compile_context>
chip_gen: v5e
topology: v5e:2x2
jax: 0.10.0
libtpu: 0.0.40
codegen_flags: <defaults>
</compile_context>

<pallas_src>
import functools

import jax
import jax.numpy as jnp
from jax.experimental import pallas as pl
from jax.experimental.pallas import tpu as pltpu

_VMEM_LIMIT = 32 * 1024 * 1024  # fits the scoped-VMEM budget on v5e/v6e/v7x


# -----------------------------------------------------------------------------
# Kernel 1: fused [gc1 + bn1(eval) + relu + gc2 + bn2(eval) + relu] over the whole
# (merged) batch in a single step.
#   gc(x, adj) = adj @ (x @ W) + b ; BN folded into W and c; adj is block-diagonal
#   over the batch so everything is a 2D matmul with M = B*N rows.
# -----------------------------------------------------------------------------
def gcn_block_kernel(x_ref, adj_ref, w1_ref, c1_ref, w2_ref, c2_ref, o_ref):
    # x_ref: (B*N, Fin) bf16   adj_ref: (B*N, B*N) bf16 (block-diagonal)
    # w1_ref: (Fin, H1) bf16   c1_ref: (1, H1) f32
    # w2_ref: (H1, H2) bf16    c2_ref: (1, H2) f32
    adj = adj_ref[...]  # load once, reuse for both adjacency matmuls

    sup1 = jnp.dot(x_ref[...], w1_ref[...], preferred_element_type=jnp.float32)
    h1 = jnp.dot(adj, sup1.astype(jnp.bfloat16),
                 preferred_element_type=jnp.float32) + c1_ref[...]
    h1 = jnp.maximum(h1, 0.0)

    sup2 = jnp.dot(h1.astype(jnp.bfloat16), w2_ref[...],
                   preferred_element_type=jnp.float32)
    h2 = jnp.dot(adj, sup2.astype(jnp.bfloat16),
                 preferred_element_type=jnp.float32) + c2_ref[...]
    h2 = jnp.maximum(h2, 0.0)

    o_ref[...] = h2.astype(o_ref.dtype)


def gcn_block(x2d, adj_bd, w1, c1, w2, c2):
    M, Fin = x2d.shape          # M = B * N
    H1 = w1.shape[1]
    H2 = w2.shape[1]
    return pl.pallas_call(
        gcn_block_kernel,
        out_shape=jax.ShapeDtypeStruct((M, H2), jnp.bfloat16),
        in_specs=[
            pl.BlockSpec((M, Fin), lambda: (0, 0)),
            pl.BlockSpec((M, M), lambda: (0, 0)),
            pl.BlockSpec((Fin, H1), lambda: (0, 0)),
            pl.BlockSpec((1, H1), lambda: (0, 0)),
            pl.BlockSpec((H1, H2), lambda: (0, 0)),
            pl.BlockSpec((1, H2), lambda: (0, 0)),
        ],
        out_specs=pl.BlockSpec((M, H2), lambda: (0, 0)),
        compiler_params=pltpu.CompilerParams(vmem_limit_bytes=_VMEM_LIMIT),
    )(x2d, adj_bd, w1, c1, w2, c2)


# -----------------------------------------------------------------------------
# Kernel 2: fused MLP head (Linear->ReLU->Linear->ReLU->Linear) + log_softmax.
# Weights are untiled (bf16 fc1_w = 2 MB fits comfortably in VMEM on all generations);
# if the model is scaled up fc1_w must be K-tiled with a VMEM f32 accumulator before
# it approaches ~24-28 MiB on v7x.
# -----------------------------------------------------------------------------
def head_kernel(x_ref, w1_ref, b1_ref, w2_ref, b2_ref, w3_ref, b3_ref, o_ref):
    h = jnp.dot(x_ref[...], w1_ref[...], preferred_element_type=jnp.float32) + b1_ref[...]
    h = jnp.maximum(h, 0.0)
    h = jnp.dot(h.astype(jnp.bfloat16), w2_ref[...],
                preferred_element_type=jnp.float32) + b2_ref[...]
    h = jnp.maximum(h, 0.0)
    logits = jnp.dot(h.astype(jnp.bfloat16), w3_ref[...],
                     preferred_element_type=jnp.float32) + b3_ref[...]
    m = jnp.max(logits, axis=-1, keepdims=True)
    lse = m + jnp.log(jnp.sum(jnp.exp(logits - m), axis=-1, keepdims=True))
    o_ref[...] = (logits - lse).astype(o_ref.dtype)


def mlp_head_logsoftmax(x_flat_bf16, w1, b1, w2, b2, w3, b3):
    B, Din = x_flat_bf16.shape
    H1 = w1.shape[1]
    H2 = w2.shape[1]
    C = w3.shape[1]
    return pl.pallas_call(
        head_kernel,
        out_shape=jax.ShapeDtypeStruct((B, C), jnp.float32),
        in_specs=[
            pl.BlockSpec((B, Din), lambda: (0, 0)),
            pl.BlockSpec((Din, H1), lambda: (0, 0)),
            pl.BlockSpec((1, H1), lambda: (0, 0)),
            pl.BlockSpec((H1, H2), lambda: (0, 0)),
            pl.BlockSpec((1, H2), lambda: (0, 0)),
            pl.BlockSpec((H2, C), lambda: (0, 0)),
            pl.BlockSpec((1, C), lambda: (0, 0)),
        ],
        out_specs=pl.BlockSpec((B, C), lambda: (0, 0)),
        compiler_params=pltpu.CompilerParams(vmem_limit_bytes=_VMEM_LIMIT),
    )(x_flat_bf16, w1, b1, w2, b2, w3, b3)


# -----------------------------------------------------------------------------
# Parameter prep (BN fold + bf16 cast, once in the wrapper), block-diag adjacency,
# and the full forward.
# -----------------------------------------------------------------------------
def fold_bn(gamma, beta, running_mean, running_var, eps=1e-5):
    scale = gamma / jnp.sqrt(running_var + eps)
    shift = beta - running_mean * scale
    return scale, shift


def prepare_params(p):
    """Fold eval-mode BN into the GC weights / shifts and cast matmul weights to bf16."""
    pp = {}
    # gc + bn:  adj@(x@W)+b  ->  *scale + shift  ==  adj@(x@(W*scale)) + (b*scale+shift)
    pp["gc1_w"] = (p["gc1_w"] * p["bn1_scale"][None, :]).astype(jnp.bfloat16)
    pp["gc1_c"] = (p["gc1_b"] * p["bn1_scale"] + p["bn1_shift"]).reshape(1, -1)
    pp["gc2_w"] = (p["gc2_w"] * p["bn2_scale"][None, :]).astype(jnp.bfloat16)
    pp["gc2_c"] = (p["gc2_b"] * p["bn2_scale"] + p["bn2_shift"]).reshape(1, -1)
    # MLP head
    pp["fc1_w"] = p["fc1_w"].astype(jnp.bfloat16)
    pp["fc1_b"] = p["fc1_b"].reshape(1, -1)
    pp["fc2_w"] = p["fc2_w"].astype(jnp.bfloat16)
    pp["fc2_b"] = p["fc2_b"].reshape(1, -1)
    pp["fc3_w"] = p["fc3_w"].astype(jnp.bfloat16)
    pp["fc3_b"] = p["fc3_b"].reshape(1, -1)
    return pp


def block_diag_adj(adj):
    """(B, N, N) -> (B*N, B*N) block-diagonal (intended for small B*N; built once per call)."""
    B, N, _ = adj.shape
    eye = jnp.eye(B, dtype=adj.dtype)
    out = jnp.einsum("bij,bc->bicj", adj, eye)  # out[b,i,c,j] = adj[b,i,j] * (b == c)
    return out.reshape(B * N, B * N)


def gcn_forward(pp, x, adj):
    B, N, Fin = x.shape
    xb = x.astype(jnp.bfloat16).reshape(B * N, Fin)        # leading-dim merge, free reshape
    adj_bd = block_diag_adj(adj.astype(jnp.bfloat16))       # (B*N, B*N) bf16, 32 KB at B=2,N=64
    # fused gc1+bn1+relu+gc2+bn2+relu (dropout is identity in eval mode), single grid step
    h = gcn_block(xb, adj_bd, pp["gc1_w"], pp["gc1_c"], pp["gc2_w"], pp["gc2_c"])
    # (B*N, H2) -> (B, N*H2): contiguous row-major, free reshape at the XLA level
    h_flat = h.reshape(B, -1)
    return mlp_head_logsoftmax(
        h_flat, pp["fc1_w"], pp["fc1_b"], pp["fc2_w"], pp["fc2_b"], pp["fc3_w"], pp["fc3_b"]
    )


def gcn_forward_ref(pp, x, adj):
    """Pure-JAX reference with the same bf16-operand / f32-accumulate precision choices."""
    xb = x.astype(jnp.bfloat16)
    adjb = adj.astype(jnp.bfloat16)

    def layer(h_b16, w_b16, c):
        sup = jnp.einsum("bnf,fo->bno", h_b16, w_b16, preferred_element_type=jnp.float32)
        out = jnp.einsum("bnm,bmo->bno", adjb, sup.astype(jnp.bfloat16),
                         preferred_element_type=jnp.float32) + c
        return jnp.maximum(out, 0.0)

    h1 = layer(xb, pp["gc1_w"], pp["gc1_c"])
    h2 = layer(h1.astype(jnp.bfloat16), pp["gc2_w"], pp["gc2_c"])
    flat = h2.astype(jnp.bfloat16).reshape(h2.shape[0], -1)

    h = jnp.dot(flat, pp["fc1_w"], preferred_element_type=jnp.float32) + pp["fc1_b"]
    h = jnp.maximum(h, 0.0)
    h = jnp.dot(h.astype(jnp.bfloat16), pp["fc2_w"],
                preferred_element_type=jnp.float32) + pp["fc2_b"]
    h = jnp.maximum(h, 0.0)
    logits = jnp.dot(h.astype(jnp.bfloat16), pp["fc3_w"],
                     preferred_element_type=jnp.float32) + pp["fc3_b"]
    return jax.nn.log_softmax(logits, axis=1)


def make_params(key, nfeat, nhid, nodes):
    h1, h2 = nhid
    ks = jax.random.split(key, 16)
    f = lambda k, shp, s: (jax.random.normal(k, shp, jnp.float32) * s)
    params = {
        "gc1_w": f(ks[0], (nfeat, h1), 0.1),
        "gc1_b": f(ks[1], (h1,), 0.1),
        "gc2_w": f(ks[2], (h1, h2), 0.1),
        "gc2_b": f(ks[3], (h2,), 0.1),
        "fc1_w": f(ks[4], (nodes * h2, 16 * h2), 0.02),
        "fc1_b": f(ks[5], (16 * h2,), 0.02),
        "fc2_w": f(ks[6], (16 * h2, 4 * h2), 0.05),
        "fc2_b": f(ks[7], (4 * h2,), 0.05),
        "fc3_w": f(ks[8], (4 * h2, 4), 0.1),
        "fc3_b": f(ks[9], (4,), 0.1),
    }
    # BatchNorm1d params + deterministic (non-trivial) running stats, eval mode
    bn1_gamma = 1.0 + f(ks[10], (h1,), 0.1)
    bn1_beta = f(ks[11], (h1,), 0.1)
    bn1_mean = f(ks[12], (h1,), 0.1)
    bn1_var = 1.0 + jnp.abs(f(ks[13], (h1,), 0.1))
    bn2_gamma = 1.0 + f(ks[14], (h2,), 0.1)
    bn2_beta = f(ks[15], (h2,), 0.1)
    bn2_mean = jnp.zeros((h2,), jnp.float32)
    bn2_var = jnp.ones((h2,), jnp.float32)
    params["bn1_scale"], params["bn1_shift"] = fold_bn(bn1_gamma, bn1_beta, bn1_mean, bn1_var)
    params["bn2_scale"], params["bn2_shift"] = fold_bn(bn2_gamma, bn2_beta, bn2_mean, bn2_var)
    return params


if __name__ == "__main__":
    # Forward-consistent small shapes: fc3 input is 64*nhid[1] => N (nodes) = 64.
    B, N, NFEAT = 2, 64, 16
    NHID = (32, 32)

    key = jax.random.PRNGKey(0)
    kx, kadj, kp = jax.random.split(key, 3)

    x = jax.random.normal(kx, (B, N, NFEAT), jnp.float32)
    # Symmetric, row-normalized adjacency (with self-loops), deterministic.
    a = jax.random.uniform(kadj, (B, N, N), jnp.float32)
    a = (a + jnp.swapaxes(a, 1, 2)) * 0.5 + jnp.eye(N)[None]
    adj = a / jnp.sum(a, axis=-1, keepdims=True)

    params = make_params(kp, NFEAT, NHID, N)
    pparams = prepare_params(params)

    out = jax.jit(functools.partial(gcn_forward, pparams))(x, adj)
    out = jax.block_until_ready(out)

    ref = gcn_forward_ref(pparams, x, adj)
    assert out.shape == (B, 4), out.shape
    assert jnp.allclose(out, ref, atol=1e-3, rtol=1e-3), float(jnp.max(jnp.abs(out - ref)))

    print("KERNEL_OK")
</pallas_src>

<mosaic_0001>
module attributes {stable_mosaic.version = 11 : i64} {
  func.func @gcn_block_kernel(%arg0: memref<128x16xbf16, #tpu.memory_space<vmem>>, %arg1: memref<128x128xbf16, #tpu.memory_space<vmem>>, %arg2: memref<16x32xbf16, #tpu.memory_space<vmem>>, %arg3: memref<1x32xf32, #tpu.memory_space<vmem>>, %arg4: memref<32x32xbf16, #tpu.memory_space<vmem>>, %arg5: memref<1x32xf32, #tpu.memory_space<vmem>>, %arg6: memref<128x32xbf16, #tpu.memory_space<vmem>>) attributes {dimension_semantics = [], scalar_prefetch = 0 : i64, scratch_operands = 0 : i64, tpu.core_type = #tpu.core_type<tc>} {
    %c0 = arith.constant 0 : index
    %c0_0 = arith.constant 0 : index
    %0 = vector.load %arg1[%c0, %c0_0] : memref<128x128xbf16, #tpu.memory_space<vmem>>, vector<128x128xbf16>
    %c0_1 = arith.constant 0 : index
    %c0_2 = arith.constant 0 : index
    %1 = vector.load %arg0[%c0_1, %c0_2] : memref<128x16xbf16, #tpu.memory_space<vmem>>, vector<128x16xbf16>
    %c0_3 = arith.constant 0 : index
    %c0_4 = arith.constant 0 : index
    %2 = vector.load %arg2[%c0_3, %c0_4] : memref<16x32xbf16, #tpu.memory_space<vmem>>, vector<16x32xbf16>
    %cst = arith.constant dense<0.000000e+00> : vector<128x32xf32>
    %3 = tpu.matmul %1, %2, %cst {dimension_numbers = #tpu.dot_dimension_numbers<[1], [0], [0], [1], [0, 0, 1, 1], [], []>} : vector<128x16xbf16>, vector<16x32xbf16>, vector<128x32xf32> -> vector<128x32xf32>
    %4 = arith.truncf %3 : vector<128x32xf32> to vector<128x32xbf16>
    %cst_5 = arith.constant dense<0.000000e+00> : vector<128x32xf32>
    %5 = tpu.matmul %0, %4, %cst_5 {dimension_numbers = #tpu.dot_dimension_numbers<[1], [0], [0], [1], [0, 0, 1, 1], [], []>} : vector<128x128xbf16>, vector<128x32xbf16>, vector<128x32xf32> -> vector<128x32xf32>
    %c0_6 = arith.constant 0 : index
    %c0_7 = arith.constant 0 : index
    %6 = vector.load %arg3[%c0_6, %c0_7] : memref<1x32xf32, #tpu.memory_space<vmem>>, vector<1x32xf32>
    %7 = vector.broadcast %6 : vector<1x32xf32> to vector<128x32xf32>
    %8 = arith.addf %5, %7 : vector<128x32xf32>
    %cst_8 = arith.constant 0.000000e+00 : f32
    %9 = vector.broadcast %cst_8 : f32 to vector<128x32xf32>
    %10 = arith.maximumf %8, %9 : vector<128x32xf32>
    %11 = arith.truncf %10 : vector<128x32xf32> to vector<128x32xbf16>
    %c0_9 = arith.constant 0 : index
    %c0_10 = arith.constant 0 : index
    %12 = vector.load %arg4[%c0_9, %c0_10] : memref<32x32xbf16, #tpu.memory_space<vmem>>, vector<32x32xbf16>
    %cst_11 = arith.constant dense<0.000000e+00> : vector<128x32xf32>
    %13 = tpu.matmul %11, %12, %cst_11 {dimension_numbers = #tpu.dot_dimension_numbers<[1], [0], [0], [1], [0, 0, 1, 1], [], []>} : vector<128x32xbf16>, vector<32x32xbf16>, vector<128x32xf32> -> vector<128x32xf32>
    %14 = arith.truncf %13 : vector<128x32xf32> to vector<128x32xbf16>
    %cst_12 = arith.constant dense<0.000000e+00> : vector<128x32xf32>
    %15 = tpu.matmul %0, %14, %cst_12 {dimension_numbers = #tpu.dot_dimension_numbers<[1], [0], [0], [1], [0, 0, 1, 1], [], []>} : vector<128x128xbf16>, vector<128x32xbf16>, vector<128x32xf32> -> vector<128x32xf32>
    %c0_13 = arith.constant 0 : index
    %c0_14 = arith.constant 0 : index
    %16 = vector.load %arg5[%c0_13, %c0_14] : memref<1x32xf32, #tpu.memory_space<vmem>>, vector<1x32xf32>
    %17 = vector.broadcast %16 : vector<1x32xf32> to vector<128x32xf32>
    %18 = arith.addf %15, %17 : vector<128x32xf32>
    %cst_15 = arith.constant 0.000000e+00 : f32
    %19 = vector.broadcast %cst_15 : f32 to vector<128x32xf32>
    %20 = arith.maximumf %18, %19 : vector<128x32xf32>
    %21 = arith.truncf %20 : vector<128x32xf32> to vector<128x32xbf16>
    %c0_16 = arith.constant 0 : index
    %c0_17 = arith.constant 0 : index
    %22 = vector.load %arg6[%c0_16, %c0_17] : memref<128x32xbf16, #tpu.memory_space<vmem>>, vector<128x32xbf16>
    tpu.vector_store %arg6[%c0_16, %c0_17], %21 {strides = array<i32>} : memref<128x32xbf16, #tpu.memory_space<vmem>>, vector<128x32xbf16>,
    return
  }
}

module attributes {stable_mosaic.version = 11 : i64} {
  func.func @head_kernel(%arg0: memref<2x2048xbf16, #tpu.memory_space<vmem>>, %arg1: memref<2048x512xbf16, #tpu.memory_space<vmem>>, %arg2: memref<1x512xf32, #tpu.memory_space<vmem>>, %arg3: memref<512x128xbf16, #tpu.memory_space<vmem>>, %arg4: memref<1x128xf32, #tpu.memory_space<vmem>>, %arg5: memref<128x4xbf16, #tpu.memory_space<vmem>>, %arg6: memref<1x4xf32, #tpu.memory_space<vmem>>, %arg7: memref<2x4xf32, #tpu.memory_space<vmem>>) attributes {dimension_semantics = [], scalar_prefetch = 0 : i64, scratch_operands = 0 : i64, tpu.core_type = #tpu.core_type<tc>} {
    %c0 = arith.constant 0 : index
    %c0_0 = arith.constant 0 : index
    %0 = vector.load %arg0[%c0, %c0_0] : memref<2x2048xbf16, #tpu.memory_space<vmem>>, vector<2x2048xbf16>
    %c0_1 = arith.constant 0 : index
    %c0_2 = arith.constant 0 : index
    %1 = vector.load %arg1[%c0_1, %c0_2] : memref<2048x512xbf16, #tpu.memory_space<vmem>>, vector<2048x512xbf16>
    %cst = arith.constant dense<0.000000e+00> : vector<2x512xf32>
    %2 = tpu.matmul %0, %1, %cst {dimension_numbers = #tpu.dot_dimension_numbers<[1], [0], [0], [1], [0, 0, 1, 1], [], []>} : vector<2x2048xbf16>, vector<2048x512xbf16>, vector<2x512xf32> -> vector<2x512xf32>
    %c0_3 = arith.constant 0 : index
    %c0_4 = arith.constant 0 : index
    %3 = vector.load %arg2[%c0_3, %c0_4] : memref<1x512xf32, #tpu.memory_space<vmem>>, vector<1x512xf32>
    %4 = vector.broadcast %3 : vector<1x512xf32> to vector<2x512xf32>
    %5 = arith.addf %2, %4 : vector<2x512xf32>
    %cst_5 = arith.constant 0.000000e+00 : f32
    %6 = vector.broadcast %cst_5 : f32 to vector<2x512xf32>
    %7 = arith.maximumf %5, %6 : vector<2x512xf32>
    %8 = arith.truncf %7 : vector<2x512xf32> to vector<2x512xbf16>
    %c0_6 = arith.constant 0 : index
    %c0_7 = arith.constant 0 : index
    %9 = vector.load %arg3[%c0_6, %c0_7] : memref<512x128xbf16, #tpu.memory_space<vmem>>, vector<512x128xbf16>
    %cst_8 = arith.constant dense<0.000000e+00> : vector<2x128xf32>
    %10 = tpu.matmul %8, %9, %cst_8 {dimension_numbers = #tpu.dot_dimension_numbers<[1], [0], [0], [1], [0, 0, 1, 1], [], []>} : vector<2x512xbf16>, vector<512x128xbf16>, vector<2x128xf32> -> vector<2x128xf32>
    %c0_9 = arith.constant 0 : index
    %c0_10 = arith.constant 0 : index
    %11 = vector.load %arg4[%c0_9, %c0_10] : memref<1x128xf32, #tpu.memory_space<vmem>>, vector<1x128xf32>
    %12 = vector.broadcast %11 : vector<1x128xf32> to vector<2x128xf32>
    %13 = arith.addf %10, %12 : vector<2x128xf32>
    %cst_11 = arith.constant 0.000000e+00 : f32
    %14 = vector.broadcast %cst_11 : f32 to vector<2x128xf32>
    %15 = arith.maximumf %13, %14 : vector<2x128xf32>
    %16 = arith.truncf %15 : vector<2x128xf32> to vector<2x128xbf16>
    %c0_12 = arith.constant 0 : index
    %c0_13 = arith.constant 0 : index
    %17 = vector.load %arg5[%c0_12, %c0_13] : memref<128x4xbf16, #tpu.memory_space<vmem>>, vector<128x4xbf16>
    %cst_14 = arith.constant dense<0.000000e+00> : vector<2x4xf32>
    %18 = tpu.matmul %16, %17, %cst_14 {dimension_numbers = #tpu.dot_dimension_numbers<[1], [0], [0], [1], [0, 0, 1, 1], [], []>} : vector<2x128xbf16>, vector<128x4xbf16>, vector<2x4xf32> -> vector<2x4xf32>
    %c0_15 = arith.constant 0 : index
    %c0_16 = arith.constant 0 : index
    %19 = vector.load %arg6[%c0_15, %c0_16] : memref<1x4xf32, #tpu.memory_space<vmem>>, vector<1x4xf32>
    %20 = vector.broadcast %19 : vector<1x4xf32> to vector<2x4xf32>
    %21 = arith.addf %18, %20 : vector<2x4xf32>
    %cst_17 = arith.constant dense<0xFF800000> : vector<2xf32>
    %22 = vector.multi_reduction <maximumf>, %21, %cst_17 [1] : vector<2x4xf32> to vector<2xf32>
    %23 = vector.shape_cast %22 : vector<2xf32> to vector<2x1xf32>
    %24 = vector.broadcast %23 : vector<2x1xf32> to vector<2x4xf32>
    %25 = arith.subf %21, %24 : vector<2x4xf32>
    %26 = math.exp %25 : vector<2x4xf32>
    %cst_18 = arith.constant dense<0.000000e+00> : vector<2xf32>
    %27 = vector.multi_reduction <add>, %26, %cst_18 [1] : vector<2x4xf32> to vector<2xf32>
    %28 = vector.shape_cast %27 : vector<2xf32> to vector<2x1xf32>
    %29 = math.log %28 : vector<2x1xf32>
    %30 = arith.addf %23, %29 : vector<2x1xf32>
    %31 = vector.broadcast %30 : vector<2x1xf32> to vector<2x4xf32>
    %32 = arith.subf %21, %31 : vector<2x4xf32>
    %c0_19 = arith.constant 0 : index
    %c0_20 = arith.constant 0 : index
    %33 = vector.load %arg7[%c0_19, %c0_20] : memref<2x4xf32, #tpu.memory_space<vmem>>, vector<2x4xf32>
    tpu.vector_store %arg7[%c0_19, %c0_20], %32 {strides = array<i32>} : memref<2x4xf32, #tpu.memory_space<vmem>>, vector<2x4xf32>,
    return
  }
}

</mosaic_0001>

<llo_original>
// kernel: gcn_forward.2
$region0: #{gcn_forward.2}
  #allocation0 [shape = 'u32[]', space=smem, size = 0x4, offset = 0x4, fixed_abs, tag = 'smem constant byte address 0x4 - core index']
  #allocation1 [shape = 'u32[72,128]{1,0:T(1,128)}', space=vmem, size = 0x9000, scoped, tag = 'internal scratch']
  %s0 = inlined_call_operand.vmem [shape: bf16[128,16], index: 0, kind: input, shape index: {}]
  %s1 = inlined_call_operand.vmem [shape: bf16[128,128], index: 1, kind: input, shape index: {}]
  %s2 = inlined_call_operand.hbm [shape: bf16[16,32], index: 2, kind: input, shape index: {}]
  %s3 = inlined_call_operand.hbm [shape: f32[1,32], index: 3, kind: input, shape index: {}]
  %s4 = inlined_call_operand.hbm [shape: bf16[32,32], index: 4, kind: input, shape index: {}]
  %s5 = inlined_call_operand.hbm [shape: f32[1,32], index: 5, kind: input, shape index: {}]
  %s6 = inlined_call_operand.vmem [shape: bf16[128,32], index: 6, kind: output, shape index: {}]
  %s7 = sld [smem:[#allocation0]]
  $region50: #{gcn_forward.2} parent=0
    _
  %s9 = ssub.s32 1, %s7
  %s10 = scalar_select 0, %s9, %s7
  $region1: #{gcn_forward.2} parent=0
    #allocation2 [shape = 'u8[4096]{0}', space=vmem, size = 0x1000, scoped, tag = 'input window, operand 2, single buffered']
    #allocation3 [shape = 's32[1]{0}', space=sflag, size = 0x4, scoped, tag = 'scoped memory for gcn_forward.2']
    #allocation4 [shape = 'u8[512]{0}', space=vmem, size = 0x400, scoped, tag = 'input window, operand 3, single buffered']
    #allocation5 [shape = 's32[1]{0}', space=sflag, size = 0x4, scoped, tag = 'scoped memory for gcn_forward.2']
    #allocation6 [shape = 'u8[8192]{0}', space=vmem, size = 0x2000, scoped, tag = 'input window, operand 4, single buffered']
    #allocation7 [shape = 'u8[512]{0}', space=vmem, size = 0x400, scoped, tag = 'input window, operand 5, single buffered']
    #allocation8 [shape = 's32[1]{0}', space=sflag, size = 0x4, scoped, tag = 'scoped memory for gcn_forward.2']
    %11 = vsyncpa [#allocation3], 0
    %12 = vsyncpa [#allocation5], 0
    %13 = vsyncpa [#allocation8], 0
    // Predicated region
    $region2: #{gcn_forward.2} parent=1 // pred_check
      _
    $region3: #{gcn_forward.2} parent=1 // pred_check_branch
      %15 = sbr.rel (0) target = $region5
    $region4: #{gcn_forward.2} parent=1 // pred_region
      _
    $region5: #{gcn_forward.2} parent=1 // pred_fallthru
      _
    // Predicated region
    $region6: #{gcn_forward.2} parent=1 // pred_check
      _
    $region7: #{gcn_forward.2} parent=1 // pred_check_branch
      %17 = sbr.rel (0) target = $region9
    $region8: #{gcn_forward.2} parent=1 // pred_region
      _
    $region9: #{gcn_forward.2} parent=1 // pred_fallthru
      _
    // Predicated region
    $region10: #{gcn_forward.2} parent=1 // pred_check
      _
    $region11: #{gcn_forward.2} parent=1 // pred_check_branch
      %19 = sbr.rel (0) target = $region13
    $region12: #{gcn_forward.2} parent=1 // pred_region
      %21 = vsyncadd [#allocation3], 0
      %s22 = sshll.u32 %s2, 4
      %s23 = int_to_ptr.hbm [resolvable:$true] %s22
      %s24 = sshll.u32 [#allocation2], 4
      %s25 = int_to_ptr.vmem [resolvable:$true] %s24
      %30 = dma.hbm_to_vmem [thread:$0]  %s23, 128, %s25, [#allocation3], 64, 64, 4
    $region13: #{gcn_forward.2} parent=1 // pred_fallthru
      _
    // Predicated region
    $region14: #{gcn_forward.2} parent=1 // pred_check
      _
    $region15: #{gcn_forward.2} parent=1 // pred_check_branch
      %32 = sbr.rel (0) target = $region17
    $region16: #{gcn_forward.2} parent=1 // pred_region
      %34 = vsyncadd [#allocation5], 0
      %s36 = sshll.u32 %s3, 4
      %s37 = int_to_ptr.hbm [resolvable:$true] %s36
      %s38 = sshll.u32 [#allocation4], 4
      %s39 = int_to_ptr.vmem [resolvable:$true] %s38
      %41 = dma.hbm_to_vmem [thread:$0]  %s37, 16, %s39, [#allocation5]
    $region17: #{gcn_forward.2} parent=1 // pred_fallthru
      _
    // Predicated region
    $region18: #{gcn_forward.2} parent=1 // pred_check
      _
    $region19: #{gcn_forward.2} parent=1 // pred_check_branch
      %43 = sbr.rel (0) target = $region21
    $region20: #{gcn_forward.2} parent=1 // pred_region
      %45 = vsyncadd [#allocation5], 0
      %s46 = sshll.u32 %s4, 4
      %s47 = int_to_ptr.hbm [resolvable:$true] %s46
      %s48 = sshll.u32 [#allocation6], 4
      %s49 = int_to_ptr.vmem [resolvable:$true] %s48
      %54 = dma.hbm_to_vmem [thread:$0]  %s47, 256, %s49, [#allocation5], 64, 64, 4
    $region21: #{gcn_forward.2} parent=1 // pred_fallthru
      _
    // Predicated region
    $region22: #{gcn_forward.2} parent=1 // pred_check
      _
    $region23: #{gcn_forward.2} parent=1 // pred_check_branch
      %56 = sbr.rel (0) target = $region25
    $region24: #{gcn_forward.2} parent=1 // pred_region
      %58 = vsyncadd [#allocation8], 0
      %s60 = sshll.u32 %s5, 4
      %s61 = int_to_ptr.hbm [resolvable:$true] %s60
      %s62 = sshll.u32 [#allocation7], 4
      %s63 = int_to_ptr.vmem [resolvable:$true] %s62
      %65 = dma.hbm_to_vmem [thread:$0]  %s61, 16, %s63, [#allocation8]
    $region25: #{gcn_forward.2} parent=1 // pred_fallthru
      _
    // Predicated region
    $region26: #{gcn_forward.2} parent=1 // pred_check
      _
    $region27: #{gcn_forward.2} parent=1 // pred_check_branch
      %67 = sbr.rel (0) target = $region29
    $region28: #{gcn_forward.2} parent=1 // pred_region
      %69 = dma.done [#allocation3], 128
    $region29: #{gcn_forward.2} parent=1 // pred_fallthru
      _
    // Predicated region
    $region30: #{gcn_forward.2} parent=1 // pred_check
      _
    $region31: #{gcn_forward.2} parent=1 // pred_check_branch
      %71 = sbr.rel (0) target = $region33
    $region32: #{gcn_forward.2} parent=1 // pred_region
      %73 = dma.done [#allocation5], 16
    $region33: #{gcn_forward.2} parent=1 // pred_fallthru
      _
    // Predicated region
    $region34: #{gcn_forward.2} parent=1 // pred_check
      _
    $region35: #{gcn_forward.2} parent=1 // pred_check_branch
      %75 = sbr.rel (0) target = $region37
    $region36: #{gcn_forward.2} parent=1 // pred_region
      %77 = dma.done [#allocation5], 256
    $region37: #{gcn_forward.2} parent=1 // pred_fallthru
      _
    // Predicated region
    $region38: #{gcn_forward.2} parent=1 // pred_check
      _
    $region39: #{gcn_forward.2} parent=1 // pred_check_branch
      %79 = sbr.rel (0) target = $region41
    $region40: #{gcn_forward.2} parent=1 // pred_region
      %81 = dma.done [#allocation8], 16
    $region41: #{gcn_forward.2} parent=1 // pred_fallthru
      _
    %v83 = vld [vmem:[%s1] sm:$0xf]
    %v84 = vld [vmem:[%s1 + $0x4] sm:$0xf]
    %v85 = vld [vmem:[%s1 + $0x8] sm:$0xf]
    %v86 = vld [vmem:[%s1 + $0xc] sm:$0xf]
    %v87 = vld [vmem:[%s1 + $0x10] sm:$0xf]
    %v88 = vld [vmem:[%s1 + $0x14] sm:$0xf]
    %v89 = vld [vmem:[%s1 + $0x18] sm:$0xf]
    %v90 = vld [vmem:[%s1 + $0x1c] sm:$0xf]
    %v91 = vld [vmem:[%s1 + $0x20] sm:$0xf]
    %v92 = vld [vmem:[%s1 + $0x24] sm:$0xf]
    %v93 = vld [vmem:[%s1 + $0x28] sm:$0xf]
    %v94 = vld [vmem:[%s1 + $0x2c] sm:$0xf]
    %v95 = vld [vmem:[%s1 + $0x30] sm:$0xf]
    %v96 = vld [vmem:[%s1 + $0x34] sm:$0xf]
    %v97 = vld [vmem:[%s1 + $0x38] sm:$0xf]
    %v98 = vld [vmem:[%s1 + $0x3c] sm:$0xf]
    %v99 = vld [vmem:[%s0] sm:$0xf]
    %v100 = vld [vmem:[%s0 + $0x4] sm:$0xf]
    %v101 = vld [vmem:[%s0 + $0x8] sm:$0xf]
    %v102 = vld [vmem:[%s0 + $0xc] sm:$0xf]
    %v103 = vld [vmem:[%s0 + $0x10] sm:$0xf]
    %v104 = vld [vmem:[%s0 + $0x14] sm:$0xf]
    %v105 = vld [vmem:[%s0 + $0x18] sm:$0xf]
    %v106 = vld [vmem:[%s0 + $0x1c] sm:$0xf]
    %v107 = vld [vmem:[%s0 + $0x20] sm:$0xf]
    %v108 = vld [vmem:[%s0 + $0x24] sm:$0xf]
    %v109 = vld [vmem:[%s0 + $0x28] sm:$0xf]
    %v110 = vld [vmem:[%s0 + $0x2c] sm:$0xf]
    %v111 = vld [vmem:[%s0 + $0x30] sm:$0xf]
    %v112 = vld [vmem:[%s0 + $0x34] sm:$0xf]
    %v113 = vld [vmem:[%s0 + $0x38] sm:$0xf]
    %v114 = vld [vmem:[%s0 + $0x3c] sm:$0xf]
    %v115 = vld [vmem:[#allocation2] sm:$0xf]
    %v116 = vld [vmem:[#allocation2 + $0x4] sm:$0xf]
    %v133 = vunpack.c.l.b16 %v99
    %v134 = vunpack.c.l.b16 %v100
    %v135 = vunpack.c.l.b16 %v101
    %v136 = vunpack.c.l.b16 %v102
    %v137 = vunpack.c.l.b16 %v103
    %v138 = vunpack.c.l.b16 %v104
    %v139 = vunpack.c.l.b16 %v105
    %v140 = vunpack.c.l.b16 %v106
    %v141 = vunpack.c.l.b16 %v107
    %v142 = vunpack.c.l.b16 %v108
    %v143 = vunpack.c.l.b16 %v109
    %v144 = vunpack.c.l.b16 %v110
    %v145 = vunpack.c.l.b16 %v111
    %v146 = vunpack.c.l.b16 %v112
    %v147 = vunpack.c.l.b16 %v113
    %v148 = vunpack.c.l.b16 %v114
    %v149 = vpack.c.b16 %v134, %v133
    %v150 = vpack.c.b16 %v136, %v135
    %v151 = vpack.c.b16 %v138, %v137
    %v152 = vpack.c.b16 %v140, %v139
    %v153 = vpack.c.b16 %v142, %v141
    %v154 = vpack.c.b16 %v144, %v143
    %v155 = vpack.c.b16 %v146, %v145
    %v156 = vpack.c.b16 %v148, %v147
    %v159 = vunpack.c.l.b16 %v115
    %v160 = vunpack.c.l.b16 %v116
    %v161 = vpack.c.b16 %v160, %v159
    %vm163 = vcmask 130048
    %v165 = vsel %vm163, %v149, 0
    %v168 = vsel %vm163, %v150, 0
    %v171 = vsel %vm163, %v151, 0
    %v174 = vsel %vm163, %v152, 0
    %v177 = vsel %vm163, %v153, 0
    %v180 = vsel %vm163, %v154, 0
    %v183 = vsel %vm163, %v155, 0
    %v186 = vsel %vm163, %v156, 0
    %188 = vmatpush.bf16.msra.mxu0 0
    %189 = vmatpush.bf16.msra.mxu0 0
    %190 = vmatpush.bf16.msra.mxu0 0
    %191 = vmatpush.bf16.msra.mxu0 0
    %192 = vmatpush.bf16.msra.mxu0 0
    %193 = vmatpush.bf16.msra.mxu0 0
    %194 = vmatpush.bf16.msra.mxu0 0
    %195 = vmatpush.bf16.msra.mxu0 %v161
    %196 = vmatmul.bf16.gmra.mxu0 %v165
    %v197 = vpop.f32.mrf.mxu0
    %v198 = vadd.f32 0.0, %v197
    %v199 = vpop.f32.mrf.mxu0
    %v200 = vadd.f32 0.0, %v199
    %201 = vmatmul.bf16.gmra.mxu0 %v168
    %v202 = vpop.f32.mrf.mxu0
    %v203 = vadd.f32 0.0, %v202
    %v204 = vpop.f32.mrf.mxu0
    %v205 = vadd.f32 0.0, %v204
    %206 = vmatmul.bf16.gmra.mxu0 %v171
    %v207 = vpop.f32.mrf.mxu0
    %v208 = vadd.f32 0.0, %v207
    %v209 = vpop.f32.mrf.mxu0
    %v210 = vadd.f32 0.0, %v209
    %211 = vmatmul.bf16.gmra.mxu0 %v174
    %v212 = vpop.f32.mrf.mxu0
    %v213 = vadd.f32 0.0, %v212
    %v214 = vpop.f32.mrf.mxu0
    %v215 = vadd.f32 0.0, %v214
    %216 = vmatmul.bf16.gmra.mxu0 %v177
    %v217 = vpop.f32.mrf.mxu0
    %v218 = vadd.f32 0.0, %v217
    %v219 = vpop.f32.mrf.mxu0
    %v220 = vadd.f32 0.0, %v219
    %221 = vmatmul.bf16.gmra.mxu0 %v180
    %v222 = vpop.f32.mrf.mxu0
    %v223 = vadd.f32 0.0, %v222
    %v224 = vpop.f32.mrf.mxu0
    %v225 = vadd.f32 0.0, %v224
    %226 = vmatmul.bf16.gmra.mxu0 %v183
    %v227 = vpop.f32.mrf.mxu0
    %v228 = vadd.f32 0.0, %v227
    %v229 = vpop.f32.mrf.mxu0
    %v230 = vadd.f32 0.0, %v229
    %231 = vmatmul.bf16.gmra.mxu0 %v186
    %v232 = vpop.f32.mrf.mxu0
    %v233 = vadd.f32 0.0, %v232
    %v234 = vpop.f32.mrf.mxu0
    %v235 = vadd.f32 0.0, %v234
    %236 = vdwg.mxu0
    %v237 = vpack.c.bf16 %v200, %v198
    %v238 = vpack.c.bf16 %v205, %v203
    %v239 = vpack.c.bf16 %v210, %v208
    %v240 = vpack.c.bf16 %v215, %v213
    %v241 = vpack.c.bf16 %v220, %v218
    %v242 = vpack.c.bf16 %v225, %v223
    %v243 = vpack.c.bf16 %v230, %v228
    %v244 = vpack.c.bf16 %v235, %v233
    %v245 = vld [vmem:[#allocation4] sm:$0x1]
    %v247 = vperm.slane %v245, 0
    %v265 = vunpack.c.l.b16 %v83
    %v266 = vunpack.c.l.b16 %v84
    %v267 = vunpack.c.l.b16 %v85
    %v268 = vunpack.c.l.b16 %v86
    %v269 = vunpack.c.l.b16 %v87
    %v270 = vunpack.c.l.b16 %v88
    %v271 = vunpack.c.l.b16 %v89
    %v272 = vunpack.c.l.b16 %v90
    %v273 = vunpack.c.l.b16 %v91
    %v274 = vunpack.c.l.b16 %v92
    %v275 = vunpack.c.l.b16 %v93
    %v276 = vunpack.c.l.b16 %v94
    %v277 = vunpack.c.l.b16 %v95
    %v278 = vunpack.c.l.b16 %v96
    %v279 = vunpack.c.l.b16 %v97
    %v280 = vunpack.c.l.b16 %v98
    %v281 = vpack.c.b16 %v266, %v265
    %v282 = vpack.c.b16 %v268, %v267
    %v283 = vpack.c.b16 %v270, %v269
    %v284 = vpack.c.b16 %v272, %v271
    %v285 = vpack.c.b16 %v274, %v273
    %v286 = vpack.c.b16 %v276, %v275
    %v287 = vpack.c.b16 %v278, %v277
    %v288 = vpack.c.b16 %v280, %v279
    %297 = vmatpush.bf16.msra.mxu0 %v244
    %298 = vmatpush.bf16.msra.mxu0 %v243
    %299 = vmatpush.bf16.msra.mxu0 %v242
    %300 = vmatpush.bf16.msra.mxu0 %v241
    %301 = vmatpush.bf16.msra.mxu0 %v240
    %302 = vmatpush.bf16.msra.mxu0 %v239
    %303 = vmatpush.bf16.msra.mxu0 %v238
    %304 = vmatpush.bf16.msra.mxu0 %v237
    %305 = vmatmul.bf16.gmra.mxu0 %v281
    %v306 = vpop.f32.mrf.mxu0
    %v307 = vadd.f32 %v247, %v306
    %v308 = vpop.f32.mrf.mxu0
    %v309 = vadd.f32 %v247, %v308
    %310 = vmatmul.bf16.gmra.mxu0 %v282
    %v311 = vpop.f32.mrf.mxu0
    %v312 = vadd.f32 %v247, %v311
    %v313 = vpop.f32.mrf.mxu0
    %v314 = vadd.f32 %v247, %v313
    %315 = vmatmul.bf16.gmra.mxu0 %v283
    %v316 = vpop.f32.mrf.mxu0
    %v317 = vadd.f32 %v247, %v316
    %v318 = vpop.f32.mrf.mxu0
    %v319 = vadd.f32 %v247, %v318
    %320 = vmatmul.bf16.gmra.mxu0 %v284
    %v321 = vpop.f32.mrf.mxu0
    %v322 = vadd.f32 %v247, %v321
    %v323 = vpop.f32.mrf.mxu0
    %v324 = vadd.f32 %v247, %v323
    %325 = vmatmul.bf16.gmra.mxu0 %v285
    %v326 = vpop.f32.mrf.mxu0
    %v327 = vadd.f32 %v247, %v326
    %v328 = vpop.f32.mrf.mxu0
    %v329 = vadd.f32 %v247, %v328
    %330 = vmatmul.bf16.gmra.mxu0 %v286
    %v331 = vpop.f32.mrf.mxu0
    %v332 = vadd.f32 %v247, %v331
    %v333 = vpop.f32.mrf.mxu0
    %v334 = vadd.f32 %v247, %v333
    %335 = vmatmul.bf16.gmra.mxu0 %v287
    %v336 = vpop.f32.mrf.mxu0
    %v337 = vadd.f32 %v247, %v336
    %v338 = vpop.f32.mrf.mxu0
    %v339 = vadd.f32 %v247, %v338
    %340 = vmatmul.bf16.gmra.mxu0 %v288
    %v341 = vpop.f32.mrf.mxu0
    %v342 = vadd.f32 %v247, %v341
    %v343 = vpop.f32.mrf.mxu0
    %v344 = vadd.f32 %v247, %v343
    %345 = vdwg.mxu0
    %v346 = vmax.f32 %v307, 0.0
    %v347 = vmax.f32 %v309, 0.0
    %v348 = vmax.f32 %v312, 0.0
    %v349 = vmax.f32 %v314, 0.0
    %v350 = vmax.f32 %v317, 0.0
    %v351 = vmax.f32 %v319, 0.0
    %v352 = vmax.f32 %v322, 0.0
    %v353 = vmax.f32 %v324, 0.0
    %v354 = vmax.f32 %v327, 0.0
    %v355 = vmax.f32 %v329, 0.0
    %v356 = vmax.f32 %v332, 0.0
    %v357 = vmax.f32 %v334, 0.0
    %v358 = vmax.f32 %v337, 0.0
    %v359 = vmax.f32 %v339, 0.0
    %v360 = vmax.f32 %v342, 0.0
    %v361 = vmax.f32 %v344, 0.0
    %v362 = vpack.c.bf16 %v347, %v346
    %v363 = vpack.c.bf16 %v349, %v348
    %v364 = vpack.c.bf16 %v351, %v350
    %v365 = vpack.c.bf16 %v353, %v352
    %v366 = vpack.c.bf16 %v355, %v354
    %v367 = vpack.c.bf16 %v357, %v356
    %v368 = vpack.c.bf16 %v359, %v358
    %v369 = vpack.c.bf16 %v361, %v360
    %v370 = vld [vmem:[#allocation6] sm:$0xf]
    %v371 = vld [vmem:[#allocation6 + $0x4] sm:$0xf]
    %v372 = vld [vmem:[#allocation6 + $0x8] sm:$0xf]
    %v373 = vld [vmem:[#allocation6 + $0xc] sm:$0xf]
    %v378 = vunpack.c.l.b16 %v370
    %v379 = vunpack.c.l.b16 %v371
    %v380 = vunpack.c.l.b16 %v372
    %v381 = vunpack.c.l.b16 %v373
    %v382 = vpack.c.b16 %v379, %v378
    %v383 = vpack.c.b16 %v381, %v380
    %vm386 = vcmask 261120
    %v388 = vsel %vm386, %v362, 0
    %v391 = vsel %vm386, %v363, 0
    %v394 = vsel %vm386, %v364, 0
    %v397 = vsel %vm386, %v365, 0
    %v400 = vsel %vm386, %v366, 0
    %v403 = vsel %vm386, %v367, 0
    %v406 = vsel %vm386, %v368, 0
    %v409 = vsel %vm386, %v369, 0
    %411 = vmatpush.bf16.msra.mxu0 0
    %412 = vmatpush.bf16.msra.mxu0 0
    %413 = vmatpush.bf16.msra.mxu0 0
    %414 = vmatpush.bf16.msra.mxu0 0
    %415 = vmatpush.bf16.msra.mxu0 0
    %416 = vmatpush.bf16.msra.mxu0 0
    %417 = vmatpush.bf16.msra.mxu0 %v383
    %418 = vmatpush.bf16.msra.mxu0 %v382
    %419 = vmatmul.bf16.gmra.mxu0 %v388
    %v420 = vpop.f32.mrf.mxu0
    %v421 = vadd.f32 0.0, %v420
    %v422 = vpop.f32.mrf.mxu0
    %v423 = vadd.f32 0.0, %v422
    %424 = vmatmul.bf16.gmra.mxu0 %v391
    %v425 = vpop.f32.mrf.mxu0
    %v426 = vadd.f32 0.0, %v425
    %v427 = vpop.f32.mrf.mxu0
    %v428 = vadd.f32 0.0, %v427
    %429 = vmatmul.bf16.gmra.mxu0 %v394
    %v430 = vpop.f32.mrf.mxu0
    %v431 = vadd.f32 0.0, %v430
    %v432 = vpop.f32.mrf.mxu0
    %v433 = vadd.f32 0.0, %v432
    %434 = vmatmul.bf16.gmra.mxu0 %v397
    %v435 = vpop.f32.mrf.mxu0
    %v436 = vadd.f32 0.0, %v435
    %v437 = vpop.f32.mrf.mxu0
    %v438 = vadd.f32 0.0, %v437
    %439 = vmatmul.bf16.gmra.mxu0 %v400
    %v440 = vpop.f32.mrf.mxu0
    %v441 = vadd.f32 0.0, %v440
    %v442 = vpop.f32.mrf.mxu0
    %v443 = vadd.f32 0.0, %v442
    %444 = vmatmul.bf16.gmra.mxu0 %v403
    %v445 = vpop.f32.mrf.mxu0
    %v446 = vadd.f32 0.0, %v445
    %v447 = vpop.f32.mrf.mxu0
    %v448 = vadd.f32 0.0, %v447
    %449 = vmatmul.bf16.gmra.mxu0 %v406
    %v450 = vpop.f32.mrf.mxu0
    %v451 = vadd.f32 0.0, %v450
    %v452 = vpop.f32.mrf.mxu0
    %v453 = vadd.f32 0.0, %v452
    %454 = vmatmul.bf16.gmra.mxu0 %v409
    %v455 = vpop.f32.mrf.mxu0
    %v456 = vadd.f32 0.0, %v455
    %v457 = vpop.f32.mrf.mxu0
    %v458 = vadd.f32 0.0, %v457
    %459 = vdwg.mxu0
    %v460 = vpack.c.bf16 %v423, %v421
    %v461 = vpack.c.bf16 %v428, %v426
    %v462 = vpack.c.bf16 %v433, %v431
    %v463 = vpack.c.bf16 %v438, %v436
    %v464 = vpack.c.bf16 %v443, %v441
    %v465 = vpack.c.bf16 %v448, %v446
    %v466 = vpack.c.bf16 %v453, %v451
    %v467 = vpack.c.bf16 %v458, %v456
    %v468 = vld [vmem:[#allocation7] sm:$0x1]
    %v470 = vperm.slane %v468, 0
    %472 = vmatpush.bf16.msra.mxu0 %v467
    %473 = vmatpush.bf16.msra.mxu0 %v466
    %474 = vmatpush.bf16.msra.mxu0 %v465
    %475 = vmatpush.bf16.msra.mxu0 %v464
    %476 = vmatpush.bf16.msra.mxu0 %v463
    %477 = vmatpush.bf16.msra.mxu0 %v462
    %478 = vmatpush.bf16.msra.mxu0 %v461
    %479 = vmatpush.bf16.msra.mxu0 %v460
    %480 = vmatmul.bf16.gmra.mxu0 %v281
    %v481 = vpop.f32.mrf.mxu0
    %v482 = vadd.f32 %v470, %v481
    %v483 = vpop.f32.mrf.mxu0
    %v484 = vadd.f32 %v470, %v483
    %485 = vmatmul.bf16.gmra.mxu0 %v282
    %v486 = vpop.f32.mrf.mxu0
    %v487 = vadd.f32 %v470, %v486
    %v488 = vpop.f32.mrf.mxu0
    %v489 = vadd.f32 %v470, %v488
    %490 = vmatmul.bf16.gmra.mxu0 %v283
    %v491 = vpop.f32.mrf.mxu0
    %v492 = vadd.f32 %v470, %v491
    %v493 = vpop.f32.mrf.mxu0
    %v494 = vadd.f32 %v470, %v493
    %495 = vmatmul.bf16.gmra.mxu0 %v284
    %v496 = vpop.f32.mrf.mxu0
    %v497 = vadd.f32 %v470, %v496
    %v498 = vpop.f32.mrf.mxu0
    %v499 = vadd.f32 %v470, %v498
    %500 = vmatmul.bf16.gmra.mxu0 %v285
    %v501 = vpop.f32.mrf.mxu0
    %v502 = vadd.f32 %v470, %v501
    %v503 = vpop.f32.mrf.mxu0
    %v504 = vadd.f32 %v470, %v503
    %505 = vmatmul.bf16.gmra.mxu0 %v286
    %v506 = vpop.f32.mrf.mxu0
    %v507 = vadd.f32 %v470, %v506
    %v508 = vpop.f32.mrf.mxu0
    %v509 = vadd.f32 %v470, %v508
    %510 = vmatmul.bf16.gmra.mxu0 %v287
    %v511 = vpop.f32.mrf.mxu0
    %v512 = vadd.f32 %v470, %v511
    %v513 = vpop.f32.mrf.mxu0
    %v514 = vadd.f32 %v470, %v513
    %515 = vmatmul.bf16.gmra.mxu0 %v288
    %v516 = vpop.f32.mrf.mxu0
    %v517 = vadd.f32 %v470, %v516
    %v518 = vpop.f32.mrf.mxu0
    %v519 = vadd.f32 %v470, %v518
    %520 = vdwg.mxu0
    %v521 = vmax.f32 %v482, 0.0
    %v522 = vmax.f32 %v484, 0.0
    %v523 = vmax.f32 %v487, 0.0
    %v524 = vmax.f32 %v489, 0.0
    %v525 = vmax.f32 %v492, 0.0
    %v526 = vmax.f32 %v494, 0.0
    %v527 = vmax.f32 %v497, 0.0
    %v528 = vmax.f32 %v499, 0.0
    %v529 = vmax.f32 %v502, 0.0
    %v530 = vmax.f32 %v504, 0.0
    %v531 = vmax.f32 %v507, 0.0
    %v532 = vmax.f32 %v509, 0.0
    %v533 = vmax.f32 %v512, 0.0
    %v534 = vmax.f32 %v514, 0.0
    %v535 = vmax.f32 %v517, 0.0
    %v536 = vmax.f32 %v519, 0.0
    %v537 = vpack.c.bf16 %v521, %v521
    %v538 = vpack.c.bf16 %v522, %v522
    %v539 = vpack.c.bf16 %v523, %v523
    %v540 = vpack.c.bf16 %v524, %v524
    %v541 = vpack.c.bf16 %v525, %v525
    %v542 = vpack.c.bf16 %v526, %v526
    %v543 = vpack.c.bf16 %v527, %v527
    %v544 = vpack.c.bf16 %v528, %v528
    %v545 = vpack.c.bf16 %v529, %v529
    %v546 = vpack.c.bf16 %v530, %v530
    %v547 = vpack.c.bf16 %v531, %v531
    %v548 = vpack.c.bf16 %v532, %v532
    %v549 = vpack.c.bf16 %v533, %v533
    %v550 = vpack.c.bf16 %v534, %v534
    %v551 = vpack.c.bf16 %v535, %v535
    %v552 = vpack.c.bf16 %v536, %v536
    %vm553 = vcmask 257024
    %554 = vst.msk [vmem:[%s6] sm:$0xf] %vm553, %v537
    %555 = vst.msk [vmem:[%s6 + $0x4] sm:$0xf] %vm553, %v538
    %556 = vst.msk [vmem:[%s6 + $0x8] sm:$0xf] %vm553, %v539
    %557 = vst.msk [vmem:[%s6 + $0xc] sm:$0xf] %vm553, %v540
    %558 = vst.msk [vmem:[%s6 + $0x10] sm:$0xf] %vm553, %v541
    %559 = vst.msk [vmem:[%s6 + $0x14] sm:$0xf] %vm553, %v542
    %560 = vst.msk [vmem:[%s6 + $0x18] sm:$0xf] %vm553, %v543
    %561 = vst.msk [vmem:[%s6 + $0x1c] sm:$0xf] %vm553, %v544
    %562 = vst.msk [vmem:[%s6 + $0x20] sm:$0xf] %vm553, %v545
    %563 = vst.msk [vmem:[%s6 + $0x24] sm:$0xf] %vm553, %v546
    %564 = vst.msk [vmem:[%s6 + $0x28] sm:$0xf] %vm553, %v547
    %565 = vst.msk [vmem:[%s6 + $0x2c] sm:$0xf] %vm553, %v548
    %566 = vst.msk [vmem:[%s6 + $0x30] sm:$0xf] %vm553, %v549
    %567 = vst.msk [vmem:[%s6 + $0x34] sm:$0xf] %vm553, %v550
    %568 = vst.msk [vmem:[%s6 + $0x38] sm:$0xf] %vm553, %v551
    %569 = vst.msk [vmem:[%s6 + $0x3c] sm:$0xf] %vm553, %v552
    // Predicated region
    $region42: #{gcn_forward.2} parent=1 // pred_check
      _
    $region43: #{gcn_forward.2} parent=1 // pred_check_branch
      %571 = sbr.rel (0) target = $region45
    $region44: #{gcn_forward.2} parent=1 // pred_region
      _
    $region45: #{gcn_forward.2} parent=1 // pred_fallthru
      _
    // Predicated region
    $region46: #{gcn_forward.2} parent=1 // pred_check
      _
    $region47: #{gcn_forward.2} parent=1 // pred_check_branch
      %573 = sbr.rel (0) target = $region49
    $region48: #{gcn_forward.2} parent=1 // pred_region
      _
    $region49: #{gcn_forward.2} parent=1 // pred_fallthru
      _
    %574 = vsyncpa [#allocation3], 1
    %575 = vsyncpa [#allocation5], 1
    %576 = vsyncpa [#allocation8], 1

// kernel: gcn_forward.3
$region0: #{gcn_forward.3}
  #allocation0 [shape = 'u32[]', space=smem, size = 0x4, offset = 0x4, fixed_abs, tag = 'smem constant byte address 0x4 - core index']
  #allocation1 [shape = 'u32[72,128]{1,0:T(1,128)}', space=vmem, size = 0x9000, scoped, tag = 'internal scratch']
  %s0 = inlined_call_operand.vmem [shape: bf16[2,2048], index: 0, kind: input, shape index: {}]
  %s1 = inlined_call_operand.hbm [shape: bf16[2048,512], index: 1, kind: input, shape index: {}]
  %s2 = inlined_call_operand.hbm [shape: f32[1,512], index: 2, kind: input, shape index: {}]
  %s3 = inlined_call_operand.hbm [shape: bf16[512,128], index: 3, kind: input, shape index: {}]
  %s4 = inlined_call_operand.hbm [shape: f32[1,128], index: 4, kind: input, shape index: {}]
  %s5 = inlined_call_operand.hbm [shape: bf16[128,4], index: 5, kind: input, shape index: {}]
  %s6 = inlined_call_operand.hbm [shape: f32[1,4], index: 6, kind: input, shape index: {}]
  %s7 = inlined_call_operand.hbm [shape: f32[2,4], index: 7, kind: output, shape index: {}]
  %s8 = sld [smem:[#allocation0]]
  $region62: #{gcn_forward.3} parent=0
    _
  %s10 = ssub.s32 1, %s8
  %s11 = scalar_select 0, %s10, %s8
  $region1: #{gcn_forward.3} parent=0
    #allocation2 [shape = 'u8[2097152]{0}', space=vmem, size = 0x200000, scoped, tag = 'input window, operand 1, single buffered']
    #allocation3 [shape = 's32[1]{0}', space=sflag, size = 0x4, scoped, tag = 'scoped memory for gcn_forward.3']
    #allocation4 [shape = 's32[1]{0}', space=sflag, size = 0x4, scoped, tag = 'scoped memory for gcn_forward.3']
    #allocation5 [shape = 'u8[2048]{0}', space=vmem, size = 0x800, scoped, tag = 'input window, operand 2, single buffered']
    #allocation6 [shape = 's32[1]{0}', space=sflag, size = 0x4, scoped, tag = 'scoped memory for gcn_forward.3']
    #allocation7 [shape = 'u8[131072]{0}', space=vmem, size = 0x20000, scoped, tag = 'input window, operand 3, single buffered']
    #allocation8 [shape = 'u8[512]{0}', space=vmem, size = 0x400, scoped, tag = 'input window, operand 4, single buffered']
    #allocation9 [shape = 's32[1]{0}', space=sflag, size = 0x4, scoped, tag = 'scoped memory for gcn_forward.3']
    #allocation10 [shape = 'u8[32768]{0}', space=vmem, size = 0x8000, scoped, tag = 'input window, operand 5, single buffered']
    #allocation11 [shape = 'u8[512]{0}', space=vmem, size = 0x400, scoped, tag = 'input window, operand 6, single buffered']
    #allocation12 [shape = 's32[1]{0}', space=sflag, size = 0x4, scoped, tag = 'scoped memory for gcn_forward.3']
    #allocation13 [shape = 'u8[1024]{0}', space=vmem, size = 0x400, scoped, tag = 'output window, operand 0, single buffered']
    %12 = vsyncpa [#allocation3], 0
    %13 = vsyncpa [#allocation6], 0
    %14 = vsyncpa [#allocation9], 0
    %15 = vsyncpa [#allocation12], 0
    %16 = vsyncpa [#allocation4], 0
    // Predicated region
    $region2: #{gcn_forward.3} parent=1 // pred_check
      _
    $region3: #{gcn_forward.3} parent=1 // pred_check_branch
      %18 = sbr.rel (0) target = $region5
    $region4: #{gcn_forward.3} parent=1 // pred_region
      _
    $region5: #{gcn_forward.3} parent=1 // pred_fallthru
      _
    // Predicated region
    $region6: #{gcn_forward.3} parent=1 // pred_check
      _
    $region7: #{gcn_forward.3} parent=1 // pred_check_branch
      %20 = sbr.rel (0) target = $region9
    $region8: #{gcn_forward.3} parent=1 // pred_region
      %22 = vsyncadd [#allocation3], 0
      %s23 = sshll.u32 %s1, 4
      %s24 = int_to_ptr.hbm [resolvable:$true] %s23
      %s25 = sshll.u32 [#allocation2], 4
      %s26 = int_to_ptr.vmem [resolvable:$true] %s25
      %31 = dma.hbm_to_vmem [thread:$0]  %s24, 65536, %s26, [#allocation3], 256, 256, 16
    $region9: #{gcn_forward.3} parent=1 // pred_fallthru
      _
    // Predicated region
    $region10: #{gcn_forward.3} parent=1 // pred_check
      _
    $region11: #{gcn_forward.3} parent=1 // pred_check_branch
      %33 = sbr.rel (0) target = $region13
    $region12: #{gcn_forward.3} parent=1 // pred_region
      %35 = vsyncadd [#allocation6], 0
      %s37 = sshll.u32 %s2, 4
      %s38 = int_to_ptr.hbm [resolvable:$true] %s37
      %s39 = sshll.u32 [#allocation5], 4
      %s40 = int_to_ptr.vmem [resolvable:$true] %s39
      %42 = dma.hbm_to_vmem [thread:$0]  %s38, 64, %s40, [#allocation6]
    $region13: #{gcn_forward.3} parent=1 // pred_fallthru
      _
    // Predicated region
    $region14: #{gcn_forward.3} parent=1 // pred_check
      _
    $region15: #{gcn_forward.3} parent=1 // pred_check_branch
      %44 = sbr.rel (0) target = $region17
    $region16: #{gcn_forward.3} parent=1 // pred_region
      %46 = vsyncadd [#allocation6], 0
      %s47 = sshll.u32 %s3, 4
      %s48 = int_to_ptr.hbm [resolvable:$true] %s47
      %s49 = sshll.u32 [#allocation7], 4
      %s50 = int_to_ptr.vmem [resolvable:$true] %s49
      %55 = dma.hbm_to_vmem [thread:$0]  %s48, 4096, %s50, [#allocation6], 64, 64, 4
    $region17: #{gcn_forward.3} parent=1 // pred_fallthru
      _
    // Predicated region
    $region18: #{gcn_forward.3} parent=1 // pred_check
      _
    $region19: #{gcn_forward.3} parent=1 // pred_check_branch
      %57 = sbr.rel (0) target = $region21
    $region20: #{gcn_forward.3} parent=1 // pred_region
      %59 = vsyncadd [#allocation9], 0
      %s61 = sshll.u32 %s4, 4
      %s62 = int_to_ptr.hbm [resolvable:$true] %s61
      %s63 = sshll.u32 [#allocation8], 4
      %s64 = int_to_ptr.vmem [resolvable:$true] %s63
      %66 = dma.hbm_to_vmem [thread:$0]  %s62, 16, %s64, [#allocation9]
    $region21: #{gcn_forward.3} parent=1 // pred_fallthru
      _
    // Predicated region
    $region22: #{gcn_forward.3} parent=1 // pred_check
      _
    $region23: #{gcn_forward.3} parent=1 // pred_check_branch
      %68 = sbr.rel (0) target = $region25
    $region24: #{gcn_forward.3} parent=1 // pred_region
      %70 = vsyncadd [#allocation9], 0
      %s71 = sshll.u32 %s5, 4
      %s72 = int_to_ptr.hbm [resolvable:$true] %s71
      %s73 = sshll.u32 [#allocation10], 4
      %s74 = int_to_ptr.vmem [resolvable:$true] %s73
      %79 = dma.hbm_to_vmem [thread:$0]  %s72, 1024, %s74, [#allocation9], 64, 64, 4
    $region25: #{gcn_forward.3} parent=1 // pred_fallthru
      _
    // Predicated region
    $region26: #{gcn_forward.3} parent=1 // pred_check
      _
    $region27: #{gcn_forward.3} parent=1 // pred_check_branch
      %81 = sbr.rel (0) target = $region29
    $region28: #{gcn_forward.3} parent=1 // pred_region
      %83 = vsyncadd [#allocation12], 0
      %s85 = sshll.u32 %s6, 4
      %s86 = int_to_ptr.hbm [resolvable:$true] %s85
      %s87 = sshll.u32 [#allocation11], 4
      %s88 = int_to_ptr.vmem [resolvable:$true] %s87
      %90 = dma.hbm_to_vmem [thread:$0]  %s86, 16, %s88, [#allocation12]
    $region29: #{gcn_forward.3} parent=1 // pred_fallthru
      _
    // Predicated region
    $region30: #{gcn_forward.3} parent=1 // pred_check
      _
    $region31: #{gcn_forward.3} parent=1 // pred_check_branch
      %92 = sbr.rel (0) target = $region33
    $region32: #{gcn_forward.3} parent=1 // pred_region
      %94 = dma.done [#allocation3], 65536
    $region33: #{gcn_forward.3} parent=1 // pred_fallthru
      _
    // Predicated region
    $region34: #{gcn_forward.3} parent=1 // pred_check
      _
    $region35: #{gcn_forward.3} parent=1 // pred_check_branch
      %96 = sbr.rel (0) target = $region37
    $region36: #{gcn_forward.3} parent=1 // pred_region
      %98 = dma.done [#allocation6], 64
    $region37: #{gcn_forward.3} parent=1 // pred_fallthru
      _
    // Predicated region
    $region38: #{gcn_forward.3} parent=1 // pred_check
      _
    $region39: #{gcn_forward.3} parent=1 // pred_check_branch
      %100 = sbr.rel (0) target = $region41
    $region40: #{gcn_forward.3} parent=1 // pred_region
      %102 = dma.done [#allocation6], 4096
    $region41: #{gcn_forward.3} parent=1 // pred_fallthru
      _
    // Predicated region
    $region42: #{gcn_forward.3} parent=1 // pred_check
      _
    $region43: #{gcn_forward.3} parent=1 // pred_check_branch
      %104 = sbr.rel (0) target = $region45
    $region44: #{gcn_forward.3} parent=1 // pred_region
      %106 = dma.done [#allocation9], 16
    $region45: #{gcn_forward.3} parent=1 // pred_fallthru
      _
    // Predicated region
    $region46: #{gcn_forward.3} parent=1 // pred_check
      _
    $region47: #{gcn_forward.3} parent=1 // pred_check_branch
      %108 = sbr.rel (0) target = $region49
    $region48: #{gcn_forward.3} parent=1 // pred_region
      %110 = dma.done [#allocation9], 1024
    $region49: #{gcn_forward.3} parent=1 // pred_fallthru
      _
    // Predicated region
    $region50: #{gcn_forward.3} parent=1 // pred_check
      _
    $region51: #{gcn_forward.3} parent=1 // pred_check_branch
      %112 = sbr.rel (0) target = $region53
    $region52: #{gcn_forward.3} parent=1 // pred_region
      %114 = dma.done [#allocation12], 16
    $region53: #{gcn_forward.3} parent=1 // pred_fallthru
      _
    %v115 = vld [vmem:[%s0] sm:$0xff]
    %v116 = vld [vmem:[%s0 + $0x8] sm:$0xff]
    %v117 = vld [vmem:[#allocation2] sm:$0xff]
    %v118 = vld [vmem:[#allocation2 + $0x8] sm:$0xff]
    %v119 = vld [vmem:[#allocation2 + $0x10] sm:$0xff]
    %v120 = vld [vmem:[#allocation2 + $0x18] sm:$0xff]
    %v121 = vld [vmem:[#allocation2 + $0x20] sm:$0xff]
    %v122 = vld [vmem:[#allocation2 + $0x28] sm:$0xff]
    %v123 = vld [vmem:[#allocation2 + $0x30] sm:$0xff]
    %v124 = vld [vmem:[#allocation2 + $0x38] sm:$0xff]
    %v125 = vld [vmem:[#allocation2 + $0x40] sm:$0xff]
    %v126 = vld [vmem:[#allocation2 + $0x48] sm:$0xff]
    %v127 = vld [vmem:[#allocation2 + $0x50] sm:$0xff]
    %v128 = vld [vmem:[#allocation2 + $0x58] sm:$0xff]
    %v129 = vld [vmem:[#allocation2 + $0x60] sm:$0xff]
    %v130 = vld [vmem:[#allocation2 + $0x68] sm:$0xff]
    %v131 = vld [vmem:[#allocation2 + $0x70] sm:$0xff]
    %v132 = vld [vmem:[#allocation2 + $0x78] sm:$0xff]
    %v133 = vld [vmem:[#allocation2 + $0x80] sm:$0xff]
    %v134 = vld [vmem:[#allocation2 + $0x88] sm:$0xff]
    %v135 = vld [vmem:[#allocation2 + $0x90] sm:$0xff]
    %v136 = vld [vmem:[#allocation2 + $0x98] sm:$0xff]
    %v137 = vld [vmem:[#allocation2 + $0xa0] sm:$0xff]
    %v138 = vld [vmem:[#allocation2 + $0xa8] sm:$0xff]
    %v139 = vld [vmem:[#allocation2 + $0xb0] sm:$0xff]
    %v140 = vld [vmem:[#allocation2 + $0xb8] sm:$0xff]
    %v141 = vld [vmem:[#allocation2 + $0xc0] sm:$0xff]
    %v142 = vld [vmem:[#allocation2 + $0xc8] sm:$0xff]
    %v143 = vld [vmem:[#allocation2 + $0xd0] sm:$0xff]
    %v144 = vld [vmem:[#allocation2 + $0xd8] sm:$0xff]
    %v145 = vld [vmem:[#allocation2 + $0xe0] sm:$0xff]
    %v146 = vld [vmem:[#allocation2 + $0xe8] sm:$0xff]
    %v147 = vld [vmem:[#allocation2 + $0xf0] sm:$0xff]
    %v148 = vld [vmem:[#allocation2 + $0xf8] sm:$0xff]
    %v149 = vld [vmem:[#allocation2 + $0x100] sm:$0xff]
    %v150 = vld [vmem:[#allocation2 + $0x108] sm:$0xff]
    %v151 = vld [vmem:[#allocation2 + $0x110] sm:$0xff]
    %v152 = vld [vmem:[#allocation2 + $0x118] sm:$0xff]
    %v153 = vld [vmem:[#allocation2 + $0x120] sm:$0xff]
    %v154 = vld [vmem:[#allocation2 + $0x128] sm:$0xff]
    %v155 = vld [vmem:[#allocation2 + $0x130] sm:$0xff]
    %v156 = vld [vmem:[#allocation2 + $0x138] sm:$0xff]
    %v157 = vld [vmem:[#allocation2 + $0x140] sm:$0xff]
    %v158 = vld [vmem:[#allocation2 + $0x148] sm:$0xff]
    %v159 = vld [vmem:[#allocation2 + $0x150] sm:$0xff]
    %v160 = vld [vmem:[#allocation2 + $0x158] sm:$0xff]
    %v161 = vld [vmem:[#allocation2 + $0x160] sm:$0xff]
    %v162 = vld [vmem:[#allocation2 + $0x168] sm:$0xff]
    %v163 = vld [vmem:[#allocation2 + $0x170] sm:$0xff]
    %v164 = vld [vmem:[#allocation2 + $0x178] sm:$0xff]
    %v165 = vld [vmem:[#allocation2 + $0x180] sm:$0xff]
    %v166 = vld [vmem:[#allocation2 + $0x188] sm:$0xff]
    %v167 = vld [vmem:[#allocation2 + $0x190] sm:$0xff]
    %v168 = vld [vmem:[#allocation2 + $0x198] sm:$0xff]
    %v169 = vld [vmem:[#allocation2 + $0x1a0] sm:$0xff]
    %v170 = vld [vmem:[#allocation2 + $0x1a8] sm:$0xff]
    %v171 = vld [vmem:[#allocation2 + $0x1b0] sm:$0xff]
    %v172 = vld [vmem:[#allocation2 + $0x1b8] sm:$0xff]
    %v173 = vld [vmem:[#allocation2 + $0x1c0] sm:$0xff]
    %v174 = vld [vmem:[#allocation2 + $0x1c8] sm:$0xff]
    %v175 = vld [vmem:[#allocation2 + $0x1d0] sm:$0xff]
    %v176 = vld [vmem:[#allocation2 + $0x1d8] sm:$0xff]
    %v177 = vld [vmem:[#allocation2 + $0x1e0] sm:$0xff]
    %v178 = vld [vmem:[#allocation2 + $0x1e8] sm:$0xff]
    %v179 = vld [vmem:[#allocation2 + $0x1f0] sm:$0xff]
    %v180 = vld [vmem:[#allocation2 + $0x1f8] sm:$0xff]
    %v181 = vld [vmem:[#allocation2 + $0x200] sm:$0xff]
    %v182 = vld [vmem:[#allocation2 + $0x208] sm:$0xff]
    %v183 = vld [vmem:[#allocation2 + $0x210] sm:$0xff]
    %v184 = vld [vmem:[#allocation2 + $0x218] sm:$0xff]
    %v185 = vld [vmem:[#allocation2 + $0x220] sm:$0xff]
    %v186 = vld [vmem:[#allocation2 + $0x228] sm:$0xff]
    %v187 = vld [vmem:[#allocation2 + $0x230] sm:$0xff]
    %v188 = vld [vmem:[#allocation2 + $0x238] sm:$0xff]
    %v189 = vld [vmem:[#allocation2 + $0x240] sm:$0xff]
    %v190 = vld [vmem:[#allocation2 + $0x248] sm:$0xff]
    %v191 = vld [vmem:[#allocation2 + $0x250] sm:$0xff]
    %v192 = vld [vmem:[#allocation2 + $0x258] sm:$0xff]
    %v193 = vld [vmem:[#allocation2 + $0x260] sm:$0xff]
    %v194 = vld [vmem:[#allocation2 + $0x268] sm:$0xff]
    %v195 = vld [vmem:[#allocation2 + $0x270] sm:$0xff]
    %v196 = vld [vmem:[#allocation2 + $0x278] sm:$0xff]
    %v197 = vld [vmem:[#allocation2 + $0x280] sm:$0xff]
    %v198 = vld [vmem:[#allocation2 + $0x288] sm:$0xff]
    %v199 = vld [vmem:[#allocation2 + $0x290] sm:$0xff]
    %v200 = vld [vmem:[#allocation2 + $0x298] sm:$0xff]
    %v201 = vld [vmem:[#allocation2 + $0x2a0] sm:$0xff]
    %v202 = vld [vmem:[#allocation2 + $0x2a8] sm:$0xff]
    %v203 = vld [vmem:[#allocation2 + $0x2b0] sm:$0xff]
    %v204 = vld [vmem:[#allocation2 + $0x2b8] sm:$0xff]
    %v205 = vld [vmem:[#allocation2 + $0x2c0] sm:$0xff]
    %v206 = vld [vmem:[#allocation2 + $0x2c8] sm:$0xff]
    %v207 = vld [vmem:[#allocation2 + $0x2d0] sm:$0xff]
    %v208 = vld [vmem:[#allocation2 + $0x2d8] sm:$0xff]
    %v209 = vld [vmem:[#allocation2 + $0x2e0] sm:$0xff]
    %v210 = vld [vmem:[#allocation2 + $0x2e8] sm:$0xff]
    %v211 = vld [vmem:[#allocation2 + $0x2f0] sm:$0xff]
    %v212 = vld [vmem:[#allocation2 + $0x2f8] sm:$0xff]
    %v213 = vld [vmem:[#allocation2 + $0x300] sm:$0xff]
    %v214 = vld [vmem:[#allocation2 + $0x308] sm:$0xff]
    %v215 = vld [vmem:[#allocation2 + $0x310] sm:$0xff]
    %v216 = vld [vmem:[#allocation2 + $0x318] sm:$0xff]
    %v217 = vld [vmem:[#allocation2 + $0x320] sm:$0xff]
    %v218 = vld [vmem:[#allocation2 + $0x328] sm:$0xff]
    %v219 = vld [vmem:[#allocation2 + $0x330] sm:$0xff]
    %v220 = vld [vmem:[#allocation2 + $0x338] sm:$0xff]
    %v221 = vld [vmem:[#allocation2 + $0x340] sm:$0xff]
    %v222 = vld [vmem:[#allocation2 + $0x348] sm:$0xff]
    %v223 = vld [vmem:[#allocation2 + $0x350] sm:$0xff]
    %v224 = vld [vmem:[#allocation2 + $0x358] sm:$0xff]
    %v225 = vld [vmem:[#allocation2 + $0x360] sm:$0xff]
    %v226 = vld [vmem:[#allocation2 + $0x368] sm:$0xff]
    %v227 = vld [vmem:[#allocation2 + $0x370] sm:$0xff]
    %v228 = vld [vmem:[#allocation2 + $0x378] sm:$0xff]
    %v229 = vld [vmem:[#allocation2 + $0x380] sm:$0xff]
    %v230 = vld [vmem:[#allocation2 + $0x388] sm:$0xff]
    %v231 = vld [vmem:[#allocation2 + $0x390] sm:$0xff]
    %v232 = vld [vmem:[#allocation2 + $0x398] sm:$0xff]
    %v233 = vld [vmem:[#allocation2 + $0x3a0] sm:$0xff]
    %v234 = vld [vmem:[#allocation2 + $0x3a8] sm:$0xff]
    %v235 = vld [vmem:[#allocation2 + $0x3b0] sm:$0xff]
    %v236 = vld [vmem:[#allocation2 + $0x3b8] sm:$0xff]
    %v237 = vld [vmem:[#allocation2 + $0x3c0] sm:$0xff]
    %v238 = vld [vmem:[#allocation2 + $0x3c8] sm:$0xff]
    %v239 = vld [vmem:[#allocation2 + $0x3d0] sm:$0xff]
    %v240 = vld [vmem:[#allocation2 + $0x3d8] sm:$0xff]
    %v241 = vld [vmem:[#allocation2 + $0x3e0] sm:$0xff]
    %v242 = vld [vmem:[#allocation2 + $0x3e8] sm:$0xff]
    %v243 = vld [vmem:[#allocation2 + $0x3f0] sm:$0xff]
    %v244 = vld [vmem:[#allocation2 + $0x3f8] sm:$0xff]
    %v245 = vld [vmem:[#allocation2 + $0x400] sm:$0xff]
    %v246 = vld [vmem:[#allocation2 + $0x408] sm:$0xff]
    %v247 = vld [vmem:[#allocation2 + $0x410] sm:$0xff]
    %v248 = vld [vmem:[#allocation2 + $0x418] sm:$0xff]
    %v249 = vld [vmem:[#allocation2 + $0x420] sm:$0xff]
    %v250 = vld [vmem:[#allocation2 + $0x428] sm:$0xff]
    %v251 = vld [vmem:[#allocation2 + $0x430] sm:$0xff]
    %v252 = vld [vmem:[#allocation2 + $0x438] sm:$0xff]
    %v253 = vld [vmem:[#allocation2 + $0x440] sm:$0xff]
    %v254 = vld [vmem:[#allocation2 + $0x448] sm:$0xff]
    %v255 = vld [vmem:[#allocation2 + $0x450] sm:$0xff]
    %v256 = vld [vmem:[#allocation2 + $0x458] sm:$0xff]
    %v257 = vld [vmem:[#allocation2 + $0x460] sm:$0xff]
    %v258 = vld [vmem:[#allocation2 + $0x468] sm:$0xff]
    %v259 = vld [vmem:[#allocation2 + $0x470] sm:$0xff]
    %v260 = vld [vmem:[#allocation2 + $0x478] sm:$0xff]
    %v261 = vld [vmem:[#allocation2 + $0x480] sm:$0xff]
    %v262 = vld [vmem:[#allocation2 + $0x488] sm:$0xff]
    %v263 = vld [vmem:[#allocation2 + $0x490] sm:$0xff]
    %v264 = vld [vmem:[#allocation2 + $0x498] sm:$0xff]
    %v265 = vld [vmem:[#allocation2 + $0x4a0] sm:$0xff]
    %v266 = vld [vmem:[#allocation2 + $0x4a8] sm:$0xff]
    %v267 = vld [vmem:[#allocation2 + $0x4b0] sm:$0xff]
    %v268 = vld [vmem:[#allocation2 + $0x4b8] sm:$0xff]
    %v269 = vld [vmem:[#allocation2 + $0x4c0] sm:$0xff]
    %v270 = vld [vmem:[#allocation2 + $0x4c8] sm:$0xff]
    %v271 = vld [vmem:[#allocation2 + $0x4d0] sm:$0xff]
    %v272 = vld [vmem:[#allocation2 + $0x4d8] sm:$0xff]
    %v273 = vld [vmem:[#allocation2 + $0x4e0] sm:$0xff]
    %v274 = vld [vmem:[#allocation2 + $0x4e8] sm:$0xff]
    %v275 = vld [vmem:[#allocation2 + $0x4f0] sm:$0xff]
    %v276 = vld [vmem:[#allocation2 + $0x4f8] sm:$0xff]
    %v277 = vld [vmem:[#allocation2 + $0x500] sm:$0xff]
    %v278 = vld [vmem:[#allocation2 + $0x508] sm:$0xff]
    %v279 = vld [vmem:[#allocation2 + $0x510] sm:$0xff]
    %v280 = vld [vmem:[#allocation2 + $0x518] sm:$0xff]
    %v281 = vld [vmem:[#allocation2 + $0x520] sm:$0xff]
    %v282 = vld [vmem:[#allocation2 + $0x528] sm:$0xff]
    %v283 = vld [vmem:[#allocation2 + $0x530] sm:$0xff]
    %v284 = vld [vmem:[#allocation2 + $0x538] sm:$0xff]
    %v285 = vld [vmem:[#allocation2 + $0x540] sm:$0xff]
    %v286 = vld [vmem:[#allocation2 + $0x548] sm:$0xff]
    %v287 = vld [vmem:[#allocation2 + $0x550] sm:$0xff]
    %v288 = vld [vmem:[#allocation2 + $0x558] sm:$0xff]
    %v289 = vld [vmem:[#allocation2 + $0x560] sm:$0xff]
    %v290 = vld [vmem:[#allocation2 + $0x568] sm:$0xff]
    %v291 = vld [vmem:[#allocation2 + $0x570] sm:$0xff]
    %v292 = vld [vmem:[#allocation2 + $0x578] sm:$0xff]
    %v293 = vld [vmem:[#allocation2 + $0x580] sm:$0xff]
    %v294 = vld [vmem:[#allocation2 + $0x588] sm:$0xff]
    %v295 = vld [vmem:[#allocation2 + $0x590] sm:$0xff]
    %v296 = vld [vmem:[#allocation2 + $0x598] sm:$0xff]
    %v297 = vld [vmem:[#allocation2 + $0x5a0] sm:$0xff]
    %v298 = vld [vmem:[#allocation2 + $0x5a8] sm:$0xff]
    %v299 = vld [vmem:[#allocation2 + $0x5b0] sm:$0xff]
    %v300 = vld [vmem:[#allocation2 + $0x5b8] sm:$0xff]
    %v301 = vld [vmem:[#allocation2 + $0x5c0] sm:$0xff]
    %v302 = vld [vmem:[#allocation2 + $0x5c8] sm:$0xff]
    %v303 = vld [vmem:[#allocation2 + $0x5d0] sm:$0xff]
    %v304 = vld [vmem:[#allocation2 + $0x5d8] sm:$0xff]
    %v305 = vld [vmem:[#allocation2 + $0x5e0] sm:$0xff]
    %v306 = vld [vmem:[#allocation2 + $0x5e8] sm:$0xff]
    %v307 = vld [vmem:[#allocation2 + $0x5f0] sm:$0xff]
    %v308 = vld [vmem:[#allocation2 + $0x5f8] sm:$0xff]
    %v309 = vld [vmem:[#allocation2 + $0x600] sm:$0xff]
    %v310 = vld [vmem:[#allocation2 + $0x608] sm:$0xff]
    %v311 = vld [vmem:[#allocation2 + $0x610] sm:$0xff]
    %v312 = vld [vmem:[#allocation2 + $0x618] sm:$0xff]
    %v313 = vld [vmem:[#allocation2 + $0x620] sm:$0xff]
    %v314 = vld [vmem:[#allocation2 + $0x628] sm:$0xff]
    %v315 = vld [vmem:[#allocation2 + $0x630] sm:$0xff]
    %v316 = vld [vmem:[#allocation2 + $0x638] sm:$0xff]
    %v317 = vld [vmem:[#allocation2 + $0x640] sm:$0xff]
    %v318 = vld [vmem:[#allocation2 + $0x648] sm:$0xff]
    %v319 = vld [vmem:[#allocation2 + $0x650] sm:$0xff]
    %v320 = vld [vmem:[#allocation2 + $0x658] sm:$0xff]
    %v321 = vld [vmem:[#allocation2 + $0x660] sm:$0xff]
    %v322 = vld [vmem:[#allocation2 + $0x668] sm:$0xff]
    %v323 = vld [vmem:[#allocation2 + $0x670] sm:$0xff]
    %v324 = vld [vmem:[#allocation2 + $0x678] sm:$0xff]
    %v325 = vld [vmem:[#allocation2 + $0x680] sm:$0xff]
    %v326 = vld [vmem:[#allocation2 + $0x688] sm:$0xff]
    %v327 = vld [vmem:[#allocation2 + $0x690] sm:$0xff]
    %v328 = vld [vmem:[#allocation2 + $0x698] sm:$0xff]
    %v329 = vld [vmem:[#allocation2 + $0x6a0] sm:$0xff]
    %v330 = vld [vmem:[#allocation2 + $0x6a8] sm:$0xff]
    %v331 = vld [vmem:[#allocation2 + $0x6b0] sm:$0xff]
    %v332 = vld [vmem:[#allocation2 + $0x6b8] sm:$0xff]
    %v333 = vld [vmem:[#allocation2 + $0x6c0] sm:$0xff]
    %v334 = vld [vmem:[#allocation2 + $0x6c8] sm:$0xff]
    %v335 = vld [vmem:[#allocation2 + $0x6d0] sm:$0xff]
    %v336 = vld [vmem:[#allocation2 + $0x6d8] sm:$0xff]
    %v337 = vld [vmem:[#allocation2 + $0x6e0] sm:$0xff]
    %v338 = vld [vmem:[#allocation2 + $0x6e8] sm:$0xff]
    %v339 = vld [vmem:[#allocation2 + $0x6f0] sm:$0xff]
    %v340 = vld [vmem:[#allocation2 + $0x6f8] sm:$0xff]
    %v341 = vld [vmem:[#allocation2 + $0x700] sm:$0xff]
    %v342 = vld [vmem:[#allocation2 + $0x708] sm:$0xff]
    %v343 = vld [vmem:[#allocation2 + $0x710] sm:$0xff]
    %v344 = vld [vmem:[#allocation2 + $0x718] sm:$0xff]
    %v345 = vld [vmem:[#allocation2 + $0x720] sm:$0xff]
    %v346 = vld [vmem:[#allocation2 + $0x728] sm:$0xff]
    %v347 = vld [vmem:[#allocation2 + $0x730] sm:$0xff]
    %v348 = vld [vmem:[#allocation2 + $0x738] sm:$0xff]
    %v349 = vld [vmem:[#allocation2 + $0x740] sm:$0xff]
    %v350 = vld [vmem:[#allocation2 + $0x748] sm:$0xff]
    %v351 = vld [vmem:[#allocation2 + $0x750] sm:$0xff]
    %v352 = vld [vmem:[#allocation2 + $0x758] sm:$0xff]
    %v353 = vld [vmem:[#allocation2 + $0x760] sm:$0xff]
    %v354 = vld [vmem:[#allocation2 + $0x768] sm:$0xff]
    %v355 = vld [vmem:[#allocation2 + $0x770] sm:$0xff]
    %v356 = vld [vmem:[#allocation2 + $0x778] sm:$0xff]
    %v357 = vld [vmem:[#allocation2 + $0x780] sm:$0xff]
    %v358 = vld [vmem:[#allocation2 + $0x788] sm:$0xff]
    %v359 = vld [vmem:[#allocation2 + $0x790] sm:$0xff]
    %v360 = vld [vmem:[#allocation2 + $0x798] sm:$0xff]
    %v361 = vld [vmem:[#allocation2 + $0x7a0] sm:$0xff]
    %v362 = vld [vmem:[#allocation2 + $0x7a8] sm:$0xff]
    %v363 = vld [vmem:[#allocation2 + $0x7b0] sm:$0xff]
    %v364 = vld [vmem:[#allocation2 + $0x7b8] sm:$0xff]
    %v365 = vld [vmem:[#allocation2 + $0x7c0] sm:$0xff]
    %v366 = vld [vmem:[#allocation2 + $0x7c8] sm:$0xff]
    %v367 = vld [vmem:[#allocation2 + $0x7d0] sm:$0xff]
    %v368 = vld [vmem:[#allocation2 + $0x7d8] sm:$0xff]
    %v369 = vld [vmem:[#allocation2 + $0x7e0] sm:$0xff]
    %v370 = vld [vmem:[#allocation2 + $0x7e8] sm:$0xff]
    %v371 = vld [vmem:[#allocation2 + $0x7f0] sm:$0xff]
    %v372 = vld [vmem:[#allocation2 + $0x7f8] sm:$0xff]
    %v373 = vld [vmem:[#allocation2 + $0x800] sm:$0xff]
    %v374 = vld [vmem:[#allocation2 + $0x808] sm:$0xff]
    %v375 = vld [vmem:[#allocation2 + $0x810] sm:$0xff]
    %v376 = vld [vmem:[#allocation2 + $0x818] sm:$0xff]
    %v377 = vld [vmem:[#allocation2 + $0x820] sm:$0xff]
    %v378 = vld [vmem:[#allocation2 + $0x828] sm:$0xff]
    %v379 = vld [vmem:[#allocation2 + $0x830] sm:$0xff]
    %v380 = vld [vmem:[#allocation2 + $0x838] sm:$0xff]
    %v381 = vld [vmem:[#allocation2 + $0x840] sm:$0xff]
    %v382 = vld [vmem:[#allocation2 + $0x848] sm:$0xff]
    %v383 = vld [vmem:[#allocation2 + $0x850] sm:$0xff]
    %v384 = vld [vmem:[#allocation2 + $0x858] sm:$0xff]
    %v385 = vld [vmem:[#allocation2 + $0x860] sm:$0xff]
    %v386 = vld [vmem:[#allocation2 + $0x868] sm:$0xff]
    %v387 = vld [vmem:[#allocation2 + $0x870] sm:$0xff]
    %v388 = vld [vmem:[#allocation2 + $0x878] sm:$0xff]
    %v389 = vld [vmem:[#allocation2 + $0x880] sm:$0xff]
    %v390 = vld [vmem:[#allocation2 + $0x888] sm:$0xff]
    %v391 = vld [vmem:[#allocation2 + $0x890] sm:$0xff]
    %v392 = vld [vmem:[#allocation2 + $0x898] sm:$0xff]
    %v393 = vld [vmem:[#allocation2 + $0x8a0] sm:$0xff]
    %v394 = vld [vmem:[#allocation2 + $0x8a8] sm:$0xff]
    %v395 = vld [vmem:[#allocation2 + $0x8b0] sm:$0xff]
    %v396 = vld [vmem:[#allocation2 + $0x8b8] sm:$0xff]
    %v397 = vld [vmem:[#allocation2 + $0x8c0] sm:$0xff]
    %v398 = vld [vmem:[#allocation2 + $0x8c8] sm:$0xff]
    %v399 = vld [vmem:[#allocation2 + $0x8d0] sm:$0xff]
    %v400 = vld [vmem:[#allocation2 + $0x8d8] sm:$0xff]
    %v401 = vld [vmem:[#allocation2 + $0x8e0] sm:$0xff]
    %v402 = vld [vmem:[#allocation2 + $0x8e8] sm:$0xff]
    %v403 = vld [vmem:[#allocation2 + $0x8f0] sm:$0xff]
    %v404 = vld [vmem:[#allocation2 + $0x8f8] sm:$0xff]
    %v405 = vld [vmem:[#allocation2 + $0x900] sm:$0xff]
    %v406 = vld [vmem:[#allocation2 + $0x908] sm:$0xff]
    %v407 = vld [vmem:[#allocation2 + $0x910] sm:$0xff]
    %v408 = vld [vmem:[#allocation2 + $0x918] sm:$0xff]
    %v409 = vld [vmem:[#allocation2 + $0x920] sm:$0xff]
    %v410 = vld [vmem:[#allocation2 + $0x928] sm:$0xff]
    %v411 = vld [vmem:[#allocation2 + $0x930] sm:$0xff]
    %v412 = vld [vmem:[#allocation2 + $0x938] sm:$0xff]
    %v413 = vld [vmem:[#allocation2 + $0x940] sm:$0xff]
    %v414 = vld [vmem:[#allocation2 + $0x948] sm:$0xff]
    %v415 = vld [vmem:[#allocation2 + $0x950] sm:$0xff]
    %v416 = vld [vmem:[#allocation2 + $0x958] sm:$0xff]
    %v417 = vld [vmem:[#allocation2 + $0x960] sm:$0xff]
    %v418 = vld [vmem:[#allocation2 + $0x968] sm:$0xff]
    %v419 = vld [vmem:[#allocation2 + $0x970] sm:$0xff]
    %v420 = vld [vmem:[#allocation2 + $0x978] sm:$0xff]
    %v421 = vld [vmem:[#allocation2 + $0x980] sm:$0xff]
    %v422 = vld [vmem:[#allocation2 + $0x988] sm:$0xff]
    %v423 = vld [vmem:[#allocation2 + $0x990] sm:$0xff]
    %v424 = vld [vmem:[#allocation2 + $0x998] sm:$0xff]
    %v425 = vld [vmem:[#allocation2 + $0x9a0] sm:$0xff]
    %v426 = vld [vmem:[#allocation2 + $0x9a8] sm:$0xff]
    %v427 = vld [vmem:[#allocation2 + $0x9b0] sm:$0xff]
    %v428 = vld [vmem:[#allocation2 + $0x9b8] sm:$0xff]
    %v429 = vld [vmem:[#allocation2 + $0x9c0] sm:$0xff]
    %v430 = vld [vmem:[#allocation2 + $0x9c8] sm:$0xff]
    %v431 = vld [vmem:[#allocation2 + $0x9d0] sm:$0xff]
    %v432 = vld [vmem:[#allocation2 + $0x9d8] sm:$0xff]
    %v433 = vld [vmem:[#allocation2 + $0x9e0] sm:$0xff]
    %v434 = vld [vmem:[#allocation2 + $0x9e8] sm:$0xff]
    %v435 = vld [vmem:[#allocation2 + $0x9f0] sm:$0xff]
    %v436 = vld [vmem:[#allocation2 + $0x9f8] sm:$0xff]
    %v437 = vld [vmem:[#allocation2 + $0xa00] sm:$0xff]
    %v438 = vld [vmem:[#allocation2 + $0xa08] sm:$0xff]
    %v439 = vld [vmem:[#allocation2 + $0xa10] sm:$0xff]
    %v440 = vld [vmem:[#allocation2 + $0xa18] sm:$0xff]
    %v441 = vld [vmem:[#allocation2 + $0xa20] sm:$0xff]
    %v442 = vld [vmem:[#allocation2 + $0xa28] sm:$0xff]
    %v443 = vld [vmem:[#allocation2 + $0xa30] sm:$0xff]
    %v444 = vld [vmem:[#allocation2 + $0xa38] sm:$0xff]
    %v445 = vld [vmem:[#allocation2 + $0xa40] sm:$0xff]
    %v446 = vld [vmem:[#allocation2 + $0xa48] sm:$0xff]
    %v447 = vld [vmem:[#allocation2 + $0xa50] sm:$0xff]
    %v448 = vld [vmem:[#allocation2 + $0xa58] sm:$0xff]
    %v449 = vld [vmem:[#allocation2 + $0xa60] sm:$0xff]
    %v450 = vld [vmem:[#allocation2 + $0xa68] sm:$0xff]
    %v451 = vld [vmem:[#allocation2 + $0xa70] sm:$0xff]
    %v452 = vld [vmem:[#allocation2 + $0xa78] sm:$0xff]
    %v453 = vld [vmem:[#allocation2 + $0xa80] sm:$0xff]
    %v454 = vld [vmem:[#allocation2 + $0xa88] sm:$0xff]
    %v455 = vld [vmem:[#allocation2 + $0xa90] sm:$0xff]
    %v456 = vld [vmem:[#allocation2 + $0xa98] sm:$0xff]
    %v457 = vld [vmem:[#allocation2 + $0xaa0] sm:$0xff]
    %v458 = vld [vmem:[#allocation2 + $0xaa8] sm:$0xff]
    %v459 = vld [vmem:[#allocation2 + $0xab0] sm:$0xff]
    %v460 = vld [vmem:[#allocation2 + $0xab8] sm:$0xff]
    %v461 = vld [vmem:[#allocation2 + $0xac0] sm:$0xff]
    %v462 = vld [vmem:[#allocation2 + $0xac8] sm:$0xff]
    %v463 = vld [vmem:[#allocation2 + $0xad0] sm:$0xff]
    %v464 = vld [vmem:[#allocation2 + $0xad8] sm:$0xff]
    %v465 = vld [vmem:[#allocation2 + $0xae0] sm:$0xff]
    %v466 = vld [vmem:[#allocation2 + $0xae8] sm:$0xff]
    %v467 = vld [vmem:[#allocation2 + $0xaf0] sm:$0xff]
    %v468 = vld [vmem:[#allocation2 + $0xaf8] sm:$0xff]
    %v469 = vld [vmem:[#allocation2 + $0xb00] sm:$0xff]
    %v470 = vld [vmem:[#allocation2 + $0xb08] sm:$0xff]
    %v471 = vld [vmem:[#allocation2 + $0xb10] sm:$0xff]
    %v472 = vld [vmem:[#allocation2 + $0xb18] sm:$0xff]
    %v473 = vld [vmem:[#allocation2 + $0xb20] sm:$0xff]
    %v474 = vld [vmem:[#allocation2 + $0xb28] sm:$0xff]
    %v475 = vld [vmem:[#allocation2 + $0xb30] sm:$0xff]
    %v476 = vld [vmem:[#allocation2 + $0xb38] sm:$0xff]
    %v477 = vld [vmem:[#allocation2 + $0xb40] sm:$0xff]
    %v478 = vld [vmem:[#allocation2 + $0xb48] sm:$0xff]
    %v479 = vld [vmem:[#allocation2 + $0xb50] sm:$0xff]
    %v480 = vld [vmem:[#allocation2 + $0xb58] sm:$0xff]
    %v481 = vld [vmem:[#allocation2 + $0xb60] sm:$0xff]
    %v482 = vld [vmem:[#allocation2 + $0xb68] sm:$0xff]
    %v483 = vld [vmem:[#allocation2 + $0xb70] sm:$0xff]
    %v484 = vld [vmem:[#allocation2 + $0xb78] sm:$0xff]
    %v485 = vld [vmem:[#allocation2 + $0xb80] sm:$0xff]
    %v486 = vld [vmem:[#allocation2 + $0xb88] sm:$0xff]
    %v487 = vld [vmem:[#allocation2 + $0xb90] sm:$0xff]
    %v488 = vld [vmem:[#allocation2 + $0xb98] sm:$0xff]
    %v489 = vld [vmem:[#allocation2 + $0xba0] sm:$0xff]
    %v490 = vld [vmem:[#allocation2 + $0xba8] sm:$0xff]
    %v491 = vld [vmem:[#allocation2 + $0xbb0] sm:$0xff]
    %v492 = vld [vmem:[#allocation2 + $0xbb8] sm:$0xff]
    %v493 = vld [vmem:[#allocation2 + $0xbc0] sm:$0xff]
    %v494 = vld [vmem:[#allocation2 + $0xbc8] sm:$0xff]
    %v495 = vld [vmem:[#allocation2 + $0xbd0] sm:$0xff]
    %v496 = vld [vmem:[#allocation2 + $0xbd8] sm:$0xff]
    %v497 = vld [vmem:[#allocation2 + $0xbe0] sm:$0xff]
    %v498 = vld [vmem:[#allocation2 + $0xbe8] sm:$0xff]
    %v499 = vld [vmem:[#allocation2 + $0xbf0] sm:$0xff]
    %v500 = vld [vmem:[#allocation2 + $0xbf8] sm:$0xff]
    %v501 = vld [vmem:[#allocation2 + $0xc00] sm:$0xff]
    %v502 = vld [vmem:[#allocation2 + $0xc08] sm:$0xff]
    %v503 = vld [vmem:[#allocation2 + $0xc10] sm:$0xff]
    %v504 = vld [vmem:[#allocation2 + $0xc18] sm:$0xff]
    %v505 = vld [vmem:[#allocation2 + $0xc20] sm:$0xff]
    %v506 = vld [vmem:[#allocation2 + $0xc28] sm:$0xff]
    %v507 = vld [vmem:[#allocation2 + $0xc30] sm:$0xff]
    %v508 = vld [vmem:[#allocation2 + $0xc38] sm:$0xff]
    %v509 = vld [vmem:[#allocation2 + $0xc40] sm:$0xff]
    %v510 = vld [vmem:[#allocation2 + $0xc48] sm:$0xff]
    %v511 = vld [vmem:[#allocation2 + $0xc50] sm:$0xff]
    %v512 = vld [vmem:[#allocation2 + $0xc58] sm:$0xff]
    %v513 = vld [vmem:[#allocation2 + $0xc60] sm:$0xff]
    %v514 = vld [vmem:[#allocation2 + $0xc68] sm:$0xff]
    %v515 = vld [vmem:[#allocation2 + $0xc70] sm:$0xff]
    %v516 = vld [vmem:[#allocation2 + $0xc78] sm:$0xff]
    %v517 = vld [vmem:[#allocation2 + $0xc80] sm:$0xff]
    %v518 = vld [vmem:[#allocation2 + $0xc88] sm:$0xff]
    %v519 = vld [vmem:[#allocation2 + $0xc90] sm:$0xff]
    %v520 = vld [vmem:[#allocation2 + $0xc98] sm:$0xff]
    %v521 = vld [vmem:[#allocation2 + $0xca0] sm:$0xff]
    %v522 = vld [vmem:[#allocation2 + $0xca8] sm:$0xff]
    %v523 = vld [vmem:[#allocation2 + $0xcb0] sm:$0xff]
    %v524 = vld [vmem:[#allocation2 + $0xcb8] sm:$0xff]
    %v525 = vld [vmem:[#allocation2 + $0xcc0] sm:$0xff]
    %v526 = vld [vmem:[#allocation2 + $0xcc8] sm:$0xff]
    %v527 = vld [vmem:[#allocation2 + $0xcd0] sm:$0xff]
    %v528 = vld [vmem:[#allocation2 + $0xcd8] sm:$0xff]
    %v529 = vld [vmem:[#allocation2 + $0xce0] sm:$0xff]
    %v530 = vld [vmem:[#allocation2 + $0xce8] sm:$0xff]
    %v531 = vld [vmem:[#allocation2 + $0xcf0] sm:$0xff]
    %v532 = vld [vmem:[#allocation2 + $0xcf8] sm:$0xff]
    %v533 = vld [vmem:[#allocation2 + $0xd00] sm:$0xff]
    %v534 = vld [vmem:[#allocation2 + $0xd08] sm:$0xff]
    %v535 = vld [vmem:[#allocation2 + $0xd10] sm:$0xff]
    %v536 = vld [vmem:[#allocation2 + $0xd18] sm:$0xff]
    %v537 = vld [vmem:[#allocation2 + $0xd20] sm:$0xff]
    %v538 = vld [vmem:[#allocation2 + $0xd28] sm:$0xff]
    %v539 = vld [vmem:[#allocation2 + $0xd30] sm:$0xff]
    %v540 = vld [vmem:[#allocation2 + $0xd38] sm:$0xff]
    %v541 = vld [vmem:[#allocation2 + $0xd40] sm:$0xff]
    %v542 = vld [vmem:[#allocation2 + $0xd48] sm:$0xff]
    %v543 = vld [vmem:[#allocation2 + $0xd50] sm:$0xff]
    %v544 = vld [vmem:[#allocation2 + $0xd58] sm:$0xff]
    %v545 = vld [vmem:[#allocation2 + $0xd60] sm:$0xff]
    %v546 = vld [vmem:[#allocation2 + $0xd68] sm:$0xff]
    %v547 = vld [vmem:[#allocation2 + $0xd70] sm:$0xff]
    %v548 = vld [vmem:[#allocation2 + $0xd78] sm:$0xff]
    %v549 = vld [vmem:[#allocation2 + $0xd80] sm:$0xff]
    %v550 = vld [vmem:[#allocation2 + $0xd88] sm:$0xff]
    %v551 = vld [vmem:[#allocation2 + $0xd90] sm:$0xff]
    %v552 = vld [vmem:[#allocation2 + $0xd98] sm:$0xff]
    %v553 = vld [vmem:[#allocation2 + $0xda0] sm:$0xff]
    %v554 = vld [vmem:[#allocation2 + $0xda8] sm:$0xff]
    %v555 = vld [vmem:[#allocation2 + $0xdb0] sm:$0xff]
    %v556 = vld [vmem:[#allocation2 + $0xdb8] sm:$0xff]
    %v557 = vld [vmem:[#allocation2 + $0xdc0] sm:$0xff]
    %v558 = vld [vmem:[#allocation2 + $0xdc8] sm:$0xff]
    %v559 = vld [vmem:[#allocation2 + $0xdd0] sm:$0xff]
    %v560 = vld [vmem:[#allocation2 + $0xdd8] sm:$0xff]
    %v561 = vld [vmem:[#allocation2 + $0xde0] sm:$0xff]
    %v562 = vld [vmem:[#allocation2 + $0xde8] sm:$0xff]
    %v563 = vld [vmem:[#allocation2 + $0xdf0] sm:$0xff]
    %v564 = vld [vmem:[#allocation2 + $0xdf8] sm:$0xff]
    %v565 = vld [vmem:[#allocation2 + $0xe00] sm:$0xff]
    %v566 = vld [vmem:[#allocation2 + $0xe08] sm:$0xff]
    %v567 = vld [vmem:[#allocation2 + $0xe10] sm:$0xff]
    %v568 = vld [vmem:[#allocation2 + $0xe18] sm:$0xff]
    %v569 = vld [vmem:[#allocation2 + $0xe20] sm:$0xff]
    %v570 = vld [vmem:[#allocation2 + $0xe28] sm:$0xff]
    %v571 = vld [vmem:[#allocation2 + $0xe30] sm:$0xff]
    %v572 = vld [vmem:[#allocation2 + $0xe38] sm:$0xff]
    %v573 = vld [vmem:[#allocation2 + $0xe40] sm:$0xff]
    %v574 = vld [vmem:[#allocation2 + $0xe48] sm:$0xff]
    %v575 = vld [vmem:[#allocation2 + $0xe50] sm:$0xff]
    %v576 = vld [vmem:[#allocation2 + $0xe58] sm:$0xff]
    %v577 = vld [vmem:[#allocation2 + $0xe60] sm:$0xff]
    %v578 = vld [vmem:[#allocation2 + $0xe68] sm:$0xff]
    %v579 = vld [vmem:[#allocation2 + $0xe70] sm:$0xff]
    %v580 = vld [vmem:[#allocation2 + $0xe78] sm:$0xff]
    %v581 = vld [vmem:[#allocation2 + $0xe80] sm:$0xff]
    %v582 = vld [vmem:[#allocation2 + $0xe88] sm:$0xff]
    %v583 = vld [vmem:[#allocation2 + $0xe90] sm:$0xff]
    %v584 = vld [vmem:[#allocation2 + $0xe98] sm:$0xff]
    %v585 = vld [vmem:[#allocation2 + $0xea0] sm:$0xff]
    %v586 = vld [vmem:[#allocation2 + $0xea8] sm:$0xff]
    %v587 = vld [vmem:[#allocation2 + $0xeb0] sm:$0xff]
    %v588 = vld [vmem:[#allocation2 + $0xeb8] sm:$0xff]
    %v589 = vld [vmem:[#allocation2 + $0xec0] sm:$0xff]
    %v590 = vld [vmem:[#allocation2 + $0xec8] sm:$0xff]
    %v591 = vld [vmem:[#allocation2 + $0xed0] sm:$0xff]
    %v592 = vld [vmem:[#allocation2 + $0xed8] sm:$0xff]
    %v593 = vld [vmem:[#allocation2 + $0xee0] sm:$0xff]
    %v594 = vld [vmem:[#allocation2 + $0xee8] sm:$0xff]
    %v595 = vld [vmem:[#allocation2 + $0xef0] sm:$0xff]
    %v596 = vld [vmem:[#allocation2 + $0xef8] sm:$0xff]
    %v597 = vld [vmem:[#allocation2 + $0xf00] sm:$0xff]
    %v598 = vld [vmem:[#allocation2 + $0xf08] sm:$0xff]
    %v599 = vld [vmem:[#allocation2 + $0xf10] sm:$0xff]
    %v600 = vld [vmem:[#allocation2 + $0xf18] sm:$0xff]
    %v601 = vld [vmem:[#allocation2 + $0xf20] sm:$0xff]
    %v602 = vld [vmem:[#allocation2 + $0xf28] sm:$0xff]
    %v603 = vld [vmem:[#allocation2 + $0xf30] sm:$0xff]
    %v604 = vld [vmem:[#allocation2 + $0xf38] sm:$0xff]
    %v605 = vld [vmem:[#allocation2 + $0xf40] sm:$0xff]
    %v606 = vld [vmem:[#allocation2 + $0xf48] sm:$0xff]
    %v607 = vld [vmem:[#allocation2 + $0xf50] sm:$0xff]
    %v608 = vld [vmem:[#allocation2 + $0xf58] sm:$0xff]
    %v609 = vld [vmem:[#allocation2 + $0xf60] sm:$0xff]
    %v610 = vld [vmem:[#allocation2 + $0xf68] sm:$0xff]
    %v611 = vld [vmem:[#allocation2 + $0xf70] sm:$0xff]
    %v612 = vld [vmem:[#allocation2 + $0xf78] sm:$0xff]
    %v613 = vld [vmem:[#allocation2 + $0xf80] sm:$0xff]
    %v614 = vld [vmem:[#allocation2 + $0xf88] sm:$0xff]
    %v615 = vld [vmem:[#allocation2 + $0xf90] sm:$0xff]
    %v616 = vld [vmem:[#allocation2 + $0xf98] sm:$0xff]
    %v617 = vld [vmem:[#allocation2 + $0xfa0] sm:$0xff]
    %v618 = vld [vmem:[#allocation2 + $0xfa8] sm:$0xff]
    %v619 = vld [vmem:[#allocation2 + $0xfb0] sm:$0xff]
    %v620 = vld [vmem:[#allocation2 + $0xfb8] sm:$0xff]
    %v621 = vld [vmem:[#allocation2 + $0xfc0] sm:$0xff]
    %v622 = vld [vmem:[#allocation2 + $0xfc8] sm:$0xff]
    %v623 = vld [vmem:[#allocation2 + $0xfd0] sm:$0xff]
    %v624 = vld [vmem:[#allocation2 + $0xfd8] sm:$0xff]
    %v625 = vld [vmem:[#allocation2 + $0xfe0] sm:$0xff]
    %v626 = vld [vmem:[#allocation2 + $0xfe8] sm:$0xff]
    %v627 = vld [vmem:[#allocation2 + $0xff0] sm:$0xff]
    %v628 = vld [vmem:[#allocation2 + $0xff8] sm:$0xff]
    %v629 = vld [vmem:[#allocation5] sm:$0xf]
    %v631 = vperm.slane %v629, 0
    %v632 = vperm.slane %v629, 1
    %v633 = vperm.slane %v629, 2
    %v634 = vperm.slane %v629, 3
    %640 = vst [vmem:[#allocation1] ss:$9 sm:$0xff] %v115
    %v641 = vld [vmem:[#allocation1] sm:$0xff]
    %v642 = vld [vmem:[#allocation1 + $0x9] sm:$0xff]
    %v643 = vld [vmem:[#allocation1 + $0x12] sm:$0xff]
    %v644 = vld [vmem:[#allocation1 + $0x1b] sm:$0xff]
    %v645 = vld [vmem:[#allocation1 + $0x24] sm:$0xff]
    %v646 = vld [vmem:[#allocation1 + $0x2d] sm:$0xff]
    %v647 = vld [vmem:[#allocation1 + $0x36] sm:$0xff]
    %v648 = vld [vmem:[#allocation1 + $0x3f] sm:$0xff]
    %650 = vst [vmem:[#allocation1] ss:$9 sm:$0xff] %v116
    %v651 = vld [vmem:[#allocation1] sm:$0xff]
    %v652 = vld [vmem:[#allocation1 + $0x9] sm:$0xff]
    %v653 = vld [vmem:[#allocation1 + $0x12] sm:$0xff]
    %v654 = vld [vmem:[#allocation1 + $0x1b] sm:$0xff]
    %v655 = vld [vmem:[#allocation1 + $0x24] sm:$0xff]
    %v656 = vld [vmem:[#allocation1 + $0x2d] sm:$0xff]
    %v657 = vld [vmem:[#allocation1 + $0x36] sm:$0xff]
    %v658 = vld [vmem:[#allocation1 + $0x3f] sm:$0xff]
    %v1187 = vunpack.c.l.b16 %v117
    %v1188 = vunpack.c.h.b16 %v117
    %v1189 = vunpack.c.l.b16 %v118
    %v1190 = vunpack.c.h.b16 %v118
    %v1191 = vunpack.c.l.b16 %v119
    %v1192 = vunpack.c.h.b16 %v119
    %v1193 = vunpack.c.l.b16 %v120
    %v1194 = vunpack.c.h.b16 %v120
    %v1195 = vunpack.c.l.b16 %v121
    %v1196 = vunpack.c.h.b16 %v121
    %v1197 = vunpack.c.l.b16 %v122
    %v1198 = vunpack.c.h.b16 %v122
    %v1199 = vunpack.c.l.b16 %v123
    %v1200 = vunpack.c.h.b16 %v123
    %v1201 = vunpack.c.l.b16 %v124
    %v1202 = vunpack.c.h.b16 %v124
    %v1203 = vunpack.c.l.b16 %v125
    %v1204 = vunpack.c.h.b16 %v125
    %v1205 = vunpack.c.l.b16 %v126
    %v1206 = vunpack.c.h.b16 %v126
    %v1207 = vunpack.c.l.b16 %v127
    %v1208 = vunpack.c.h.b16 %v127
    %v1209 = vunpack.c.l.b16 %v128
    %v1210 = vunpack.c.h.b16 %v128
    %v1211 = vunpack.c.l.b16 %v129
    %v1212 = vunpack.c.h.b16 %v129
    %v1213 = vunpack.c.l.b16 %v130
    %v1214 = vunpack.c.h.b16 %v130
    %v1215 = vunpack.c.l.b16 %v131
    %v1216 = vunpack.c.h.b16 %v131
    %v1217 = vunpack.c.l.b16 %v132
    %v1218 = vunpack.c.h.b16 %v132
    %v1219 = vunpack.c.l.b16 %v133
    %v1220 = vunpack.c.h.b16 %v133
    %v1221 = vunpack.c.l.b16 %v134
    %v1222 = vunpack.c.h.b16 %v134
    %v1223 = vunpack.c.l.b16 %v135
    %v1224 = vunpack.c.h.b16 %v135
    %v1225 = vunpack.c.l.b16 %v136
    %v1226 = vunpack.c.h.b16 %v136
    %v1227 = vunpack.c.l.b16 %v137
    %v1228 = vunpack.c.h.b16 %v137
    %v1229 = vunpack.c.l.b16 %v138
    %v1230 = vunpack.c.h.b16 %v138
    %v1231 = vunpack.c.l.b16 %v139
    %v1232 = vunpack.c.h.b16 %v139
    %v1233 = vunpack.c.l.b16 %v140
    %v1234 = vunpack.c.h.b16 %v140
    %v1235 = vunpack.c.l.b16 %v141
    %v1236 = vunpack.c.h.b16 %v141
    %v1237 = vunpack.c.l.b16 %v142
    %v1238 = vunpack.c.h.b16 %v142
    %v1239 = vunpack.c.l.b16 %v143
    %v1240 = vunpack.c.h.b16 %v143
    %v1241 = vunpack.c.l.b16 %v144
    %v1242 = vunpack.c.h.b16 %v144
    %v1243 = vunpack.c.l.b16 %v145
    %v1244 = vunpack.c.h.b16 %v145
    %v1245 = vunpack.c.l.b16 %v146
    %v1246 = vunpack.c.h.b16 %v146
    %v1247 = vunpack.c.l.b16 %v147
    %v1248 = vunpack.c.h.b16 %v147
    %v1249 = vunpack.c.l.b16 %v148
    %v1250 = vunpack.c.h.b16 %v148
    %v1251 = vunpack.c.l.b16 %v149
    %v1252 = vunpack.c.h.b16 %v149
    %v1253 = vunpack.c.l.b16 %v150
    %v1254 = vunpack.c.h.b16 %v150
    %v1255 = vunpack.c.l.b16 %v151
    %v1256 = vunpack.c.h.b16 %v151
    %v1257 = vunpack.c.l.b16 %v152
    %v1258 = vunpack.c.h.b16 %v152
    %v1259 = vunpack.c.l.b16 %v153
    %v1260 = vunpack.c.h.b16 %v153
    %v1261 = vunpack.c.l.b16 %v154
    %v1262 = vunpack.c.h.b16 %v154
    %v1263 = vunpack.c.l.b16 %v155
    %v1264 = vunpack.c.h.b16 %v155
    %v1265 = vunpack.c.l.b16 %v156
    %v1266 = vunpack.c.h.b16 %v156
    %v1267 = vunpack.c.l.b16 %v157
    %v1268 = vunpack.c.h.b16 %v157
    %v1269 = vunpack.c.l.b16 %v158
    %v1270 = vunpack.c.h.b16 %v158
    %v1271 = vunpack.c.l.b16 %v159
    %v1272 = vunpack.c.h.b16 %v159
    %v1273 = vunpack.c.l.b16 %v160
    %v1274 = vunpack.c.h.b16 %v160
    %v1275 = vunpack.c.l.b16 %v161
    %v1276 = vunpack.c.h.b16 %v161
    %v1277 = vunpack.c.l.b16 %v162
    %v1278 = vunpack.c.h.b16 %v162
    %v1279 = vunpack.c.l.b16 %v163
    %v1280 = vunpack.c.h.b16 %v163
    %v1281 = vunpack.c.l.b16 %v164
    %v1282 = vunpack.c.h.b16 %v164
    %v1283 = vunpack.c.l.b16 %v165
    %v1284 = vunpack.c.h.b16 %v165
    %v1285 = vunpack.c.l.b16 %v166
    %v1286 = vunpack.c.h.b16 %v166
    %v1287 = vunpack.c.l.b16 %v167
    %v1288 = vunpack.c.h.b16 %v167
    %v1289 = vunpack.c.l.b16 %v168
    %v1290 = vunpack.c.h.b16 %v168
    %v1291 = vunpack.c.l.b16 %v169
    %v1292 = vunpack.c.h.b16 %v169
    %v1293 = vunpack.c.l.b16 %v170
    %v1294 = vunpack.c.h.b16 %v170
    %v1295 = vunpack.c.l.b16 %v171
    %v1296 = vunpack.c.h.b16 %v171
    %v1297 = vunpack.c.l.b16 %v172
    %v1298 = vunpack.c.h.b16 %v172
    %v1299 = vunpack.c.l.b16 %v173
    %v1300 = vunpack.c.h.b16 %v173
    %v1301 = vunpack.c.l.b16 %v174
    %v1302 = vunpack.c.h.b16 %v174
    %v1303 = vunpack.c.l.b16 %v175
    %v1304 = vunpack.c.h.b16 %v175
    %v1305 = vunpack.c.l.b16 %v176
    %v1306 = vunpack.c.h.b16 %v176
    %v1307 = vunpack.c.l.b16 %v177
    %v1308 = vunpack.c.h.b16 %v177
    %v1309 = vunpack.c.l.b16 %v178
    %v1310 = vunpack.c.h.b16 %v178
    %v1311 = vunpack.c.l.b16 %v179
    %v1312 = vunpack.c.h.b16 %v179
    %v1313 = vunpack.c.l.b16 %v180
    %v1314 = vunpack.c.h.b16 %v180
    %v1315 = vunpack.c.l.b16 %v181
    %v1316 = vunpack.c.h.b16 %v181
    %v1317 = vunpack.c.l.b16 %v182
    %v1318 = vunpack.c.h.b16 %v182
    %v1319 = vunpack.c.l.b16 %v183
    %v1320 = vunpack.c.h.b16 %v183
    %v1321 = vunpack.c.l.b16 %v184
    %v1322 = vunpack.c.h.b16 %v184
    %v1323 = vunpack.c.l.b16 %v185
    %v1324 = vunpack.c.h.b16 %v185
    %v1325 = vunpack.c.l.b16 %v186
    %v1326 = vunpack.c.h.b16 %v186
    %v1327 = vunpack.c.l.b16 %v187
    %v1328 = vunpack.c.h.b16 %v187
    %v1329 = vunpack.c.l.b16 %v188
    %v1330 = vunpack.c.h.b16 %v188
    %v1331 = vunpack.c.l.b16 %v189
    %v1332 = vunpack.c.h.b16 %v189
    %v1333 = vunpack.c.l.b16 %v190
    %v1334 = vunpack.c.h.b16 %v190
    %v1335 = vunpack.c.l.b16 %v191
    %v1336 = vunpack.c.h.b16 %v191
    %v1337 = vunpack.c.l.b16 %v192
    %v1338 = vunpack.c.h.b16 %v192
    %v1339 = vunpack.c.l.b16 %v193
    %v1340 = vunpack.c.h.b16 %v193
    %v1341 = vunpack.c.l.b16 %v194
    %v1342 = vunpack.c.h.b16 %v194
    %v1343 = vunpack.c.l.b16 %v195
    %v1344 = vunpack.c.h.b16 %v195
    %v1345 = vunpack.c.l.b16 %v196
    %v1346 = vunpack.c.h.b16 %v196
    %v1347 = vunpack.c.l.b16 %v197
    %v1348 = vunpack.c.h.b16 %v197
    %v1349 = vunpack.c.l.b16 %v198
    %v1350 = vunpack.c.h.b16 %v198
    %v1351 = vunpack.c.l.b16 %v199
    %v1352 = vunpack.c.h.b16 %v199
    %v1353 = vunpack.c.l.b16 %v200
    %v1354 = vunpack.c.h.b16 %v200
    %v1355 = vunpack.c.l.b16 %v201
    %v1356 = vunpack.c.h.b16 %v201
    %v1357 = vunpack.c.l.b16 %v202
    %v1358 = vunpack.c.h.b16 %v202
    %v1359 = vunpack.c.l.b16 %v203
    %v1360 = vunpack.c.h.b16 %v203
    %v1361 = vunpack.c.l.b16 %v204
    %v1362 = vunpack.c.h.b16 %v204
    %v1363 = vunpack.c.l.b16 %v205
    %v1364 = vunpack.c.h.b16 %v205
    %v1365 = vunpack.c.l.b16 %v206
    %v1366 = vunpack.c.h.b16 %v206
    %v1367 = vunpack.c.l.b16 %v207
    %v1368 = vunpack.c.h.b16 %v207
    %v1369 = vunpack.c.l.b16 %v208
    %v1370 = vunpack.c.h.b16 %v208
    %v1371 = vunpack.c.l.b16 %v209
    %v1372 = vunpack.c.h.b16 %v209
    %v1373 = vunpack.c.l.b16 %v210
    %v1374 = vunpack.c.h.b16 %v210
    %v1375 = vunpack.c.l.b16 %v211
    %v1376 = vunpack.c.h.b16 %v211
    %v1377 = vunpack.c.l.b16 %v212
    %v1378 = vunpack.c.h.b16 %v212
    %v1379 = vunpack.c.l.b16 %v213
    %v1380 = vunpack.c.h.b16 %v213
    %v1381 = vunpack.c.l.b16 %v214
    %v1382 = vunpack.c.h.b16 %v214
    %v1383 = vunpack.c.l.b16 %v215
    %v1384 = vunpack.c.h.b16 %v215
    %v1385 = vunpack.c.l.b16 %v216
    %v1386 = vunpack.c.h.b16 %v216
    %v1387 = vunpack.c.l.b16 %v217
    %v1388 = vunpack.c.h.b16 %v217
    %v1389 = vunpack.c.l.b16 %v218
    %v1390 = vunpack.c.h.b16 %v218
    %v1391 = vunpack.c.l.b16 %v219
    %v1392 = vunpack.c.h.b16 %v219
    %v1393 = vunpack.c.l.b16 %v220
    %v1394 = vunpack.c.h.b16 %v220
    %v1395 = vunpack.c.l.b16 %v221
    %v1396 = vunpack.c.h.b16 %v221
    %v1397 = vunpack.c.l.b16 %v222
    %v1398 = vunpack.c.h.b16 %v222
    %v1399 = vunpack.c.l.b16 %v223
    %v1400 = vunpack.c.h.b16 %v223
    %v1401 = vunpack.c.l.b16 %v224
    %v1402 = vunpack.c.h.b16 %v224
    %v1403 = vunpack.c.l.b16 %v225
    %v1404 = vunpack.c.h.b16 %v225
    %v1405 = vunpack.c.l.b16 %v226
    %v1406 = vunpack.c.h.b16 %v226
    %v1407 = vunpack.c.l.b16 %v227
    %v1408 = vunpack.c.h.b16 %v227
    %v1409 = vunpack.c.l.b16 %v228
    %v1410 = vunpack.c.h.b16 %v228
    %v1411 = vunpack.c.l.b16 %v229
    %v1412 = vunpack.c.h.b16 %v229
    %v1413 = vunpack.c.l.b16 %v230
    %v1414 = vunpack.c.h.b16 %v230
    %v1415 = vunpack.c.l.b16 %v231
    %v1416 = vunpack.c.h.b16 %v231
    %v1417 = vunpack.c.l.b16 %v232
    %v1418 = vunpack.c.h.b16 %v232
    %v1419 = vunpack.c.l.b16 %v233
    %v1420 = vunpack.c.h.b16 %v233
    %v1421 = vunpack.c.l.b16 %v234
    %v1422 = vunpack.c.h.b16 %v234
    %v1423 = vunpack.c.l.b16 %v235
    %v1424 = vunpack.c.h.b16 %v235
    %v1425 = vunpack.c.l.b16 %v236
    %v1426 = vunpack.c.h.b16 %v236
    %v1427 = vunpack.c.l.b16 %v237
    %v1428 = vunpack.c.h.b16 %v237
    %v1429 = vunpack.c.l.b16 %v238
    %v1430 = vunpack.c.h.b16 %v238
    %v1431 = vunpack.c.l.b16 %v239
    %v1432 = vunpack.c.h.b16 %v239
    %v1433 = vunpack.c.l.b16 %v240
    %v1434 = vunpack.c.h.b16 %v240
    %v1435 = vunpack.c.l.b16 %v241
    %v1436 = vunpack.c.h.b16 %v241
    %v1437 = vunpack.c.l.b16 %v242
    %v1438 = vunpack.c.h.b16 %v242
    %v1439 = vunpack.c.l.b16 %v243
    %v1440 = vunpack.c.h.b16 %v243
    %v1441 = vunpack.c.l.b16 %v244
    %v1442 = vunpack.c.h.b16 %v244
    %v1443 = vunpack.c.l.b16 %v245
    %v1444 = vunpack.c.h.b16 %v245
    %v1445 = vunpack.c.l.b16 %v246
    %v1446 = vunpack.c.h.b16 %v246
    %v1447 = vunpack.c.l.b16 %v247
    %v1448 = vunpack.c.h.b16 %v247
    %v1449 = vunpack.c.l.b16 %v248
    %v1450 = vunpack.c.h.b16 %v248
    %v1451 = vunpack.c.l.b16 %v249
    %v1452 = vunpack.c.h.b16 %v249
    %v1453 = vunpack.c.l.b16 %v250
    %v1454 = vunpack.c.h.b16 %v250
    %v1455 = vunpack.c.l.b16 %v251
    %v1456 = vunpack.c.h.b16 %v251
    %v1457 = vunpack.c.l.b16 %v252
    %v1458 = vunpack.c.h.b16 %v252
    %v1459 = vunpack.c.l.b16 %v253
    %v1460 = vunpack.c.h.b16 %v253
    %v1461 = vunpack.c.l.b16 %v254
    %v1462 = vunpack.c.h.b16 %v254
    %v1463 = vunpack.c.l.b16 %v255
    %v1464 = vunpack.c.h.b16 %v255
    %v1465 = vunpack.c.l.b16 %v256
    %v1466 = vunpack.c.h.b16 %v256
    %v1467 = vunpack.c.l.b16 %v257
    %v1468 = vunpack.c.h.b16 %v257
    %v1469 = vunpack.c.l.b16 %v258
    %v1470 = vunpack.c.h.b16 %v258
    %v1471 = vunpack.c.l.b16 %v259
    %v1472 = vunpack.c.h.b16 %v259
    %v1473 = vunpack.c.l.b16 %v260
    %v1474 = vunpack.c.h.b16 %v260
    %v1475 = vunpack.c.l.b16 %v261
    %v1476 = vunpack.c.h.b16 %v261
    %v1477 = vunpack.c.l.b16 %v262
    %v1478 = vunpack.c.h.b16 %v262
    %v1479 = vunpack.c.l.b16 %v263
    %v1480 = vunpack.c.h.b16 %v263
    %v1481 = vunpack.c.l.b16 %v264
    %v1482 = vunpack.c.h.b16 %v264
    %v1483 = vunpack.c.l.b16 %v265
    %v1484 = vunpack.c.h.b16 %v265
    %v1485 = vunpack.c.l.b16 %v266
    %v1486 = vunpack.c.h.b16 %v266
    %v1487 = vunpack.c.l.b16 %v267
    %v1488 = vunpack.c.h.b16 %v267
    %v1489 = vunpack.c.l.b16 %v268
    %v1490 = vunpack.c.h.b16 %v268
    %v1491 = vunpack.c.l.b16 %v269
    %v1492 = vunpack.c.h.b16 %v269
    %v1493 = vunpack.c.l.b16 %v270
    %v1494 = vunpack.c.h.b16 %v270
    %v1495 = vunpack.c.l.b16 %v271
    %v1496 = vunpack.c.h.b16 %v271
    %v1497 = vunpack.c.l.b16 %v272
    %v1498 = vunpack.c.h.b16 %v272
    %v1499 = vunpack.c.l.b16 %v273
    %v1500 = vunpack.c.h.b16 %v273
    %v1501 = vunpack.c.l.b16 %v274
    %v1502 = vunpack.c.h.b16 %v274
    %v1503 = vunpack.c.l.b16 %v275
    %v1504 = vunpack.c.h.b16 %v275
    %v1505 = vunpack.c.l.b16 %v276
    %v1506 = vunpack.c.h.b16 %v276
    %v1507 = vunpack.c.l.b16 %v277
    %v1508 = vunpack.c.h.b16 %v277
    %v1509 = vunpack.c.l.b16 %v278
    %v1510 = vunpack.c.h.b16 %v278
    %v1511 = vunpack.c.l.b16 %v279
    %v1512 = vunpack.c.h.b16 %v279
    %v1513 = vunpack.c.l.b16 %v280
    %v1514 = vunpack.c.h.b16 %v280
    %v1515 = vunpack.c.l.b16 %v281
    %v1516 = vunpack.c.h.b16 %v281
    %v1517 = vunpack.c.l.b16 %v282
    %v1518 = vunpack.c.h.b16 %v282
    %v1519 = vunpack.c.l.b16 %v283
    %v1520 = vunpack.c.h.b16 %v283
    %v1521 = vunpack.c.l.b16 %v284
    %v1522 = vunpack.c.h.b16 %v284
    %v1523 = vunpack.c.l.b16 %v285
    %v1524 = vunpack.c.h.b16 %v285
    %v1525 = vunpack.c.l.b16 %v286
    %v1526 = vunpack.c.h.b16 %v286
    %v1527 = vunpack.c.l.b16 %v287
    %v1528 = vunpack.c.h.b16 %v287
    %v1529 = vunpack.c.l.b16 %v288
    %v1530 = vunpack.c.h.b16 %v288
    %v1531 = vunpack.c.l.b16 %v289
    %v1532 = vunpack.c.h.b16 %v289
    %v1533 = vunpack.c.l.b16 %v290
    %v1534 = vunpack.c.h.b16 %v290
    %v1535 = vunpack.c.l.b16 %v291
    %v1536 = vunpack.c.h.b16 %v291
    %v1537 = vunpack.c.l.b16 %v292
    %v1538 = vunpack.c.h.b16 %v292
    %v1539 = vunpack.c.l.b16 %v293
    %v1540 = vunpack.c.h.b16 %v293
    %v1541 = vunpack.c.l.b16 %v294
    %v1542 = vunpack.c.h.b16 %v294
    %v1543 = vunpack.c.l.b16 %v295
    %v1544 = vunpack.c.h.b16 %v295
    %v1545 = vunpack.c.l.b16 %v296
    %v1546 = vunpack.c.h.b16 %v296
    %v1547 = vunpack.c.l.b16 %v297
    %v1548 = vunpack.c.h.b16 %v297
    %v1549 = vunpack.c.l.b16 %v298
    %v1550 = vunpack.c.h.b16 %v298
    %v1551 = vunpack.c.l.b16 %v299
    %v1552 = vunpack.c.h.b16 %v299
    %v1553 = vunpack.c.l.b16 %v300
    %v1554 = vunpack.c.h.b16 %v300
    %v1555 = vunpack.c.l.b16 %v301
    %v1556 = vunpack.c.h.b16 %v301
    %v1557 = vunpack.c.l.b16 %v302
    %v1558 = vunpack.c.h.b16 %v302
    %v1559 = vunpack.c.l.b16 %v303
    %v1560 = vunpack.c.h.b16 %v303
    %v1561 = vunpack.c.l.b16 %v304
    %v1562 = vunpack.c.h.b16 %v304
    %v1563 = vunpack.c.l.b16 %v305
    %v1564 = vunpack.c.h.b16 %v305
    %v1565 = vunpack.c.l.b16 %v306
    %v1566 = vunpack.c.h.b16 %v306
    %v1567 = vunpack.c.l.b16 %v307
    %v1568 = vunpack.c.h.b16 %v307
    %v1569 = vunpack.c.l.b16 %v308
    %v1570 = vunpack.c.h.b16 %v308
    %v1571 = vunpack.c.l.b16 %v309
    %v1572 = vunpack.c.h.b16 %v309
    %v1573 = vunpack.c.l.b16 %v310
    %v1574 = vunpack.c.h.b16 %v310
    %v1575 = vunpack.c.l.b16 %v311
    %v1576 = vunpack.c.h.b16 %v311
    %v1577 = vunpack.c.l.b16 %v312
    %v1578 = vunpack.c.h.b16 %v312
    %v1579 = vunpack.c.l.b16 %v313
    %v1580 = vunpack.c.h.b16 %v313
    %v1581 = vunpack.c.l.b16 %v314
    %v1582 = vunpack.c.h.b16 %v314
    %v1583 = vunpack.c.l.b16 %v315
    %v1584 = vunpack.c.h.b16 %v315
    %v1585 = vunpack.c.l.b16 %v316
    %v1586 = vunpack.c.h.b16 %v316
    %v1587 = vunpack.c.l.b16 %v317
    %v1588 = vunpack.c.h.b16 %v317
    %v1589 = vunpack.c.l.b16 %v318
    %v1590 = vunpack.c.h.b16 %v318
    %v1591 = vunpack.c.l.b16 %v319
    %v1592 = vunpack.c.h.b16 %v319
    %v1593 = vunpack.c.l.b16 %v320
    %v1594 = vunpack.c.h.b16 %v320
    %v1595 = vunpack.c.l.b16 %v321
    %v1596 = vunpack.c.h.b16 %v321
    %v1597 = vunpack.c.l.b16 %v322
    %v1598 = vunpack.c.h.b16 %v322
    %v1599 = vunpack.c.l.b16 %v323
    %v1600 = vunpack.c.h.b16 %v323
    %v1601 = vunpack.c.l.b16 %v324
    %v1602 = vunpack.c.h.b16 %v324
    %v1603 = vunpack.c.l.b16 %v325
    %v1604 = vunpack.c.h.b16 %v325
    %v1605 = vunpack.c.l.b16 %v326
    %v1606 = vunpack.c.h.b16 %v326
    %v1607 = vunpack.c.l.b16 %v327
    %v1608 = vunpack.c.h.b16 %v327
    %v1609 = vunpack.c.l.b16 %v328
    %v1610 = vunpack.c.h.b16 %v328
    %v1611 = vunpack.c.l.b16 %v329
    %v1612 = vunpack.c.h.b16 %v329
    %v1613 = vunpack.c.l.b16 %v330
    %v1614 = vunpack.c.h.b16 %v330
    %v1615 = vunpack.c.l.b16 %v331
    %v1616 = vunpack.c.h.b16 %v331
    %v1617 = vunpack.c.l.b16 %v332
    %v1618 = vunpack.c.h.b16 %v332
    %v1619 = vunpack.c.l.b16 %v333
    %v1620 = vunpack.c.h.b16 %v333
    %v1621 = vunpack.c.l.b16 %v334
    %v1622 = vunpack.c.h.b16 %v334
    %v1623 = vunpack.c.l.b16 %v335
    %v1624 = vunpack.c.h.b16 %v335
    %v1625 = vunpack.c.l.b16 %v336
    %v1626 = vunpack.c.h.b16 %v336
    %v1627 = vunpack.c.l.b16 %v337
    %v1628 = vunpack.c.h.b16 %v337
    %v1629 = vunpack.c.l.b16 %v338
    %v1630 = vunpack.c.h.b16 %v338
    %v1631 = vunpack.c.l.b16 %v339
    %v1632 = vunpack.c.h.b16 %v339
    %v1633 = vunpack.c.l.b16 %v340
    %v1634 = vunpack.c.h.b16 %v340
    %v1635 = vunpack.c.l.b16 %v341
    %v1636 = vunpack.c.h.b16 %v341
    %v1637 = vunpack.c.l.b16 %v342
    %v1638 = vunpack.c.h.b16 %v342
    %v1639 = vunpack.c.l.b16 %v343
    %v1640 = vunpack.c.h.b16 %v343
    %v1641 = vunpack.c.l.b16 %v344
    %v1642 = vunpack.c.h.b16 %v344
    %v1643 = vunpack.c.l.b16 %v345
    %v1644 = vunpack.c.h.b16 %v345
    %v1645 = vunpack.c.l.b16 %v346
    %v1646 = vunpack.c.h.b16 %v346
    %v1647 = vunpack.c.l.b16 %v347
    %v1648 = vunpack.c.h.b16 %v347
    %v1649 = vunpack.c.l.b16 %v348
    %v1650 = vunpack.c.h.b16 %v348
    %v1651 = vunpack.c.l.b16 %v349
    %v1652 = vunpack.c.h.b16 %v349
    %v1653 = vunpack.c.l.b16 %v350
    %v1654 = vunpack.c.h.b16 %v350
    %v1655 = vunpack.c.l.b16 %v351
    %v1656 = vunpack.c.h.b16 %v351
    %v1657 = vunpack.c.l.b16 %v352
    %v1658 = vunpack.c.h.b16 %v352
    %v1659 = vunpack.c.l.b16 %v353
    %v1660 = vunpack.c.h.b16 %v353
    %v1661 = vunpack.c.l.b16 %v354
    %v1662 = vunpack.c.h.b16 %v354
    %v1663 = vunpack.c.l.b16 %v355
    %v1664 = vunpack.c.h.b16 %v355
    %v1665 = vunpack.c.l.b16 %v356
    %v1666 = vunpack.c.h.b16 %v356
    %v1667 = vunpack.c.l.b16 %v357
    %v1668 = vunpack.c.h.b16 %v357
    %v1669 = vunpack.c.l.b16 %v358
    %v1670 = vunpack.c.h.b16 %v358
    %v1671 = vunpack.c.l.b16 %v359
    %v1672 = vunpack.c.h.b16 %v359
    %v1673 = vunpack.c.l.b16 %v360
    %v1674 = vunpack.c.h.b16 %v360
    %v1675 = vunpack.c.l.b16 %v361
    %v1676 = vunpack.c.h.b16 %v361
    %v1677 = vunpack.c.l.b16 %v362
    %v1678 = vunpack.c.h.b16 %v362
    %v1679 = vunpack.c.l.b16 %v363
    %v1680 = vunpack.c.h.b16 %v363
    %v1681 = vunpack.c.l.b16 %v364
    %v1682 = vunpack.c.h.b16 %v364
    %v1683 = vunpack.c.l.b16 %v365
    %v1684 = vunpack.c.h.b16 %v365
    %v1685 = vunpack.c.l.b16 %v366
    %v1686 = vunpack.c.h.b16 %v366
    %v1687 = vunpack.c.l.b16 %v367
    %v1688 = vunpack.c.h.b16 %v367
    %v1689 = vunpack.c.l.b16 %v368
    %v1690 = vunpack.c.h.b16 %v368
    %v1691 = vunpack.c.l.b16 %v369
    %v1692 = vunpack.c.h.b16 %v369
    %v1693 = vunpack.c.l.b16 %v370
    %v1694 = vunpack.c.h.b16 %v370
    %v1695 = vunpack.c.l.b16 %v371
    %v1696 = vunpack.c.h.b16 %v371
    %v1697 = vunpack.c.l.b16 %v372
    %v1698 = vunpack.c.h.b16 %v372
    %v1699 = vunpack.c.l.b16 %v373
    %v1700 = vunpack.c.h.b16 %v373
    %v1701 = vunpack.c.l.b16 %v374
    %v1702 = vunpack.c.h.b16 %v374
    %v1703 = vunpack.c.l.b16 %v375
    %v1704 = vunpack.c.h.b16 %v375
    %v1705 = vunpack.c.l.b16 %v376
    %v1706 = vunpack.c.h.b16 %v376
    %v1707 = vunpack.c.l.b16 %v377
    %v1708 = vunpack.c.h.b16 %v377
    %v1709 = vunpack.c.l.b16 %v378
    %v1710 = vunpack.c.h.b16 %v378
    %v1711 = vunpack.c.l.b16 %v379
    %v1712 = vunpack.c.h.b16 %v379
    %v1713 = vunpack.c.l.b16 %v380
    %v1714 = vunpack.c.h.b16 %v380
    %v1715 = vunpack.c.l.b16 %v381
    %v1716 = vunpack.c.h.b16 %v381
    %v1717 = vunpack.c.l.b16 %v382
    %v1718 = vunpack.c.h.b16 %v382
    %v1719 = vunpack.c.l.b16 %v383
    %v1720 = vunpack.c.h.b16 %v383
    %v1721 = vunpack.c.l.b16 %v384
    %v1722 = vunpack.c.h.b16 %v384
    %v1723 = vunpack.c.l.b16 %v385
    %v1724 = vunpack.c.h.b16 %v385
    %v1725 = vunpack.c.l.b16 %v386
    %v1726 = vunpack.c.h.b16 %v386
    %v1727 = vunpack.c.l.b16 %v387
    %v1728 = vunpack.c.h.b16 %v387
    %v1729 = vunpack.c.l.b16 %v388
    %v1730 = vunpack.c.h.b16 %v388
    %v1731 = vunpack.c.l.b16 %v389
    %v1732 = vunpack.c.h.b16 %v389
    %v1733 = vunpack.c.l.b16 %v390
    %v1734 = vunpack.c.h.b16 %v390
    %v1735 = vunpack.c.l.b16 %v391
    %v1736 = vunpack.c.h.b16 %v391
    %v1737 = vunpack.c.l.b16 %v392
    %v1738 = vunpack.c.h.b16 %v392
    %v1739 = vunpack.c.l.b16 %v393
    %v1740 = vunpack.c.h.b16 %v393
    %v1741 = vunpack.c.l.b16 %v394
    %v1742 = vunpack.c.h.b16 %v394
    %v1743 = vunpack.c.l.b16 %v395
    %v1744 = vunpack.c.h.b16 %v395
    %v1745 = vunpack.c.l.b16 %v396
    %v1746 = vunpack.c.h.b16 %v396
    %v1747 = vunpack.c.l.b16 %v397
    %v1748 = vunpack.c.h.b16 %v397
    %v1749 = vunpack.c.l.b16 %v398
    %v1750 = vunpack.c.h.b16 %v398
    %v1751 = vunpack.c.l.b16 %v399
    %v1752 = vunpack.c.h.b16 %v399
    %v1753 = vunpack.c.l.b16 %v400
    %v1754 = vunpack.c.h.b16 %v400
    %v1755 = vunpack.c.l.b16 %v401
    %v1756 = vunpack.c.h.b16 %v401
    %v1757 = vunpack.c.l.b16 %v402
    %v1758 = vunpack.c.h.b16 %v402
    %v1759 = vunpack.c.l.b16 %v403
    %v1760 = vunpack.c.h.b16 %v403
    %v1761 = vunpack.c.l.b16 %v404
    %v1762 = vunpack.c.h.b16 %v404
    %v1763 = vunpack.c.l.b16 %v405
    %v1764 = vunpack.c.h.b16 %v405
    %v1765 = vunpack.c.l.b16 %v406
    %v1766 = vunpack.c.h.b16 %v406
    %v1767 = vunpack.c.l.b16 %v407
    %v1768 = vunpack.c.h.b16 %v407
    %v1769 = vunpack.c.l.b16 %v408
    %v1770 = vunpack.c.h.b16 %v408
    %v1771 = vunpack.c.l.b16 %v409
    %v1772 = vunpack.c.h.b16 %v409
    %v1773 = vunpack.c.l.b16 %v410
    %v1774 = vunpack.c.h.b16 %v410
    %v1775 = vunpack.c.l.b16 %v411
    %v1776 = vunpack.c.h.b16 %v411
    %v1777 = vunpack.c.l.b16 %v412
    %v1778 = vunpack.c.h.b16 %v412
    %v1779 = vunpack.c.l.b16 %v413
    %v1780 = vunpack.c.h.b16 %v413
    %v1781 = vunpack.c.l.b16 %v414
    %v1782 = vunpack.c.h.b16 %v414
    %v1783 = vunpack.c.l.b16 %v415
    %v1784 = vunpack.c.h.b16 %v415
    %v1785 = vunpack.c.l.b16 %v416
    %v1786 = vunpack.c.h.b16 %v416
    %v1787 = vunpack.c.l.b16 %v417
    %v1788 = vunpack.c.h.b16 %v417
    %v1789 = vunpack.c.l.b16 %v418
    %v1790 = vunpack.c.h.b16 %v418
    %v1791 = vunpack.c.l.b16 %v419
    %v1792 = vunpack.c.h.b16 %v419
    %v1793 = vunpack.c.l.b16 %v420
    %v1794 = vunpack.c.h.b16 %v420
    %v1795 = vunpack.c.l.b16 %v421
    %v1796 = vunpack.c.h.b16 %v421
    %v1797 = vunpack.c.l.b16 %v422
    %v1798 = vunpack.c.h.b16 %v422
    %v1799 = vunpack.c.l.b16 %v423
    %v1800 = vunpack.c.h.b16 %v423
    %v1801 = vunpack.c.l.b16 %v424
    %v1802 = vunpack.c.h.b16 %v424
    %v1803 = vunpack.c.l.b16 %v425
    %v1804 = vunpack.c.h.b16 %v425
    %v1805 = vunpack.c.l.b16 %v426
    %v1806 = vunpack.c.h.b16 %v426
    %v1807 = vunpack.c.l.b16 %v427
    %v1808 = vunpack.c.h.b16 %v427
    %v1809 = vunpack.c.l.b16 %v428
    %v1810 = vunpack.c.h.b16 %v428
    %v1811 = vunpack.c.l.b16 %v429
    %v1812 = vunpack.c.h.b16 %v429
    %v1813 = vunpack.c.l.b16 %v430
    %v1814 = vunpack.c.h.b16 %v430
    %v1815 = vunpack.c.l.b16 %v431
    %v1816 = vunpack.c.h.b16 %v431
    %v1817 = vunpack.c.l.b16 %v432
    %v1818 = vunpack.c.h.b16 %v432
    %v1819 = vunpack.c.l.b16 %v433
    %v1820 = vunpack.c.h.b16 %v433
    %v1821 = vunpack.c.l.b16 %v434
    %v1822 = vunpack.c.h.b16 %v434
    %v1823 = vunpack.c.l.b16 %v435
    %v1824 = vunpack.c.h.b16 %v435
    %v1825 = vunpack.c.l.b16 %v436
    %v1826 = vunpack.c.h.b16 %v436
    %v1827 = vunpack.c.l.b16 %v437
    %v1828 = vunpack.c.h.b16 %v437
    %v1829 = vunpack.c.l.b16 %v438
    %v1830 = vunpack.c.h.b16 %v438
    %v1831 = vunpack.c.l.b16 %v439
    %v1832 = vunpack.c.h.b16 %v439
    %v1833 = vunpack.c.l.b16 %v440
    %v1834 = vunpack.c.h.b16 %v440
    %v1835 = vunpack.c.l.b16 %v441
    %v1836 = vunpack.c.h.b16 %v441
    %v1837 = vunpack.c.l.b16 %v442
    %v1838 = vunpack.c.h.b16 %v442
    %v1839 = vunpack.c.l.b16 %v443
    %v1840 = vunpack.c.h.b16 %v443
    %v1841 = vunpack.c.l.b16 %v444
    %v1842 = vunpack.c.h.b16 %v444
    %v1843 = vunpack.c.l.b16 %v445
    %v1844 = vunpack.c.h.b16 %v445
    %v1845 = vunpack.c.l.b16 %v446
    %v1846 = vunpack.c.h.b16 %v446
    %v1847 = vunpack.c.l.b16 %v447
    %v1848 = vunpack.c.h.b16 %v447
    %v1849 = vunpack.c.l.b16 %v448
    %v1850 = vunpack.c.h.b16 %v448
    %v1851 = vunpack.c.l.b16 %v449
    %v1852 = vunpack.c.h.b16 %v449
    %v1853 = vunpack.c.l.b16 %v450
    %v1854 = vunpack.c.h.b16 %v450
    %v1855 = vunpack.c.l.b16 %v451
    %v1856 = vunpack.c.h.b16 %v451
    %v1857 = vunpack.c.l.b16 %v452
    %v1858 = vunpack.c.h.b16 %v452
    %v1859 = vunpack.c.l.b16 %v453
    %v1860 = vunpack.c.h.b16 %v453
    %v1861 = vunpack.c.l.b16 %v454
    %v1862 = vunpack.c.h.b16 %v454
    %v1863 = vunpack.c.l.b16 %v455
    %v1864 = vunpack.c.h.b16 %v455
    %v1865 = vunpack.c.l.b16 %v456
    %v1866 = vunpack.c.h.b16 %v456
    %v1867 = vunpack.c.l.b16 %v457
    %v1868 = vunpack.c.h.b16 %v457
    %v1869 = vunpack.c.l.b16 %v458
    %v1870 = vunpack.c.h.b16 %v458
    %v1871 = vunpack.c.l.b16 %v459
    %v1872 = vunpack.c.h.b16 %v459
    %v1873 = vunpack.c.l.b16 %v460
    %v1874 = vunpack.c.h.b16 %v460
    %v1875 = vunpack.c.l.b16 %v461
    %v1876 = vunpack.c.h.b16 %v461
    %v1877 = vunpack.c.l.b16 %v462
    %v1878 = vunpack.c.h.b16 %v462
    %v1879 = vunpack.c.l.b16 %v463
    %v1880 = vunpack.c.h.b16 %v463
    %v1881 = vunpack.c.l.b16 %v464
    %v1882 = vunpack.c.h.b16 %v464
    %v1883 = vunpack.c.l.b16 %v465
    %v1884 = vunpack.c.h.b16 %v465
    %v1885 = vunpack.c.l.b16 %v466
    %v1886 = vunpack.c.h.b16 %v466
    %v1887 = vunpack.c.l.b16 %v467
    %v1888 = vunpack.c.h.b16 %v467
    %v1889 = vunpack.c.l.b16 %v468
    %v1890 = vunpack.c.h.b16 %v468
    %v1891 = vunpack.c.l.b16 %v469
    %v1892 = vunpack.c.h.b16 %v469
    %v1893 = vunpack.c.l.b16 %v470
    %v1894 = vunpack.c.h.b16 %v470
    %v1895 = vunpack.c.l.b16 %v471
    %v1896 = vunpack.c.h.b16 %v471
    %v1897 = vunpack.c.l.b16 %v472
    %v1898 = vunpack.c.h.b16 %v472
    %v1899 = vunpack.c.l.b16 %v473
    %v1900 = vunpack.c.h.b16 %v473
    %v1901 = vunpack.c.l.b16 %v474
    %v1902 = vunpack.c.h.b16 %v474
    %v1903 = vunpack.c.l.b16 %v475
    %v1904 = vunpack.c.h.b16 %v475
    %v1905 = vunpack.c.l.b16 %v476
    %v1906 = vunpack.c.h.b16 %v476
    %v1907 = vunpack.c.l.b16 %v477
    %v1908 = vunpack.c.h.b16 %v477
    %v1909 = vunpack.c.l.b16 %v478
    %v1910 = vunpack.c.h.b16 %v478
    %v1911 = vunpack.c.l.b16 %v479
    %v1912 = vunpack.c.h.b16 %v479
    %v1913 = vunpack.c.l.b16 %v480
    %v1914 = vunpack.c.h.b16 %v480
    %v1915 = vunpack.c.l.b16 %v481
    %v1916 = vunpack.c.h.b16 %v481
    %v1917 = vunpack.c.l.b16 %v482
    %v1918 = vunpack.c.h.b16 %v482
    %v1919 = vunpack.c.l.b16 %v483
    %v1920 = vunpack.c.h.b16 %v483
    %v1921 = vunpack.c.l.b16 %v484
    %v1922 = vunpack.c.h.b16 %v484
    %v1923 = vunpack.c.l.b16 %v485
    %v1924 = vunpack.c.h.b16 %v485
    %v1925 = vunpack.c.l.b16 %v486
    %v1926 = vunpack.c.h.b16 %v486
    %v1927 = vunpack.c.l.b16 %v487
    %v1928 = vunpack.c.h.b16 %v487
    %v1929 = vunpack.c.l.b16 %v488
    %v1930 = vunpack.c.h.b16 %v488
    %v1931 = vunpack.c.l.b16 %v489
    %v1932 = vunpack.c.h.b16 %v489
    %v1933 = vunpack.c.l.b16 %v490
    %v1934 = vunpack.c.h.b16 %v490
    %v1935 = vunpack.c.l.b16 %v491
    %v1936 = vunpack.c.h.b16 %v491
    %v1937 = vunpack.c.l.b16 %v492
    %v1938 = vunpack.c.h.b16 %v492
    %v1939 = vunpack.c.l.b16 %v493
    %v1940 = vunpack.c.h.b16 %v493
    %v1941 = vunpack.c.l.b16 %v494
    %v1942 = vunpack.c.h.b16 %v494
    %v1943 = vunpack.c.l.b16 %v495
    %v1944 = vunpack.c.h.b16 %v495
    %v1945 = vunpack.c.l.b16 %v496
    %v1946 = vunpack.c.h.b16 %v496
    %v1947 = vunpack.c.l.b16 %v497
    %v1948 = vunpack.c.h.b16 %v497
    %v1949 = vunpack.c.l.b16 %v498
    %v1950 = vunpack.c.h.b16 %v498
    %v1951 = vunpack.c.l.b16 %v499
    %v1952 = vunpack.c.h.b16 %v499
    %v1953 = vunpack.c.l.b16 %v500
    %v1954 = vunpack.c.h.b16 %v500
    %v1955 = vunpack.c.l.b16 %v501
    %v1956 = vunpack.c.h.b16 %v501
    %v1957 = vunpack.c.l.b16 %v502
    %v1958 = vunpack.c.h.b16 %v502
    %v1959 = vunpack.c.l.b16 %v503
    %v1960 = vunpack.c.h.b16 %v503
    %v1961 = vunpack.c.l.b16 %v504
    %v1962 = vunpack.c.h.b16 %v504
    %v1963 = vunpack.c.l.b16 %v505
    %v1964 = vunpack.c.h.b16 %v505
    %v1965 = vunpack.c.l.b16 %v506
    %v1966 = vunpack.c.h.b16 %v506
    %v1967 = vunpack.c.l.b16 %v507
    %v1968 = vunpack.c.h.b16 %v507
    %v1969 = vunpack.c.l.b16 %v508
    %v1970 = vunpack.c.h.b16 %v508
    %v1971 = vunpack.c.l.b16 %v509
    %v1972 = vunpack.c.h.b16 %v509
    %v1973 = vunpack.c.l.b16 %v510
    %v1974 = vunpack.c.h.b16 %v510
    %v1975 = vunpack.c.l.b16 %v511
    %v1976 = vunpack.c.h.b16 %v511
    %v1977 = vunpack.c.l.b16 %v512
    %v1978 = vunpack.c.h.b16 %v512
    %v1979 = vunpack.c.l.b16 %v513
    %v1980 = vunpack.c.h.b16 %v513
    %v1981 = vunpack.c.l.b16 %v514
    %v1982 = vunpack.c.h.b16 %v514
    %v1983 = vunpack.c.l.b16 %v515
    %v1984 = vunpack.c.h.b16 %v515
    %v1985 = vunpack.c.l.b16 %v516
    %v1986 = vunpack.c.h.b16 %v516
    %v1987 = vunpack.c.l.b16 %v517
    %v1988 = vunpack.c.h.b16 %v517
    %v1989 = vunpack.c.l.b16 %v518
    %v1990 = vunpack.c.h.b16 %v518
    %v1991 = vunpack.c.l.b16 %v519
    %v1992 = vunpack.c.h.b16 %v519
    %v1993 = vunpack.c.l.b16 %v520
    %v1994 = vunpack.c.h.b16 %v520
    %v1995 = vunpack.c.l.b16 %v521
    %v1996 = vunpack.c.h.b16 %v521
    %v1997 = vunpack.c.l.b16 %v522
    %v1998 = vunpack.c.h.b16 %v522
    %v1999 = vunpack.c.l.b16 %v523
    %v2000 = vunpack.c.h.b16 %v523
    %v2001 = vunpack.c.l.b16 %v524
    %v2002 = vunpack.c.h.b16 %v524
    %v2003 = vunpack.c.l.b16 %v525
    %v2004 = vunpack.c.h.b16 %v525
    %v2005 = vunpack.c.l.b16 %v526
    %v2006 = vunpack.c.h.b16 %v526
    %v2007 = vunpack.c.l.b16 %v527
    %v2008 = vunpack.c.h.b16 %v527
    %v2009 = vunpack.c.l.b16 %v528
    %v2010 = vunpack.c.h.b16 %v528
    %v2011 = vunpack.c.l.b16 %v529
    %v2012 = vunpack.c.h.b16 %v529
    %v2013 = vunpack.c.l.b16 %v530
    %v2014 = vunpack.c.h.b16 %v530
    %v2015 = vunpack.c.l.b16 %v531
    %v2016 = vunpack.c.h.b16 %v531
    %v2017 = vunpack.c.l.b16 %v532
    %v2018 = vunpack.c.h.b16 %v532
    %v2019 = vunpack.c.l.b16 %v533
    %v2020 = vunpack.c.h.b16 %v533
    %v2021 = vunpack.c.l.b16 %v534
    %v2022 = vunpack.c.h.b16 %v534
    %v2023 = vunpack.c.l.b16 %v535
    %v2024 = vunpack.c.h.b16 %v535
    %v2025 = vunpack.c.l.b16 %v536
    %v2026 = vunpack.c.h.b16 %v536
    %v2027 = vunpack.c.l.b16 %v537
    %v2028 = vunpack.c.h.b16 %v537
    %v2029 = vunpack.c.l.b16 %v538
    %v2030 = vunpack.c.h.b16 %v538
    %v2031 = vunpack.c.l.b16 %v539
    %v2032 = vunpack.c.h.b16 %v539
    %v2033 = vunpack.c.l.b16 %v540
    %v2034 = vunpack.c.h.b16 %v540
    %v2035 = vunpack.c.l.b16 %v541
    %v2036 = vunpack.c.h.b16 %v541
    %v2037 = vunpack.c.l.b16 %v542
    %v2038 = vunpack.c.h.b16 %v542
    %v2039 = vunpack.c.l.b16 %v543
    %v2040 = vunpack.c.h.b16 %v543
    %v2041 = vunpack.c.l.b16 %v544
    %v2042 = vunpack.c.h.b16 %v544
    %v2043 = vunpack.c.l.b16 %v545
    %v2044 = vunpack.c.h.b16 %v545
    %v2045 = vunpack.c.l.b16 %v546
    %v2046 = vunpack.c.h.b16 %v546
    %v2047 = vunpack.c.l.b16 %v547
    %v2048 = vunpack.c.h.b16 %v547
    %v2049 = vunpack.c.l.b16 %v548
    %v2050 = vunpack.c.h.b16 %v548
    %v2051 = vunpack.c.l.b16 %v549
    %v2052 = vunpack.c.h.b16 %v549
    %v2053 = vunpack.c.l.b16 %v550
    %v2054 = vunpack.c.h.b16 %v550
    %v2055 = vunpack.c.l.b16 %v551
    %v2056 = vunpack.c.h.b16 %v551
    %v2057 = vunpack.c.l.b16 %v552
    %v2058 = vunpack.c.h.b16 %v552
    %v2059 = vunpack.c.l.b16 %v553
    %v2060 = vunpack.c.h.b16 %v553
    %v2061 = vunpack.c.l.b16 %v554
    %v2062 = vunpack.c.h.b16 %v554
    %v2063 = vunpack.c.l.b16 %v555
    %v2064 = vunpack.c.h.b16 %v555
    %v2065 = vunpack.c.l.b16 %v556
    %v2066 = vunpack.c.h.b16 %v556
    %v2067 = vunpack.c.l.b16 %v557
    %v2068 = vunpack.c.h.b16 %v557
    %v2069 = vunpack.c.l.b16 %v558
    %v2070 = vunpack.c.h.b16 %v558
    %v2071 = vunpack.c.l.b16 %v559
    %v2072 = vunpack.c.h.b16 %v559
    %v2073 = vunpack.c.l.b16 %v560
    %v2074 = vunpack.c.h.b16 %v560
    %v2075 = vunpack.c.l.b16 %v561
    %v2076 = vunpack.c.h.b16 %v561
    %v2077 = vunpack.c.l.b16 %v562
    %v2078 = vunpack.c.h.b16 %v562
    %v2079 = vunpack.c.l.b16 %v563
    %v2080 = vunpack.c.h.b16 %v563
    %v2081 = vunpack.c.l.b16 %v564
    %v2082 = vunpack.c.h.b16 %v564
    %v2083 = vunpack.c.l.b16 %v565
    %v2084 = vunpack.c.h.b16 %v565
    %v2085 = vunpack.c.l.b16 %v566
    %v2086 = vunpack.c.h.b16 %v566
    %v2087 = vunpack.c.l.b16 %v567
    %v2088 = vunpack.c.h.b16 %v567
    %v2089 = vunpack.c.l.b16 %v568
    %v2090 = vunpack.c.h.b16 %v568
    %v2091 = vunpack.c.l.b16 %v569
    %v2092 = vunpack.c.h.b16 %v569
    %v2093 = vunpack.c.l.b16 %v570
    %v2094 = vunpack.c.h.b16 %v570
    %v2095 = vunpack.c.l.b16 %v571
    %v2096 = vunpack.c.h.b16 %v571
    %v2097 = vunpack.c.l.b16 %v572
    %v2098 = vunpack.c.h.b16 %v572
    %v2099 = vunpack.c.l.b16 %v573
    %v2100 = vunpack.c.h.b16 %v573
    %v2101 = vunpack.c.l.b16 %v574
    %v2102 = vunpack.c.h.b16 %v574
    %v2103 = vunpack.c.l.b16 %v575
    %v2104 = vunpack.c.h.b16 %v575
    %v2105 = vunpack.c.l.b16 %v576
    %v2106 = vunpack.c.h.b16 %v576
    %v2107 = vunpack.c.l.b16 %v577
    %v2108 = vunpack.c.h.b16 %v577
    %v2109 = vunpack.c.l.b16 %v578
    %v2110 = vunpack.c.h.b16 %v578
    %v2111 = vunpack.c.l.b16 %v579
    %v2112 = vunpack.c.h.b16 %v579
    %v2113 = vunpack.c.l.b16 %v580
    %v2114 = vunpack.c.h.b16 %v580
    %v2115 = vunpack.c.l.b16 %v581
    %v2116 = vunpack.c.h.b16 %v581
    %v2117 = vunpack.c.l.b16 %v582
    %v2118 = vunpack.c.h.b16 %v582
    %v2119 = vunpack.c.l.b16 %v583
    %v2120 = vunpack.c.h.b16 %v583
    %v2121 = vunpack.c.l.b16 %v584
    %v2122 = vunpack.c.h.b16 %v584
    %v2123 = vunpack.c.l.b16 %v585
    %v2124 = vunpack.c.h.b16 %v585
    %v2125 = vunpack.c.l.b16 %v586
    %v2126 = vunpack.c.h.b16 %v586
    %v2127 = vunpack.c.l.b16 %v587
    %v2128 = vunpack.c.h.b16 %v587
    %v2129 = vunpack.c.l.b16 %v588
    %v2130 = vunpack.c.h.b16 %v588
    %v2131 = vunpack.c.l.b16 %v589
    %v2132 = vunpack.c.h.b16 %v589
    %v2133 = vunpack.c.l.b16 %v590
    %v2134 = vunpack.c.h.b16 %v590
    %v2135 = vunpack.c.l.b16 %v591
    %v2136 = vunpack.c.h.b16 %v591
    %v2137 = vunpack.c.l.b16 %v592
    %v2138 = vunpack.c.h.b16 %v592
    %v2139 = vunpack.c.l.b16 %v593
    %v2140 = vunpack.c.h.b16 %v593
    %v2141 = vunpack.c.l.b16 %v594
    %v2142 = vunpack.c.h.b16 %v594
    %v2143 = vunpack.c.l.b16 %v595
    %v2144 = vunpack.c.h.b16 %v595
    %v2145 = vunpack.c.l.b16 %v596
    %v2146 = vunpack.c.h.b16 %v596
    %v2147 = vunpack.c.l.b16 %v597
    %v2148 = vunpack.c.h.b16 %v597
    %v2149 = vunpack.c.l.b16 %v598
    %v2150 = vunpack.c.h.b16 %v598
    %v2151 = vunpack.c.l.b16 %v599
    %v2152 = vunpack.c.h.b16 %v599
    %v2153 = vunpack.c.l.b16 %v600
    %v2154 = vunpack.c.h.b16 %v600
    %v2155 = vunpack.c.l.b16 %v601
    %v2156 = vunpack.c.h.b16 %v601
    %v2157 = vunpack.c.l.b16 %v602
    %v2158 = vunpack.c.h.b16 %v602
    %v2159 = vunpack.c.l.b16 %v603
    %v2160 = vunpack.c.h.b16 %v603
    %v2161 = vunpack.c.l.b16 %v604
    %v2162 = vunpack.c.h.b16 %v604
    %v2163 = vunpack.c.l.b16 %v605
    %v2164 = vunpack.c.h.b16 %v605
    %v2165 = vunpack.c.l.b16 %v606
    %v2166 = vunpack.c.h.b16 %v606
    %v2167 = vunpack.c.l.b16 %v607
    %v2168 = vunpack.c.h.b16 %v607
    %v2169 = vunpack.c.l.b16 %v608
    %v2170 = vunpack.c.h.b16 %v608
    %v2171 = vunpack.c.l.b16 %v609
    %v2172 = vunpack.c.h.b16 %v609
    %v2173 = vunpack.c.l.b16 %v610
    %v2174 = vunpack.c.h.b16 %v610
    %v2175 = vunpack.c.l.b16 %v611
    %v2176 = vunpack.c.h.b16 %v611
    %v2177 = vunpack.c.l.b16 %v612
    %v2178 = vunpack.c.h.b16 %v612
    %v2179 = vunpack.c.l.b16 %v613
    %v2180 = vunpack.c.h.b16 %v613
    %v2181 = vunpack.c.l.b16 %v614
    %v2182 = vunpack.c.h.b16 %v614
    %v2183 = vunpack.c.l.b16 %v615
    %v2184 = vunpack.c.h.b16 %v615
    %v2185 = vunpack.c.l.b16 %v616
    %v2186 = vunpack.c.h.b16 %v616
    %v2187 = vunpack.c.l.b16 %v617
    %v2188 = vunpack.c.h.b16 %v617
    %v2189 = vunpack.c.l.b16 %v618
    %v2190 = vunpack.c.h.b16 %v618
    %v2191 = vunpack.c.l.b16 %v619
    %v2192 = vunpack.c.h.b16 %v619
    %v2193 = vunpack.c.l.b16 %v620
    %v2194 = vunpack.c.h.b16 %v620
    %v2195 = vunpack.c.l.b16 %v621
    %v2196 = vunpack.c.h.b16 %v621
    %v2197 = vunpack.c.l.b16 %v622
    %v2198 = vunpack.c.h.b16 %v622
    %v2199 = vunpack.c.l.b16 %v623
    %v2200 = vunpack.c.h.b16 %v623
    %v2201 = vunpack.c.l.b16 %v624
    %v2202 = vunpack.c.h.b16 %v624
    %v2203 = vunpack.c.l.b16 %v625
    %v2204 = vunpack.c.h.b16 %v625
    %v2205 = vunpack.c.l.b16 %v626
    %v2206 = vunpack.c.h.b16 %v626
    %v2207 = vunpack.c.l.b16 %v627
    %v2208 = vunpack.c.h.b16 %v627
    %v2209 = vunpack.c.l.b16 %v628
    %v2210 = vunpack.c.h.b16 %v628
    %v2211 = vpack.c.b16 %v1191, %v1187
    %v2212 = vpack.c.b16 %v1192, %v1188
    %v2213 = vpack.c.b16 %v1193, %v1189
    %v2214 = vpack.c.b16 %v1194, %v1190
    %v2215 = vpack.c.b16 %v1199, %v1195
    %v2216 = vpack.c.b16 %v1200, %v1196
    %v2217 = vpack.c.b16 %v1201, %v1197
    %v2218 = vpack.c.b16 %v1202, %v1198
    %v2219 = vpack.c.b16 %v1207, %v1203
    %v2220 = vpack.c.b16 %v1208, %v1204
    %v2221 = vpack.c.b16 %v1209, %v1205
    %v2222 = vpack.c.b16 %v1210, %v1206
    %v2223 = vpack.c.b16 %v1215, %v1211
    %v2224 = vpack.c.b16 %v1216, %v1212
    %v2225 = vpack.c.b16 %v1217, %v1213
    %v2226 = vpack.c.b16 %v1218, %v1214
    %v2227 = vpack.c.b16 %v1223, %v1219
    %v2228 = vpack.c.b16 %v1224, %v1220
    %v2229 = vpack.c.b16 %v1225, %v1221
    %v2230 = vpack.c.b16 %v1226, %v1222
    %v2231 = vpack.c.b16 %v1231, %v1227
    %v2232 = vpack.c.b16 %v1232, %v1228
    %v2233 = vpack.c.b16 %v1233, %v1229
    %v2234 = vpack.c.b16 %v1234, %v1230
    %v2235 = vpack.c.b16 %v1239, %v1235
    %v2236 = vpack.c.b16 %v1240, %v1236
    %v2237 = vpack.c.b16 %v1241, %v1237
    %v2238 = vpack.c.b16 %v1242, %v1238
    %v2239 = vpack.c.b16 %v1247, %v1243
    %v2240 = vpack.c.b16 %v1248, %v1244
    %v2241 = vpack.c.b16 %v1249, %v1245
    %v2242 = vpack.c.b16 %v1250, %v1246
    %v2243 = vpack.c.b16 %v1255, %v1251
    %v2244 = vpack.c.b16 %v1256, %v1252
    %v2245 = vpack.c.b16 %v1257, %v1253
    %v2246 = vpack.c.b16 %v1258, %v1254
    %v2247 = vpack.c.b16 %v1263, %v1259
    %v2248 = vpack.c.b16 %v1264, %v1260
    %v2249 = vpack.c.b16 %v1265, %v1261
    %v2250 = vpack.c.b16 %v1266, %v1262
    %v2251 = vpack.c.b16 %v1271, %v1267
    %v2252 = vpack.c.b16 %v1272, %v1268
    %v2253 = vpack.c.b16 %v1273, %v1269
    %v2254 = vpack.c.b16 %v1274, %v1270
    %v2255 = vpack.c.b16 %v1279, %v1275
    %v2256 = vpack.c.b16 %v1280, %v1276
    %v2257 = vpack.c.b16 %v1281, %v1277
    %v2258 = vpack.c.b16 %v1282, %v1278
    %v2259 = vpack.c.b16 %v1287, %v1283
    %v2260 = vpack.c.b16 %v1288, %v1284
    %v2261 = vpack.c.b16 %v1289, %v1285
    %v2262 = vpack.c.b16 %v1290, %v1286
    %v2263 = vpack.c.b16 %v1295, %v1291
    %v2264 = vpack.c.b16 %v1296, %v1292
    %v2265 = vpack.c.b16 %v1297, %v1293
    %v2266 = vpack.c.b16 %v1298, %v1294
    %v2267 = vpack.c.b16 %v1303, %v1299
    %v2268 = vpack.c.b16 %v1304, %v1300
    %v2269 = vpack.c.b16 %v1305, %v1301
    %v2270 = vpack.c.b16 %v1306, %v1302
    %v2271 = vpack.c.b16 %v1311, %v1307
    %v2272 = vpack.c.b16 %v1312, %v1308
    %v2273 = vpack.c.b16 %v1313, %v1309
    %v2274 = vpack.c.b16 %v1314, %v1310
    %v2275 = vpack.c.b16 %v1319, %v1315
    %v2276 = vpack.c.b16 %v1320, %v1316
    %v2277 = vpack.c.b16 %v1321, %v1317
    %v2278 = vpack.c.b16 %v1322, %v1318
    %v2279 = vpack.c.b16 %v1327, %v1323
    %v2280 = vpack.c.b16 %v1328, %v1324
    %v2281 = vpack.c.b16 %v1329, %v1325
    %v2282 = vpack.c.b16 %v1330, %v1326
    %v2283 = vpack.c.b16 %v1335, %v1331
    %v2284 = vpack.c.b16 %v1336, %v1332
    %v2285 = vpack.c.b16 %v1337, %v1333
    %v2286 = vpack.c.b16 %v1338, %v1334
    %v2287 = vpack.c.b16 %v1343, %v1339
    %v2288 = vpack.c.b16 %v1344, %v1340
    %v2289 = vpack.c.b16 %v1345, %v1341
    %v2290 = vpack.c.b16 %v1346, %v1342
    %v2291 = vpack.c.b16 %v1351, %v1347
    %v2292 = vpack.c.b16 %v1352, %v1348
    %v2293 = vpack.c.b16 %v1353, %v1349
    %v2294 = vpack.c.b16 %v1354, %v1350
    %v2295 = vpack.c.b16 %v1359, %v1355
    %v2296 = vpack.c.b16 %v1360, %v1356
    %v2297 = vpack.c.b16 %v1361, %v1357
    %v2298 = vpack.c.b16 %v1362, %v1358
    %v2299 = vpack.c.b16 %v1367, %v1363
    %v2300 = vpack.c.b16 %v1368, %v1364
    %v2301 = vpack.c.b16 %v1369, %v1365
    %v2302 = vpack.c.b16 %v1370, %v1366
    %v2303 = vpack.c.b16 %v1375, %v1371
    %v2304 = vpack.c.b16 %v1376, %v1372
    %v2305 = vpack.c.b16 %v1377, %v1373
    %v2306 = vpack.c.b16 %v1378, %v1374
    %v2307 = vpack.c.b16 %v1383, %v1379
    %v2308 = vpack.c.b16 %v1384, %v1380
    %v2309 = vpack.c.b16 %v1385, %v1381
    %v2310 = vpack.c.b16 %v1386, %v1382
    %v2311 = vpack.c.b16 %v1391, %v1387
    %v2312 = vpack.c.b16 %v1392, %v1388
    %v2313 = vpack.c.b16 %v1393, %v1389
    %v2314 = vpack.c.b16 %v1394, %v1390
    %v2315 = vpack.c.b16 %v1399, %v1395
    %v2316 = vpack.c.b16 %v1400, %v1396
    %v2317 = vpack.c.b16 %v1401, %v1397
    %v2318 = vpack.c.b16 %v1402, %v1398
    %v2319 = vpack.c.b16 %v1407, %v1403
    %v2320 = vpack.c.b16 %v1408, %v1404
    %v2321 = vpack.c.b16 %v1409, %v1405
    %v2322 = vpack.c.b16 %v1410, %v1406
    %v2323 = vpack.c.b16 %v1415, %v1411
    %v2324 = vpack.c.b16 %v1416, %v1412
    %v2325 = vpack.c.b16 %v1417, %v1413
    %v2326 = vpack.c.b16 %v1418, %v1414
    %v2327 = vpack.c.b16 %v1423, %v1419
    %v2328 = vpack.c.b16 %v1424, %v1420
    %v2329 = vpack.c.b16 %v1425, %v1421
    %v2330 = vpack.c.b16 %v1426, %v1422
    %v2331 = vpack.c.b16 %v1431, %v1427
    %v2332 = vpack.c.b16 %v1432, %v1428
    %v2333 = vpack.c.b16 %v1433, %v1429
    %v2334 = vpack.c.b16 %v1434, %v1430
    %v2335 = vpack.c.b16 %v1439, %v1435
    %v2336 = vpack.c.b16 %v1440, %v1436
    %v2337 = vpack.c.b16 %v1441, %v1437
    %v2338 = vpack.c.b16 %v1442, %v1438
    %v2339 = vpack.c.b16 %v1447, %v1443
    %v2340 = vpack.c.b16 %v1448, %v1444
    %v2341 = vpack.c.b16 %v1449, %v1445
    %v2342 = vpack.c.b16 %v1450, %v1446
    %v2343 = vpack.c.b16 %v1455, %v1451
    %v2344 = vpack.c.b16 %v1456, %v1452
    %v2345 = vpack.c.b16 %v1457, %v1453
    %v2346 = vpack.c.b16 %v1458, %v1454
    %v2347 = vpack.c.b16 %v1463, %v1459
    %v2348 = vpack.c.b16 %v1464, %v1460
    %v2349 = vpack.c.b16 %v1465, %v1461
    %v2350 = vpack.c.b16 %v1466, %v1462
    %v2351 = vpack.c.b16 %v1471, %v1467
    %v2352 = vpack.c.b16 %v1472, %v1468
    %v2353 = vpack.c.b16 %v1473, %v1469
    %v2354 = vpack.c.b16 %v1474, %v1470
    %v2355 = vpack.c.b16 %v1479, %v1475
    %v2356 = vpack.c.b16 %v1480, %v1476
    %v2357 = vpack.c.b16 %v1481, %v1477
    %v2358 = vpack.c.b16 %v1482, %v1478
    %v2359 = vpack.c.b16 %v1487, %v1483
    %v2360 = vpack.c.b16 %v1488, %v1484
    %v2361 = vpack.c.b16 %v1489, %v1485
    %v2362 = vpack.c.b16 %v1490, %v1486
    %v2363 = vpack.c.b16 %v1495, %v1491
    %v2364 = vpack.c.b16 %v1496, %v1492
    %v2365 = vpack.c.b16 %v1497, %v1493
    %v2366 = vpack.c.b16 %v1498, %v1494
    %v2367 = vpack.c.b16 %v1503, %v1499
    %v2368 = vpack.c.b16 %v1504, %v1500
    %v2369 = vpack.c.b16 %v1505, %v1501
    %v2370 = vpack.c.b16 %v1506, %v1502
    %v2371 = vpack.c.b16 %v1511, %v1507
    %v2372 = vpack.c.b16 %v1512, %v1508
    %v2373 = vpack.c.b16 %v1513, %v1509
    %v2374 = vpack.c.b16 %v1514, %v1510
    %v2375 = vpack.c.b16 %v1519, %v1515
    %v2376 = vpack.c.b16 %v1520, %v1516
    %v2377 = vpack.c.b16 %v1521, %v1517
    %v2378 = vpack.c.b16 %v1522, %v1518
    %v2379 = vpack.c.b16 %v1527, %v1523
    %v2380 = vpack.c.b16 %v1528, %v1524
    %v2381 = vpack.c.b16 %v1529, %v1525
    %v2382 = vpack.c.b16 %v1530, %v1526
    %v2383 = vpack.c.b16 %v1535, %v1531
    %v2384 = vpack.c.b16 %v1536, %v1532
    %v2385 = vpack.c.b16 %v1537, %v1533
    %v2386 = vpack.c.b16 %v1538, %v1534
    %v2387 = vpack.c.b16 %v1543, %v1539
    %v2388 = vpack.c.b16 %v1544, %v1540
    %v2389 = vpack.c.b16 %v1545, %v1541
    %v2390 = vpack.c.b16 %v1546, %v1542
    %v2391 = vpack.c.b16 %v1551, %v1547
    %v2392 = vpack.c.b16 %v1552, %v1548
    %v2393 = vpack.c.b16 %v1553, %v1549
    %v2394 = vpack.c.b16 %v1554, %v1550
    %v2395 = vpack.c.b16 %v1559, %v1555
    %v2396 = vpack.c.b16 %v1560, %v1556
    %v2397 = vpack.c.b16 %v1561, %v1557
    %v2398 = vpack.c.b16 %v1562, %v1558
    %v2399 = vpack.c.b16 %v1567, %v1563
    %v2400 = vpack.c.b16 %v1568, %v1564
    %v2401 = vpack.c.b16 %v1569, %v1565
    %v2402 = vpack.c.b16 %v1570, %v1566
    %v2403 = vpack.c.b16 %v1575, %v1571
    %v2404 = vpack.c.b16 %v1576, %v1572
    %v2405 = vpack.c.b16 %v1577, %v1573
    %v2406 = vpack.c.b16 %v1578, %v1574
    %v2407 = vpack.c.b16 %v1583, %v1579
    %v2408 = vpack.c.b16 %v1584, %v1580
    %v2409 = vpack.c.b16 %v1585, %v1581
    %v2410 = vpack.c.b16 %v1586, %v1582
    %v2411 = vpack.c.b16 %v1591, %v1587
    %v2412 = vpack.c.b16 %v1592, %v1588
    %v2413 = vpack.c.b16 %v1593, %v1589
    %v2414 = vpack.c.b16 %v1594, %v1590
    %v2415 = vpack.c.b16 %v1599, %v1595
    %v2416 = vpack.c.b16 %v1600, %v1596
    %v2417 = vpack.c.b16 %v1601, %v1597
    %v2418 = vpack.c.b16 %v1602, %v1598
    %v2419 = vpack.c.b16 %v1607, %v1603
    %v2420 = vpack.c.b16 %v1608, %v1604
    %v2421 = vpack.c.b16 %v1609, %v1605
    %v2422 = vpack.c.b16 %v1610, %v1606
    %v2423 = vpack.c.b16 %v1615, %v1611
    %v2424 = vpack.c.b16 %v1616, %v1612
    %v2425 = vpack.c.b16 %v1617, %v1613
    %v2426 = vpack.c.b16 %v1618, %v1614
    %v2427 = vpack.c.b16 %v1623, %v1619
    %v2428 = vpack.c.b16 %v1624, %v1620
    %v2429 = vpack.c.b16 %v1625, %v1621
    %v2430 = vpack.c.b16 %v1626, %v1622
    %v2431 = vpack.c.b16 %v1631, %v1627
    %v2432 = vpack.c.b16 %v1632, %v1628
    %v2433 = vpack.c.b16 %v1633, %v1629
    %v2434 = vpack.c.b16 %v1634, %v1630
    %v2435 = vpack.c.b16 %v1639, %v1635
    %v2436 = vpack.c.b16 %v1640, %v1636
    %v2437 = vpack.c.b16 %v1641, %v1637
    %v2438 = vpack.c.b16 %v1642, %v1638
    %v2439 = vpack.c.b16 %v1647, %v1643
    %v2440 = vpack.c.b16 %v1648, %v1644
    %v2441 = vpack.c.b16 %v1649, %v1645
    %v2442 = vpack.c.b16 %v1650, %v1646
    %v2443 = vpack.c.b16 %v1655, %v1651
    %v2444 = vpack.c.b16 %v1656, %v1652
    %v2445 = vpack.c.b16 %v1657, %v1653
    %v2446 = vpack.c.b16 %v1658, %v1654
    %v2447 = vpack.c.b16 %v1663, %v1659
    %v2448 = vpack.c.b16 %v1664, %v1660
    %v2449 = vpack.c.b16 %v1665, %v1661
    %v2450 = vpack.c.b16 %v1666, %v1662
    %v2451 = vpack.c.b16 %v1671, %v1667
    %v2452 = vpack.c.b16 %v1672, %v1668
    %v2453 = vpack.c.b16 %v1673, %v1669
    %v2454 = vpack.c.b16 %v1674, %v1670
    %v2455 = vpack.c.b16 %v1679, %v1675
    %v2456 = vpack.c.b16 %v1680, %v1676
    %v2457 = vpack.c.b16 %v1681, %v1677
    %v2458 = vpack.c.b16 %v1682, %v1678
    %v2459 = vpack.c.b16 %v1687, %v1683
    %v2460 = vpack.c.b16 %v1688, %v1684
    %v2461 = vpack.c.b16 %v1689, %v1685
    %v2462 = vpack.c.b16 %v1690, %v1686
    %v2463 = vpack.c.b16 %v1695, %v1691
    %v2464 = vpack.c.b16 %v1696, %v1692
    %v2465 = vpack.c.b16 %v1697, %v1693
    %v2466 = vpack.c.b16 %v1698, %v1694
    %v2467 = vpack.c.b16 %v1703, %v1699
    %v2468 = vpack.c.b16 %v1704, %v1700
    %v2469 = vpack.c.b16 %v1705, %v1701
    %v2470 = vpack.c.b16 %v1706, %v1702
    %v2471 = vpack.c.b16 %v1711, %v1707
    %v2472 = vpack.c.b16 %v1712, %v1708
    %v2473 = vpack.c.b16 %v1713, %v1709
    %v2474 = vpack.c.b16 %v1714, %v1710
    %v2475 = vpack.c.b16 %v1719, %v1715
    %v2476 = vpack.c.b16 %v1720, %v1716
    %v2477 = vpack.c.b16 %v1721, %v1717
    %v2478 = vpack.c.b16 %v1722, %v1718
    %v2479 = vpack.c.b16 %v1727, %v1723
    %v2480 = vpack.c.b16 %v1728, %v1724
    %v2481 = vpack.c.b16 %v1729, %v1725
    %v2482 = vpack.c.b16 %v1730, %v1726
    %v2483 = vpack.c.b16 %v1735, %v1731
    %v2484 = vpack.c.b16 %v1736, %v1732
    %v2485 = vpack.c.b16 %v1737, %v1733
    %v2486 = vpack.c.b16 %v1738, %v1734
    %v2487 = vpack.c.b16 %v1743, %v1739
    %v2488 = vpack.c.b16 %v1744, %v1740
    %v2489 = vpack.c.b16 %v1745, %v1741
    %v2490 = vpack.c.b16 %v1746, %v1742
    %v2491 = vpack.c.b16 %v1751, %v1747
    %v2492 = vpack.c.b16 %v1752, %v1748
    %v2493 = vpack.c.b16 %v1753, %v1749
    %v2494 = vpack.c.b16 %v1754, %v1750
    %v2495 = vpack.c.b16 %v1759, %v1755
    %v2496 = vpack.c.b16 %v1760, %v1756
    %v2497 = vpack.c.b16 %v1761, %v1757
    %v2498 = vpack.c.b16 %v1762, %v1758
    %v2499 = vpack.c.b16 %v1767, %v1763
    %v2500 = vpack.c.b16 %v1768, %v1764
    %v2501 = vpack.c.b16 %v1769, %v1765
    %v2502 = vpack.c.b16 %v1770, %v1766
    %v2503 = vpack.c.b16 %v1775, %v1771
    %v2504 = vpack.c.b16 %v1776, %v1772
    %v2505 = vpack.c.b16 %v1777, %v1773
    %v2506 = vpack.c.b16 %v1778, %v1774
    %v2507 = vpack.c.b16 %v1783, %v1779
    %v2508 = vpack.c.b16 %v1784, %v1780
    %v2509 = vpack.c.b16 %v1785, %v1781
    %v2510 = vpack.c.b16 %v1786, %v1782
    %v2511 = vpack.c.b16 %v1791, %v1787
    %v2512 = vpack.c.b16 %v1792, %v1788
    %v2513 = vpack.c.b16 %v1793, %v1789
    %v2514 = vpack.c.b16 %v1794, %v1790
    %v2515 = vpack.c.b16 %v1799, %v1795
    %v2516 = vpack.c.b16 %v1800, %v1796
    %v2517 = vpack.c.b16 %v1801, %v1797
    %v2518 = vpack.c.b16 %v1802, %v1798
    %v2519 = vpack.c.b16 %v1807, %v1803
    %v2520 = vpack.c.b16 %v1808, %v1804
    %v2521 = vpack.c.b16 %v1809, %v1805
    %v2522 = vpack.c.b16 %v1810, %v1806
    %v2523 = vpack.c.b16 %v1815, %v1811
    %v2524 = vpack.c.b16 %v1816, %v1812
    %v2525 = vpack.c.b16 %v1817, %v1813
    %v2526 = vpack.c.b16 %v1818, %v1814
    %v2527 = vpack.c.b16 %v1823, %v1819
    %v2528 = vpack.c.b16 %v1824, %v1820
    %v2529 = vpack.c.b16 %v1825, %v1821
    %v2530 = vpack.c.b16 %v1826, %v1822
    %v2531 = vpack.c.b16 %v1831, %v1827
    %v2532 = vpack.c.b16 %v1832, %v1828
    %v2533 = vpack.c.b16 %v1833, %v1829
    %v2534 = vpack.c.b16 %v1834, %v1830
    %v2535 = vpack.c.b16 %v1839, %v1835
    %v2536 = vpack.c.b16 %v1840, %v1836
    %v2537 = vpack.c.b16 %v1841, %v1837
    %v2538 = vpack.c.b16 %v1842, %v1838
    %v2539 = vpack.c.b16 %v1847, %v1843
    %v2540 = vpack.c.b16 %v1848, %v1844
    %v2541 = vpack.c.b16 %v1849, %v1845
    %v2542 = vpack.c.b16 %v1850, %v1846
    %v2543 = vpack.c.b16 %v1855, %v1851
    %v2544 = vpack.c.b16 %v1856, %v1852
    %v2545 = vpack.c.b16 %v1857, %v1853
    %v2546 = vpack.c.b16 %v1858, %v1854
    %v2547 = vpack.c.b16 %v1863, %v1859
    %v2548 = vpack.c.b16 %v1864, %v1860
    %v2549 = vpack.c.b16 %v1865, %v1861
    %v2550 = vpack.c.b16 %v1866, %v1862
    %v2551 = vpack.c.b16 %v1871, %v1867
    %v2552 = vpack.c.b16 %v1872, %v1868
    %v2553 = vpack.c.b16 %v1873, %v1869
    %v2554 = vpack.c.b16 %v1874, %v1870
    %v2555 = vpack.c.b16 %v1879, %v1875
    %v2556 = vpack.c.b16 %v1880, %v1876
    %v2557 = vpack.c.b16 %v1881, %v1877
    %v2558 = vpack.c.b16 %v1882, %v1878
    %v2559 = vpack.c.b16 %v1887, %v1883
    %v2560 = vpack.c.b16 %v1888, %v1884
    %v2561 = vpack.c.b16 %v1889, %v1885
    %v2562 = vpack.c.b16 %v1890, %v1886
    %v2563 = vpack.c.b16 %v1895, %v1891
    %v2564 = vpack.c.b16 %v1896, %v1892
    %v2565 = vpack.c.b16 %v1897, %v1893
    %v2566 = vpack.c.b16 %v1898, %v1894
    %v2567 = vpack.c.b16 %v1903, %v1899
    %v2568 = vpack.c.b16 %v1904, %v1900
    %v2569 = vpack.c.b16 %v1905, %v1901
    %v2570 = vpack.c.b16 %v1906, %v1902
    %v2571 = vpack.c.b16 %v1911, %v1907
    %v2572 = vpack.c.b16 %v1912, %v1908
    %v2573 = vpack.c.b16 %v1913, %v1909
    %v2574 = vpack.c.b16 %v1914, %v1910
    %v2575 = vpack.c.b16 %v1919, %v1915
    %v2576 = vpack.c.b16 %v1920, %v1916
    %v2577 = vpack.c.b16 %v1921, %v1917
    %v2578 = vpack.c.b16 %v1922, %v1918
    %v2579 = vpack.c.b16 %v1927, %v1923
    %v2580 = vpack.c.b16 %v1928, %v1924
    %v2581 = vpack.c.b16 %v1929, %v1925
    %v2582 = vpack.c.b16 %v1930, %v1926
    %v2583 = vpack.c.b16 %v1935, %v1931
    %v2584 = vpack.c.b16 %v1936, %v1932
    %v2585 = vpack.c.b16 %v1937, %v1933
    %v2586 = vpack.c.b16 %v1938, %v1934
    %v2587 = vpack.c.b16 %v1943, %v1939
    %v2588 = vpack.c.b16 %v1944, %v1940
    %v2589 = vpack.c.b16 %v1945, %v1941
    %v2590 = vpack.c.b16 %v1946, %v1942
    %v2591 = vpack.c.b16 %v1951, %v1947
    %v2592 = vpack.c.b16 %v1952, %v1948
    %v2593 = vpack.c.b16 %v1953, %v1949
    %v2594 = vpack.c.b16 %v1954, %v1950
    %v2595 = vpack.c.b16 %v1959, %v1955
    %v2596 = vpack.c.b16 %v1960, %v1956
    %v2597 = vpack.c.b16 %v1961, %v1957
    %v2598 = vpack.c.b16 %v1962, %v1958
    %v2599 = vpack.c.b16 %v1967, %v1963
    %v2600 = vpack.c.b16 %v1968, %v1964
    %v2601 = vpack.c.b16 %v1969, %v1965
    %v2602 = vpack.c.b16 %v1970, %v1966
    %v2603 = vpack.c.b16 %v1975, %v1971
    %v2604 = vpack.c.b16 %v1976, %v1972
    %v2605 = vpack.c.b16 %v1977, %v1973
    %v2606 = vpack.c.b16 %v1978, %v1974
    %v2607 = vpack.c.b16 %v1983, %v1979
    %v2608 = vpack.c.b16 %v1984, %v1980
    %v2609 = vpack.c.b16 %v1985, %v1981
    %v2610 = vpack.c.b16 %v1986, %v1982
    %v2611 = vpack.c.b16 %v1991, %v1987
    %v2612 = vpack.c.b16 %v1992, %v1988
    %v2613 = vpack.c.b16 %v1993, %v1989
    %v2614 = vpack.c.b16 %v1994, %v1990
    %v2615 = vpack.c.b16 %v1999, %v1995
    %v2616 = vpack.c.b16 %v2000, %v1996
    %v2617 = vpack.c.b16 %v2001, %v1997
    %v2618 = vpack.c.b16 %v2002, %v1998
    %v2619 = vpack.c.b16 %v2007, %v2003
    %v2620 = vpack.c.b16 %v2008, %v2004
    %v2621 = vpack.c.b16 %v2009, %v2005
    %v2622 = vpack.c.b16 %v2010, %v2006
    %v2623 = vpack.c.b16 %v2015, %v2011
    %v2624 = vpack.c.b16 %v2016, %v2012
    %v2625 = vpack.c.b16 %v2017, %v2013
    %v2626 = vpack.c.b16 %v2018, %v2014
    %v2627 = vpack.c.b16 %v2023, %v2019
    %v2628 = vpack.c.b16 %v2024, %v2020
    %v2629 = vpack.c.b16 %v2025, %v2021
    %v2630 = vpack.c.b16 %v2026, %v2022
    %v2631 = vpack.c.b16 %v2031, %v2027
    %v2632 = vpack.c.b16 %v2032, %v2028
    %v2633 = vpack.c.b16 %v2033, %v2029
    %v2634 = vpack.c.b16 %v2034, %v2030
    %v2635 = vpack.c.b16 %v2039, %v2035
    %v2636 = vpack.c.b16 %v2040, %v2036
    %v2637 = vpack.c.b16 %v2041, %v2037
    %v2638 = vpack.c.b16 %v2042, %v2038
    %v2639 = vpack.c.b16 %v2047, %v2043
    %v2640 = vpack.c.b16 %v2048, %v2044
    %v2641 = vpack.c.b16 %v2049, %v2045
    %v2642 = vpack.c.b16 %v2050, %v2046
    %v2643 = vpack.c.b16 %v2055, %v2051
    %v2644 = vpack.c.b16 %v2056, %v2052
    %v2645 = vpack.c.b16 %v2057, %v2053
    %v2646 = vpack.c.b16 %v2058, %v2054
    %v2647 = vpack.c.b16 %v2063, %v2059
    %v2648 = vpack.c.b16 %v2064, %v2060
    %v2649 = vpack.c.b16 %v2065, %v2061
    %v2650 = vpack.c.b16 %v2066, %v2062
    %v2651 = vpack.c.b16 %v2071, %v2067
    %v2652 = vpack.c.b16 %v2072, %v2068
    %v2653 = vpack.c.b16 %v2073, %v2069
    %v2654 = vpack.c.b16 %v2074, %v2070
    %v2655 = vpack.c.b16 %v2079, %v2075
    %v2656 = vpack.c.b16 %v2080, %v2076
    %v2657 = vpack.c.b16 %v2081, %v2077
    %v2658 = vpack.c.b16 %v2082, %v2078
    %v2659 = vpack.c.b16 %v2087, %v2083
    %v2660 = vpack.c.b16 %v2088, %v2084
    %v2661 = vpack.c.b16 %v2089, %v2085
    %v2662 = vpack.c.b16 %v2090, %v2086
    %v2663 = vpack.c.b16 %v2095, %v2091
    %v2664 = vpack.c.b16 %v2096, %v2092
    %v2665 = vpack.c.b16 %v2097, %v2093
    %v2666 = vpack.c.b16 %v2098, %v2094
    %v2667 = vpack.c.b16 %v2103, %v2099
    %v2668 = vpack.c.b16 %v2104, %v2100
    %v2669 = vpack.c.b16 %v2105, %v2101
    %v2670 = vpack.c.b16 %v2106, %v2102
    %v2671 = vpack.c.b16 %v2111, %v2107
    %v2672 = vpack.c.b16 %v2112, %v2108
    %v2673 = vpack.c.b16 %v2113, %v2109
    %v2674 = vpack.c.b16 %v2114, %v2110
    %v2675 = vpack.c.b16 %v2119, %v2115
    %v2676 = vpack.c.b16 %v2120, %v2116
    %v2677 = vpack.c.b16 %v2121, %v2117
    %v2678 = vpack.c.b16 %v2122, %v2118
    %v2679 = vpack.c.b16 %v2127, %v2123
    %v2680 = vpack.c.b16 %v2128, %v2124
    %v2681 = vpack.c.b16 %v2129, %v2125
    %v2682 = vpack.c.b16 %v2130, %v2126
    %v2683 = vpack.c.b16 %v2135, %v2131
    %v2684 = vpack.c.b16 %v2136, %v2132
    %v2685 = vpack.c.b16 %v2137, %v2133
    %v2686 = vpack.c.b16 %v2138, %v2134
    %v2687 = vpack.c.b16 %v2143, %v2139
    %v2688 = vpack.c.b16 %v2144, %v2140
    %v2689 = vpack.c.b16 %v2145, %v2141
    %v2690 = vpack.c.b16 %v2146, %v2142
    %v2691 = vpack.c.b16 %v2151, %v2147
    %v2692 = vpack.c.b16 %v2152, %v2148
    %v2693 = vpack.c.b16 %v2153, %v2149
    %v2694 = vpack.c.b16 %v2154, %v2150
    %v2695 = vpack.c.b16 %v2159, %v2155
    %v2696 = vpack.c.b16 %v2160, %v2156
    %v2697 = vpack.c.b16 %v2161, %v2157
    %v2698 = vpack.c.b16 %v2162, %v2158
    %v2699 = vpack.c.b16 %v2167, %v2163
    %v2700 = vpack.c.b16 %v2168, %v2164
    %v2701 = vpack.c.b16 %v2169, %v2165
    %v2702 = vpack.c.b16 %v2170, %v2166
    %v2703 = vpack.c.b16 %v2175, %v2171
    %v2704 = vpack.c.b16 %v2176, %v2172
    %v2705 = vpack.c.b16 %v2177, %v2173
    %v2706 = vpack.c.b16 %v2178, %v2174
    %v2707 = vpack.c.b16 %v2183, %v2179
    %v2708 = vpack.c.b16 %v2184, %v2180
    %v2709 = vpack.c.b16 %v2185, %v2181
    %v2710 = vpack.c.b16 %v2186, %v2182
    %v2711 = vpack.c.b16 %v2191, %v2187
    %v2712 = vpack.c.b16 %v2192, %v2188
    %v2713 = vpack.c.b16 %v2193, %v2189
    %v2714 = vpack.c.b16 %v2194, %v2190
    %v2715 = vpack.c.b16 %v2199, %v2195
    %v2716 = vpack.c.b16 %v2200, %v2196
    %v2717 = vpack.c.b16 %v2201, %v2197
    %v2718 = vpack.c.b16 %v2202, %v2198
    %v2719 = vpack.c.b16 %v2207, %v2203
    %v2720 = vpack.c.b16 %v2208, %v2204
    %v2721 = vpack.c.b16 %v2209, %v2205
    %v2722 = vpack.c.b16 %v2210, %v2206
    %3235 = vmatpush.bf16.msra.mxu0 %v2239
    %3236 = vmatpush.bf16.msra.mxu0 %v2235
    %3237 = vmatpush.bf16.msra.mxu0 %v2231
    %3238 = vmatpush.bf16.msra.mxu0 %v2227
    %3239 = vmatpush.bf16.msra.mxu0 %v2223
    %3240 = vmatpush.bf16.msra.mxu0 %v2219
    %3241 = vmatpush.bf16.msra.mxu0 %v2215
    %3242 = vmatpush.bf16.msra.mxu0 %v2211
    %3243 = vmatmul.bf16.gmra.mxu0 %v641
    %v3244 = vpop.f32.mrf.mxu0
    %v3245 = vadd.f32 %v631, %v3244
    %v3246 = vpop.f32.mrf.mxu0
    %3247 = vdwg.mxu0
    %3248 = vmatpush.bf16.msra.mxu0 %v2271
    %3249 = vmatpush.bf16.msra.mxu0 %v2267
    %3250 = vmatpush.bf16.msra.mxu0 %v2263
    %3251 = vmatpush.bf16.msra.mxu0 %v2259
    %3252 = vmatpush.bf16.msra.mxu0 %v2255
    %3253 = vmatpush.bf16.msra.mxu0 %v2251
    %3254 = vmatpush.bf16.msra.mxu0 %v2247
    %3255 = vmatpush.bf16.msra.mxu0 %v2243
    %3256 = vmatmul.bf16.gmra.mxu0 %v642
    %v3257 = vpop.f32.mrf.mxu0
    %v3258 = vadd.f32 %v3245, %v3257
    %v3259 = vpop.f32.mrf.mxu0
    %3260 = vdwg.mxu0
    %3261 = vmatpush.bf16.msra.mxu0 %v2303
    %3262 = vmatpush.bf16.msra.mxu0 %v2299
    %3263 = vmatpush.bf16.msra.mxu0 %v2295
    %3264 = vmatpush.bf16.msra.mxu0 %v2291
    %3265 = vmatpush.bf16.msra.mxu0 %v2287
    %3266 = vmatpush.bf16.msra.mxu0 %v2283
    %3267 = vmatpush.bf16.msra.mxu0 %v2279
    %3268 = vmatpush.bf16.msra.mxu0 %v2275
    %3269 = vmatmul.bf16.gmra.mxu0 %v643
    %v3270 = vpop.f32.mrf.mxu0
    %v3271 = vadd.f32 %v3258, %v3270
    %v3272 = vpop.f32.mrf.mxu0
    %3273 = vdwg.mxu0
    %3274 = vmatpush.bf16.msra.mxu0 %v2335
    %3275 = vmatpush.bf16.msra.mxu0 %v2331
    %3276 = vmatpush.bf16.msra.mxu0 %v2327
    %3277 = vmatpush.bf16.msra.mxu0 %v2323
    %3278 = vmatpush.bf16.msra.mxu0 %v2319
    %3279 = vmatpush.bf16.msra.mxu0 %v2315
    %3280 = vmatpush.bf16.msra.mxu0 %v2311
    %3281 = vmatpush.bf16.msra.mxu0 %v2307
    %3282 = vmatmul.bf16.gmra.mxu0 %v644
    %v3283 = vpop.f32.mrf.mxu0
    %v3284 = vadd.f32 %v3271, %v3283
    %v3285 = vpop.f32.mrf.mxu0
    %3286 = vdwg.mxu0
    %3287 = vmatpush.bf16.msra.mxu0 %v2367
    %3288 = vmatpush.bf16.msra.mxu0 %v2363
    %3289 = vmatpush.bf16.msra.mxu0 %v2359
    %3290 = vmatpush.bf16.msra.mxu0 %v2355
    %3291 = vmatpush.bf16.msra.mxu0 %v2351
    %3292 = vmatpush.bf16.msra.mxu0 %v2347
    %3293 = vmatpush.bf16.msra.mxu0 %v2343
    %3294 = vmatpush.bf16.msra.mxu0 %v2339
    %3295 = vmatmul.bf16.gmra.mxu0 %v645
    %v3296 = vpop.f32.mrf.mxu0
    %v3297 = vadd.f32 %v3284, %v3296
    %v3298 = vpop.f32.mrf.mxu0
    %3299 = vdwg.mxu0
    %3300 = vmatpush.bf16.msra.mxu0 %v2399
    %3301 = vmatpush.bf16.msra.mxu0 %v2395
    %3302 = vmatpush.bf16.msra.mxu0 %v2391
    %3303 = vmatpush.bf16.msra.mxu0 %v2387
    %3304 = vmatpush.bf16.msra.mxu0 %v2383
    %3305 = vmatpush.bf16.msra.mxu0 %v2379
    %3306 = vmatpush.bf16.msra.mxu0 %v2375
    %3307 = vmatpush.bf16.msra.mxu0 %v2371
    %3308 = vmatmul.bf16.gmra.mxu0 %v646
    %v3309 = vpop.f32.mrf.mxu0
    %v3310 = vadd.f32 %v3297, %v3309
    %v3311 = vpop.f32.mrf.mxu0
    %3312 = vdwg.mxu0
    %3313 = vmatpush.bf16.msra.mxu0 %v2431
    %3314 = vmatpush.bf16.msra.mxu0 %v2427
    %3315 = vmatpush.bf16.msra.mxu0 %v2423
    %3316 = vmatpush.bf16.msra.mxu0 %v2419
    %3317 = vmatpush.bf16.msra.mxu0 %v2415
    %3318 = vmatpush.bf16.msra.mxu0 %v2411
    %3319 = vmatpush.bf16.msra.mxu0 %v2407
    %3320 = vmatpush.bf16.msra.mxu0 %v2403
    %3321 = vmatmul.bf16.gmra.mxu0 %v647
    %v3322 = vpop.f32.mrf.mxu0
    %v3323 = vadd.f32 %v3310, %v3322
    %v3324 = vpop.f32.mrf.mxu0
    %3325 = vdwg.mxu0
    %3326 = vmatpush.bf16.msra.mxu0 %v2463
    %3327 = vmatpush.bf16.msra.mxu0 %v2459
    %3328 = vmatpush.bf16.msra.mxu0 %v2455
    %3329 = vmatpush.bf16.msra.mxu0 %v2451
    %3330 = vmatpush.bf16.msra.mxu0 %v2447
    %3331 = vmatpush.bf16.msra.mxu0 %v2443
    %3332 = vmatpush.bf16.msra.mxu0 %v2439
    %3333 = vmatpush.bf16.msra.mxu0 %v2435
    %3334 = vmatmul.bf16.gmra.mxu0 %v648
    %v3335 = vpop.f32.mrf.mxu0
    %v3336 = vadd.f32 %v3323, %v3335
    %v3337 = vpop.f32.mrf.mxu0
    %3338 = vdwg.mxu0
    %3339 = vmatpush.bf16.msra.mxu0 %v2495
    %3340 = vmatpush.bf16.msra.mxu0 %v2491
    %3341 = vmatpush.bf16.msra.mxu0 %v2487
    %3342 = vmatpush.bf16.msra.mxu0 %v2483
    %3343 = vmatpush.bf16.msra.mxu0 %v2479
    %3344 = vmatpush.bf16.msra.mxu0 %v2475
    %3345 = vmatpush.bf16.msra.mxu0 %v2471
    %3346 = vmatpush.bf16.msra.mxu0 %v2467
    %3347 = vmatmul.bf16.gmra.mxu0 %v651
    %v3348 = vpop.f32.mrf.mxu0
    %v3349 = vadd.f32 %v3336, %v3348
    %v3350 = vpop.f32.mrf.mxu0
    %3351 = vdwg.mxu0
    %3352 = vmatpush.bf16.msra.mxu0 %v2527
    %3353 = vmatpush.bf16.msra.mxu0 %v2523
    %3354 = vmatpush.bf16.msra.mxu0 %v2519
    %3355 = vmatpush.bf16.msra.mxu0 %v2515
    %3356 = vmatpush.bf16.msra.mxu0 %v2511
    %3357 = vmatpush.bf16.msra.mxu0 %v2507
    %3358 = vmatpush.bf16.msra.mxu0 %v2503
    %3359 = vmatpush.bf16.msra.mxu0 %v2499
    %3360 = vmatmul.bf16.gmra.mxu0 %v652
    %v3361 = vpop.f32.mrf.mxu0
    %v3362 = vadd.f32 %v3349, %v3361
    %v3363 = vpop.f32.mrf.mxu0
    %3364 = vdwg.mxu0
    %3365 = vmatpush.bf16.msra.mxu0 %v2559
    %3366 = vmatpush.bf16.msra.mxu0 %v2555
    %3367 = vmatpush.bf16.msra.mxu0 %v2551
    %3368 = vmatpush.bf16.msra.mxu0 %v2547
    %3369 = vmatpush.bf16.msra.mxu0 %v2543
    %3370 = vmatpush.bf16.msra.mxu0 %v2539
    %3371 = vmatpush.bf16.msra.mxu0 %v2535
    %3372 = vmatpush.bf16.msra.mxu0 %v2531
    %3373 = vmatmul.bf16.gmra.mxu0 %v653
    %v3374 = vpop.f32.mrf.mxu0
    %v3375 = vadd.f32 %v3362, %v3374
    %v3376 = vpop.f32.mrf.mxu0
    %3377 = vdwg.mxu0
    %3378 = vmatpush.bf16.msra.mxu0 %v2591
    %3379 = vmatpush.bf16.msra.mxu0 %v2587
    %3380 = vmatpush.bf16.msra.mxu0 %v2583
    %3381 = vmatpush.bf16.msra.mxu0 %v2579
    %3382 = vmatpush.bf16.msra.mxu0 %v2575
    %3383 = vmatpush.bf16.msra.mxu0 %v2571
    %3384 = vmatpush.bf16.msra.mxu0 %v2567
    %3385 = vmatpush.bf16.msra.mxu0 %v2563
    %3386 = vmatmul.bf16.gmra.mxu0 %v654
    %v3387 = vpop.f32.mrf.mxu0
    %v3388 = vadd.f32 %v3375, %v3387
    %v3389 = vpop.f32.mrf.mxu0
    %3390 = vdwg.mxu0
    %3391 = vmatpush.bf16.msra.mxu0 %v2623
    %3392 = vmatpush.bf16.msra.mxu0 %v2619
    %3393 = vmatpush.bf16.msra.mxu0 %v2615
    %3394 = vmatpush.bf16.msra.mxu0 %v2611
    %3395 = vmatpush.bf16.msra.mxu0 %v2607
    %3396 = vmatpush.bf16.msra.mxu0 %v2603
    %3397 = vmatpush.bf16.msra.mxu0 %v2599
    %3398 = vmatpush.bf16.msra.mxu0 %v2595
    %3399 = vmatmul.bf16.gmra.mxu0 %v655
    %v3400 = vpop.f32.mrf.mxu0
    %v3401 = vadd.f32 %v3388, %v3400
    %v3402 = vpop.f32.mrf.mxu0
    %3403 = vdwg.mxu0
    %3404 = vmatpush.bf16.msra.mxu0 %v2655
    %3405 = vmatpush.bf16.msra.mxu0 %v2651
    %3406 = vmatpush.bf16.msra.mxu0 %v2647
    %3407 = vmatpush.bf16.msra.mxu0 %v2643
    %3408 = vmatpush.bf16.msra.mxu0 %v2639
    %3409 = vmatpush.bf16.msra.mxu0 %v2635
    %3410 = vmatpush.bf16.msra.mxu0 %v2631
    %3411 = vmatpush.bf16.msra.mxu0 %v2627
    %3412 = vmatmul.bf16.gmra.mxu0 %v656
    %v3413 = vpop.f32.mrf.mxu0
    %v3414 = vadd.f32 %v3401, %v3413
    %v3415 = vpop.f32.mrf.mxu0
    %3416 = vdwg.mxu0
    %3417 = vmatpush.bf16.msra.mxu0 %v2687
    %3418 = vmatpush.bf16.msra.mxu0 %v2683
    %3419 = vmatpush.bf16.msra.mxu0 %v2679
    %3420 = vmatpush.bf16.msra.mxu0 %v2675
    %3421 = vmatpush.bf16.msra.mxu0 %v2671
    %3422 = vmatpush.bf16.msra.mxu0 %v2667
    %3423 = vmatpush.bf16.msra.mxu0 %v2663
    %3424 = vmatpush.bf16.msra.mxu0 %v2659
    %3425 = vmatmul.bf16.gmra.mxu0 %v657
    %v3426 = vpop.f32.mrf.mxu0
    %v3427 = vadd.f32 %v3414, %v3426
    %v3428 = vpop.f32.mrf.mxu0
    %3429 = vdwg.mxu0
    %3430 = vmatpush.bf16.msra.mxu0 %v2719
    %3431 = vmatpush.bf16.msra.mxu0 %v2715
    %3432 = vmatpush.bf16.msra.mxu0 %v2711
    %3433 = vmatpush.bf16.msra.mxu0 %v2707
    %3434 = vmatpush.bf16.msra.mxu0 %v2703
    %3435 = vmatpush.bf16.msra.mxu0 %v2699
    %3436 = vmatpush.bf16.msra.mxu0 %v2695
    %3437 = vmatpush.bf16.msra.mxu0 %v2691
    %3438 = vmatmul.bf16.gmra.mxu0 %v658
    %v3439 = vpop.f32.mrf.mxu0
    %v3440 = vadd.f32 %v3427, %v3439
    %v3441 = vpop.f32.mrf.mxu0
    %3442 = vdwg.mxu0
    %3443 = vmatpush.bf16.msra.mxu0 %v2240
    %3444 = vmatpush.bf16.msra.mxu0 %v2236
    %3445 = vmatpush.bf16.msra.mxu0 %v2232
    %3446 = vmatpush.bf16.msra.mxu0 %v2228
    %3447 = vmatpush.bf16.msra.mxu0 %v2224
    %3448 = vmatpush.bf16.msra.mxu0 %v2220
    %3449 = vmatpush.bf16.msra.mxu0 %v2216
    %3450 = vmatpush.bf16.msra.mxu0 %v2212
    %3451 = vmatmul.bf16.gmra.mxu0 %v641
    %v3452 = vpop.f32.mrf.mxu0
    %v3453 = vadd.f32 %v632, %v3452
    %v3454 = vpop.f32.mrf.mxu0
    %3455 = vdwg.mxu0
    %3456 = vmatpush.bf16.msra.mxu0 %v2272
    %3457 = vmatpush.bf16.msra.mxu0 %v2268
    %3458 = vmatpush.bf16.msra.mxu0 %v2264
    %3459 = vmatpush.bf16.msra.mxu0 %v2260
    %3460 = vmatpush.bf16.msra.mxu0 %v2256
    %3461 = vmatpush.bf16.msra.mxu0 %v2252
    %3462 = vmatpush.bf16.msra.mxu0 %v2248
    %3463 = vmatpush.bf16.msra.mxu0 %v2244
    %3464 = vmatmul.bf16.gmra.mxu0 %v642
    %v3465 = vpop.f32.mrf.mxu0
    %v3466 = vadd.f32 %v3453, %v3465
    %v3467 = vpop.f32.mrf.mxu0
    %3468 = vdwg.mxu0
    %3469 = vmatpush.bf16.msra.mxu0 %v2304
    %3470 = vmatpush.bf16.msra.mxu0 %v2300
    %3471 = vmatpush.bf16.msra.mxu0 %v2296
    %3472 = vmatpush.bf16.msra.mxu0 %v2292
    %3473 = vmatpush.bf16.msra.mxu0 %v2288
    %3474 = vmatpush.bf16.msra.mxu0 %v2284
    %3475 = vmatpush.bf16.msra.mxu0 %v2280
    %3476 = vmatpush.bf16.msra.mxu0 %v2276
    %3477 = vmatmul.bf16.gmra.mxu0 %v643
    %v3478 = vpop.f32.mrf.mxu0
    %v3479 = vadd.f32 %v3466, %v3478
    %v3480 = vpop.f32.mrf.mxu0
    %3481 = vdwg.mxu0
    %3482 = vmatpush.bf16.msra.mxu0 %v2336
    %3483 = vmatpush.bf16.msra.mxu0 %v2332
    %3484 = vmatpush.bf16.msra.mxu0 %v2328
    %3485 = vmatpush.bf16.msra.mxu0 %v2324
    %3486 = vmatpush.bf16.msra.mxu0 %v2320
    %3487 = vmatpush.bf16.msra.mxu0 %v2316
    %3488 = vmatpush.bf16.msra.mxu0 %v2312
    %3489 = vmatpush.bf16.msra.mxu0 %v2308
    %3490 = vmatmul.bf16.gmra.mxu0 %v644
    %v3491 = vpop.f32.mrf.mxu0
    %v3492 = vadd.f32 %v3479, %v3491
    %v3493 = vpop.f32.mrf.mxu0
    %3494 = vdwg.mxu0
    %3495 = vmatpush.bf16.msra.mxu0 %v2368
    %3496 = vmatpush.bf16.msra.mxu0 %v2364
    %3497 = vmatpush.bf16.msra.mxu0 %v2360
    %3498 = vmatpush.bf16.msra.mxu0 %v2356
    %3499 = vmatpush.bf16.msra.mxu0 %v2352
    %3500 = vmatpush.bf16.msra.mxu0 %v2348
    %3501 = vmatpush.bf16.msra.mxu0 %v2344
    %3502 = vmatpush.bf16.msra.mxu0 %v2340
    %3503 = vmatmul.bf16.gmra.mxu0 %v645
    %v3504 = vpop.f32.mrf.mxu0
    %v3505 = vadd.f32 %v3492, %v3504
    %v3506 = vpop.f32.mrf.mxu0
    %3507 = vdwg.mxu0
    %3508 = vmatpush.bf16.msra.mxu0 %v2400
    %3509 = vmatpush.bf16.msra.mxu0 %v2396
    %3510 = vmatpush.bf16.msra.mxu0 %v2392
    %3511 = vmatpush.bf16.msra.mxu0 %v2388
    %3512 = vmatpush.bf16.msra.mxu0 %v2384
    %3513 = vmatpush.bf16.msra.mxu0 %v2380
    %3514 = vmatpush.bf16.msra.mxu0 %v2376
    %3515 = vmatpush.bf16.msra.mxu0 %v2372
    %3516 = vmatmul.bf16.gmra.mxu0 %v646
    %v3517 = vpop.f32.mrf.mxu0
    %v3518 = vadd.f32 %v3505, %v3517
    %v3519 = vpop.f32.mrf.mxu0
    %3520 = vdwg.mxu0
    %3521 = vmatpush.bf16.msra.mxu0 %v2432
    %3522 = vmatpush.bf16.msra.mxu0 %v2428
    %3523 = vmatpush.bf16.msra.mxu0 %v2424
    %3524 = vmatpush.bf16.msra.mxu0 %v2420
    %3525 = vmatpush.bf16.msra.mxu0 %v2416
    %3526 = vmatpush.bf16.msra.mxu0 %v2412
    %3527 = vmatpush.bf16.msra.mxu0 %v2408
    %3528 = vmatpush.bf16.msra.mxu0 %v2404
    %3529 = vmatmul.bf16.gmra.mxu0 %v647
    %v3530 = vpop.f32.mrf.mxu0
    %v3531 = vadd.f32 %v3518, %v3530
    %v3532 = vpop.f32.mrf.mxu0
    %3533 = vdwg.mxu0
    %3534 = vmatpush.bf16.msra.mxu0 %v2464
    %3535 = vmatpush.bf16.msra.mxu0 %v2460
    %3536 = vmatpush.bf16.msra.mxu0 %v2456
    %3537 = vmatpush.bf16.msra.mxu0 %v2452
    %3538 = vmatpush.bf16.msra.mxu0 %v2448
    %3539 = vmatpush.bf16.msra.mxu0 %v2444
    %3540 = vmatpush.bf16.msra.mxu0 %v2440
    %3541 = vmatpush.bf16.msra.mxu0 %v2436
    %3542 = vmatmul.bf16.gmra.mxu0 %v648
    %v3543 = vpop.f32.mrf.mxu0
    %v3544 = vadd.f32 %v3531, %v3543
    %v3545 = vpop.f32.mrf.mxu0
    %3546 = vdwg.mxu0
    %3547 = vmatpush.bf16.msra.mxu0 %v2496
    %3548 = vmatpush.bf16.msra.mxu0 %v2492
    %3549 = vmatpush.bf16.msra.mxu0 %v2488
    %3550 = vmatpush.bf16.msra.mxu0 %v2484
    %3551 = vmatpush.bf16.msra.mxu0 %v2480
    %3552 = vmatpush.bf16.msra.mxu0 %v2476
    %3553 = vmatpush.bf16.msra.mxu0 %v2472
    %3554 = vmatpush.bf16.msra.mxu0 %v2468
    %3555 = vmatmul.bf16.gmra.mxu0 %v651
    %v3556 = vpop.f32.mrf.mxu0
    %v3557 = vadd.f32 %v3544, %v3556
    %v3558 = vpop.f32.mrf.mxu0
    %3559 = vdwg.mxu0
    %3560 = vmatpush.bf16.msra.mxu0 %v2528
    %3561 = vmatpush.bf16.msra.mxu0 %v2524
    %3562 = vmatpush.bf16.msra.mxu0 %v2520
    %3563 = vmatpush.bf16.msra.mxu0 %v2516
    %3564 = vmatpush.bf16.msra.mxu0 %v2512
    %3565 = vmatpush.bf16.msra.mxu0 %v2508
    %3566 = vmatpush.bf16.msra.mxu0 %v2504
    %3567 = vmatpush.bf16.msra.mxu0 %v2500
    %3568 = vmatmul.bf16.gmra.mxu0 %v652
    %v3569 = vpop.f32.mrf.mxu0
    %v3570 = vadd.f32 %v3557, %v3569
    %v3571 = vpop.f32.mrf.mxu0
    %3572 = vdwg.mxu0
    %3573 = vmatpush.bf16.msra.mxu0 %v2560
    %3574 = vmatpush.bf16.msra.mxu0 %v2556
    %3575 = vmatpush.bf16.msra.mxu0 %v2552
    %3576 = vmatpush.bf16.msra.mxu0 %v2548
    %3577 = vmatpush.bf16.msra.mxu0 %v2544
    %3578 = vmatpush.bf16.msra.mxu0 %v2540
    %3579 = vmatpush.bf16.msra.mxu0 %v2536
    %3580 = vmatpush.bf16.msra.mxu0 %v2532
    %3581 = vmatmul.bf16.gmra.mxu0 %v653
    %v3582 = vpop.f32.mrf.mxu0
    %v3583 = vadd.f32 %v3570, %v3582
    %v3584 = vpop.f32.mrf.mxu0
    %3585 = vdwg.mxu0
    %3586 = vmatpush.bf16.msra.mxu0 %v2592
    %3587 = vmatpush.bf16.msra.mxu0 %v2588
    %3588 = vmatpush.bf16.msra.mxu0 %v2584
    %3589 = vmatpush.bf16.msra.mxu0 %v2580
    %3590 = vmatpush.bf16.msra.mxu0 %v2576
    %3591 = vmatpush.bf16.msra.mxu0 %v2572
    %3592 = vmatpush.bf16.msra.mxu0 %v2568
    %3593 = vmatpush.bf16.msra.mxu0 %v2564
    %3594 = vmatmul.bf16.gmra.mxu0 %v654
    %v3595 = vpop.f32.mrf.mxu0
    %v3596 = vadd.f32 %v3583, %v3595
    %v3597 = vpop.f32.mrf.mxu0
    %3598 = vdwg.mxu0
    %3599 = vmatpush.bf16.msra.mxu0 %v2624
    %3600 = vmatpush.bf16.msra.mxu0 %v2620
    %3601 = vmatpush.bf16.msra.mxu0 %v2616
    %3602 = vmatpush.bf16.msra.mxu0 %v2612
    %3603 = vmatpush.bf16.msra.mxu0 %v2608
    %3604 = vmatpush.bf16.msra.mxu0 %v2604
    %3605 = vmatpush.bf16.msra.mxu0 %v2600
    %3606 = vmatpush.bf16.msra.mxu0 %v2596
    %3607 = vmatmul.bf16.gmra.mxu0 %v655
    %v3608 = vpop.f32.mrf.mxu0
    %v3609 = vadd.f32 %v3596, %v3608
    %v3610 = vpop.f32.mrf.mxu0
    %3611 = vdwg.mxu0
    %3612 = vmatpush.bf16.msra.mxu0 %v2656
    %3613 = vmatpush.bf16.msra.mxu0 %v2652
    %3614 = vmatpush.bf16.msra.mxu0 %v2648
    %3615 = vmatpush.bf16.msra.mxu0 %v2644
    %3616 = vmatpush.bf16.msra.mxu0 %v2640
    %3617 = vmatpush.bf16.msra.mxu0 %v2636
    %3618 = vmatpush.bf16.msra.mxu0 %v2632
    %3619 = vmatpush.bf16.msra.mxu0 %v2628
    %3620 = vmatmul.bf16.gmra.mxu0 %v656
    %v3621 = vpop.f32.mrf.mxu0
    %v3622 = vadd.f32 %v3609, %v3621
    %v3623 = vpop.f32.mrf.mxu0
    %3624 = vdwg.mxu0
    %3625 = vmatpush.bf16.msra.mxu0 %v2688
    %3626 = vmatpush.bf16.msra.mxu0 %v2684
    %3627 = vmatpush.bf16.msra.mxu0 %v2680
    %3628 = vmatpush.bf16.msra.mxu0 %v2676
    %3629 = vmatpush.bf16.msra.mxu0 %v2672
    %3630 = vmatpush.bf16.msra.mxu0 %v2668
    %3631 = vmatpush.bf16.msra.mxu0 %v2664
    %3632 = vmatpush.bf16.msra.mxu0 %v2660
    %3633 = vmatmul.bf16.gmra.mxu0 %v657
    %v3634 = vpop.f32.mrf.mxu0
    %v3635 = vadd.f32 %v3622, %v3634
    %v3636 = vpop.f32.mrf.mxu0
    %3637 = vdwg.mxu0
    %3638 = vmatpush.bf16.msra.mxu0 %v2720
    %3639 = vmatpush.bf16.msra.mxu0 %v2716
    %3640 = vmatpush.bf16.msra.mxu0 %v2712
    %3641 = vmatpush.bf16.msra.mxu0 %v2708
    %3642 = vmatpush.bf16.msra.mxu0 %v2704
    %3643 = vmatpush.bf16.msra.mxu0 %v2700
    %3644 = vmatpush.bf16.msra.mxu0 %v2696
    %3645 = vmatpush.bf16.msra.mxu0 %v2692
    %3646 = vmatmul.bf16.gmra.mxu0 %v658
    %v3647 = vpop.f32.mrf.mxu0
    %v3648 = vadd.f32 %v3635, %v3647
    %v3649 = vpop.f32.mrf.mxu0
    %3650 = vdwg.mxu0
    %3651 = vmatpush.bf16.msra.mxu0 %v2241
    %3652 = vmatpush.bf16.msra.mxu0 %v2237
    %3653 = vmatpush.bf16.msra.mxu0 %v2233
    %3654 = vmatpush.bf16.msra.mxu0 %v2229
    %3655 = vmatpush.bf16.msra.mxu0 %v2225
    %3656 = vmatpush.bf16.msra.mxu0 %v2221
    %3657 = vmatpush.bf16.msra.mxu0 %v2217
    %3658 = vmatpush.bf16.msra.mxu0 %v2213
    %3659 = vmatmul.bf16.gmra.mxu0 %v641
    %v3660 = vpop.f32.mrf.mxu0
    %v3661 = vadd.f32 %v633, %v3660
    %v3662 = vpop.f32.mrf.mxu0
    %3663 = vdwg.mxu0
    %3664 = vmatpush.bf16.msra.mxu0 %v2273
    %3665 = vmatpush.bf16.msra.mxu0 %v2269
    %3666 = vmatpush.bf16.msra.mxu0 %v2265
    %3667 = vmatpush.bf16.msra.mxu0 %v2261
    %3668 = vmatpush.bf16.msra.mxu0 %v2257
    %3669 = vmatpush.bf16.msra.mxu0 %v2253
    %3670 = vmatpush.bf16.msra.mxu0 %v2249
    %3671 = vmatpush.bf16.msra.mxu0 %v2245
    %3672 = vmatmul.bf16.gmra.mxu0 %v642
    %v3673 = vpop.f32.mrf.mxu0
    %v3674 = vadd.f32 %v3661, %v3673
    %v3675 = vpop.f32.mrf.mxu0
    %3676 = vdwg.mxu0
    %3677 = vmatpush.bf16.msra.mxu0 %v2305
    %3678 = vmatpush.bf16.msra.mxu0 %v2301
    %3679 = vmatpush.bf16.msra.mxu0 %v2297
    %3680 = vmatpush.bf16.msra.mxu0 %v2293
    %3681 = vmatpush.bf16.msra.mxu0 %v2289
    %3682 = vmatpush.bf16.msra.mxu0 %v2285
    %3683 = vmatpush.bf16.msra.mxu0 %v2281
    %3684 = vmatpush.bf16.msra.mxu0 %v2277
    %3685 = vmatmul.bf16.gmra.mxu0 %v643
    %v3686 = vpop.f32.mrf.mxu0
    %v3687 = vadd.f32 %v3674, %v3686
    %v3688 = vpop.f32.mrf.mxu0
    %3689 = vdwg.mxu0
    %3690 = vmatpush.bf16.msra.mxu0 %v2337
    %3691 = vmatpush.bf16.msra.mxu0 %v2333
    %3692 = vmatpush.bf16.msra.mxu0 %v2329
    %3693 = vmatpush.bf16.msra.mxu0 %v2325
    %3694 = vmatpush.bf16.msra.mxu0 %v2321
    %3695 = vmatpush.bf16.msra.mxu0 %v2317
    %3696 = vmatpush.bf16.msra.mxu0 %v2313
    %3697 = vmatpush.bf16.msra.mxu0 %v2309
    %3698 = vmatmul.bf16.gmra.mxu0 %v644
    %v3699 = vpop.f32.mrf.mxu0
    %v3700 = vadd.f32 %v3687, %v3699
    %v3701 = vpop.f32.mrf.mxu0
    %3702 = vdwg.mxu0
    %3703 = vmatpush.bf16.msra.mxu0 %v2369
    %3704 = vmatpush.bf16.msra.mxu0 %v2365
    %3705 = vmatpush.bf16.msra.mxu0 %v2361
    %3706 = vmatpush.bf16.msra.mxu0 %v2357
    %3707 = vmatpush.bf16.msra.mxu0 %v2353
    %3708 = vmatpush.bf16.msra.mxu0 %v2349
    %3709 = vmatpush.bf16.msra.mxu0 %v2345
    %3710 = vmatpush.bf16.msra.mxu0 %v2341
    %3711 = vmatmul.bf16.gmra.mxu0 %v645
    %v3712 = vpop.f32.mrf.mxu0
    %v3713 = vadd.f32 %v3700, %v3712
    %v3714 = vpop.f32.mrf.mxu0
    %3715 = vdwg.mxu0
    %3716 = vmatpush.bf16.msra.mxu0 %v2401
    %3717 = vmatpush.bf16.msra.mxu0 %v2397
    %3718 = vmatpush.bf16.msra.mxu0 %v2393
    %3719 = vmatpush.bf16.msra.mxu0 %v2389
    %3720 = vmatpush.bf16.msra.mxu0 %v2385
    %3721 = vmatpush.bf16.msra.mxu0 %v2381
    %3722 = vmatpush.bf16.msra.mxu0 %v2377
    %3723 = vmatpush.bf16.msra.mxu0 %v2373
    %3724 = vmatmul.bf16.gmra.mxu0 %v646
    %v3725 = vpop.f32.mrf.mxu0
    %v3726 = vadd.f32 %v3713, %v3725
    %v3727 = vpop.f32.mrf.mxu0
    %3728 = vdwg.mxu0
    %3729 = vmatpush.bf16.msra.mxu0 %v2433
    %3730 = vmatpush.bf16.msra.mxu0 %v2429
    %3731 = vmatpush.bf16.msra.mxu0 %v2425
    %3732 = vmatpush.bf16.msra.mxu0 %v2421
    %3733 = vmatpush.bf16.msra.mxu0 %v2417
    %3734 = vmatpush.bf16.msra.mxu0 %v2413
    %3735 = vmatpush.bf16.msra.mxu0 %v2409
    %3736 = vmatpush.bf16.msra.mxu0 %v2405
    %3737 = vmatmul.bf16.gmra.mxu0 %v647
    %v3738 = vpop.f32.mrf.mxu0
    %v3739 = vadd.f32 %v3726, %v3738
    %v3740 = vpop.f32.mrf.mxu0
    %3741 = vdwg.mxu0
    %3742 = vmatpush.bf16.msra.mxu0 %v2465
    %3743 = vmatpush.bf16.msra.mxu0 %v2461
    %3744 = vmatpush.bf16.msra.mxu0 %v2457
    %3745 = vmatpush.bf16.msra.mxu0 %v2453
    %3746 = vmatpush.bf16.msra.mxu0 %v2449
    %3747 = vmatpush.bf16.msra.mxu0 %v2445
    %3748 = vmatpush.bf16.msra.mxu0 %v2441
    %3749 = vmatpush.bf16.msra.mxu0 %v2437
    %3750 = vmatmul.bf16.gmra.mxu0 %v648
    %v3751 = vpop.f32.mrf.mxu0
    %v3752 = vadd.f32 %v3739, %v3751
    %v3753 = vpop.f32.mrf.mxu0
    %3754 = vdwg.mxu0
    %3755 = vmatpush.bf16.msra.mxu0 %v2497
    %3756 = vmatpush.bf16.msra.mxu0 %v2493
    %3757 = vmatpush.bf16.msra.mxu0 %v2489
    %3758 = vmatpush.bf16.msra.mxu0 %v2485
    %3759 = vmatpush.bf16.msra.mxu0 %v2481
    %3760 = vmatpush.bf16.msra.mxu0 %v2477
    %3761 = vmatpush.bf16.msra.mxu0 %v2473
    %3762 = vmatpush.bf16.msra.mxu0 %v2469
    %3763 = vmatmul.bf16.gmra.mxu0 %v651
    %v3764 = vpop.f32.mrf.mxu0
    %v3765 = vadd.f32 %v3752, %v3764
    %v3766 = vpop.f32.mrf.mxu0
    %3767 = vdwg.mxu0
    %3768 = vmatpush.bf16.msra.mxu0 %v2529
    %3769 = vmatpush.bf16.msra.mxu0 %v2525
    %3770 = vmatpush.bf16.msra.mxu0 %v2521
    %3771 = vmatpush.bf16.msra.mxu0 %v2517
    %3772 = vmatpush.bf16.msra.mxu0 %v2513
    %3773 = vmatpush.bf16.msra.mxu0 %v2509
    %3774 = vmatpush.bf16.msra.mxu0 %v2505
    %3775 = vmatpush.bf16.msra.mxu0 %v2501
    %3776 = vmatmul.bf16.gmra.mxu0 %v652
    %v3777 = vpop.f32.mrf.mxu0
    %v3778 = vadd.f32 %v3765, %v3777
    %v3779 = vpop.f32.mrf.mxu0
    %3780 = vdwg.mxu0
    %3781 = vmatpush.bf16.msra.mxu0 %v2561
    %3782 = vmatpush.bf16.msra.mxu0 %v2557
    %3783 = vmatpush.bf16.msra.mxu0 %v2553
    %3784 = vmatpush.bf16.msra.mxu0 %v2549
    %3785 = vmatpush.bf16.msra.mxu0 %v2545
    %3786 = vmatpush.bf16.msra.mxu0 %v2541
    %3787 = vmatpush.bf16.msra.mxu0 %v2537
    %3788 = vmatpush.bf16.msra.mxu0 %v2533
    %3789 = vmatmul.bf16.gmra.mxu0 %v653
    %v3790 = vpop.f32.mrf.mxu0
    %v3791 = vadd.f32 %v3778, %v3790
    %v3792 = vpop.f32.mrf.mxu0
    %3793 = vdwg.mxu0
    %3794 = vmatpush.bf16.msra.mxu0 %v2593
    %3795 = vmatpush.bf16.msra.mxu0 %v2589
    %3796 = vmatpush.bf16.msra.mxu0 %v2585
    %3797 = vmatpush.bf16.msra.mxu0 %v2581
    %3798 = vmatpush.bf16.msra.mxu0 %v2577
    %3799 = vmatpush.bf16.msra.mxu0 %v2573
    %3800 = vmatpush.bf16.msra.mxu0 %v2569
    %3801 = vmatpush.bf16.msra.mxu0 %v2565
    %3802 = vmatmul.bf16.gmra.mxu0 %v654
    %v3803 = vpop.f32.mrf.mxu0
    %v3804 = vadd.f32 %v3791, %v3803
    %v3805 = vpop.f32.mrf.mxu0
    %3806 = vdwg.mxu0
    %3807 = vmatpush.bf16.msra.mxu0 %v2625
    %3808 = vmatpush.bf16.msra.mxu0 %v2621
    %3809 = vmatpush.bf16.msra.mxu0 %v2617
    %3810 = vmatpush.bf16.msra.mxu0 %v2613
    %3811 = vmatpush.bf16.msra.mxu0 %v2609
    %3812 = vmatpush.bf16.msra.mxu0 %v2605
    %3813 = vmatpush.bf16.msra.mxu0 %v2601
    %3814 = vmatpush.bf16.msra.mxu0 %v2597
    %3815 = vmatmul.bf16.gmra.mxu0 %v655
    %v3816 = vpop.f32.mrf.mxu0
    %v3817 = vadd.f32 %v3804, %v3816
    %v3818 = vpop.f32.mrf.mxu0
    %3819 = vdwg.mxu0
    %3820 = vmatpush.bf16.msra.mxu0 %v2657
    %3821 = vmatpush.bf16.msra.mxu0 %v2653
    %3822 = vmatpush.bf16.msra.mxu0 %v2649
    %3823 = vmatpush.bf16.msra.mxu0 %v2645
    %3824 = vmatpush.bf16.msra.mxu0 %v2641
    %3825 = vmatpush.bf16.msra.mxu0 %v2637
    %3826 = vmatpush.bf16.msra.mxu0 %v2633
    %3827 = vmatpush.bf16.msra.mxu0 %v2629
    %3828 = vmatmul.bf16.gmra.mxu0 %v656
    %v3829 = vpop.f32.mrf.mxu0
    %v3830 = vadd.f32 %v3817, %v3829
    %v3831 = vpop.f32.mrf.mxu0
    %3832 = vdwg.mxu0
    %3833 = vmatpush.bf16.msra.mxu0 %v2689
    %3834 = vmatpush.bf16.msra.mxu0 %v2685
    %3835 = vmatpush.bf16.msra.mxu0 %v2681
    %3836 = vmatpush.bf16.msra.mxu0 %v2677
    %3837 = vmatpush.bf16.msra.mxu0 %v2673
    %3838 = vmatpush.bf16.msra.mxu0 %v2669
    %3839 = vmatpush.bf16.msra.mxu0 %v2665
    %3840 = vmatpush.bf16.msra.mxu0 %v2661
    %3841 = vmatmul.bf16.gmra.mxu0 %v657
    %v3842 = vpop.f32.mrf.mxu0
    %v3843 = vadd.f32 %v3830, %v3842
    %v3844 = vpop.f32.mrf.mxu0
    %3845 = vdwg.mxu0
    %3846 = vmatpush.bf16.msra.mxu0 %v2721
    %3847 = vmatpush.bf16.msra.mxu0 %v2717
    %3848 = vmatpush.bf16.msra.mxu0 %v2713
    %3849 = vmatpush.bf16.msra.mxu0 %v2709
    %3850 = vmatpush.bf16.msra.mxu0 %v2705
    %3851 = vmatpush.bf16.msra.mxu0 %v2701
    %3852 = vmatpush.bf16.msra.mxu0 %v2697
    %3853 = vmatpush.bf16.msra.mxu0 %v2693
    %3854 = vmatmul.bf16.gmra.mxu0 %v658
    %v3855 = vpop.f32.mrf.mxu0
    %v3856 = vadd.f32 %v3843, %v3855
    %v3857 = vpop.f32.mrf.mxu0
    %3858 = vdwg.mxu0
    %3859 = vmatpush.bf16.msra.mxu0 %v2242
    %3860 = vmatpush.bf16.msra.mxu0 %v2238
    %3861 = vmatpush.bf16.msra.mxu0 %v2234
    %3862 = vmatpush.bf16.msra.mxu0 %v2230
    %3863 = vmatpush.bf16.msra.mxu0 %v2226
    %3864 = vmatpush.bf16.msra.mxu0 %v2222
    %3865 = vmatpush.bf16.msra.mxu0 %v2218
    %3866 = vmatpush.bf16.msra.mxu0 %v2214
    %3867 = vmatmul.bf16.gmra.mxu0 %v641
    %v3868 = vpop.f32.mrf.mxu0
    %v3869 = vadd.f32 %v634, %v3868
    %v3870 = vpop.f32.mrf.mxu0
    %3871 = vdwg.mxu0
    %3872 = vmatpush.bf16.msra.mxu0 %v2274
    %3873 = vmatpush.bf16.msra.mxu0 %v2270
    %3874 = vmatpush.bf16.msra.mxu0 %v2266
    %3875 = vmatpush.bf16.msra.mxu0 %v2262
    %3876 = vmatpush.bf16.msra.mxu0 %v2258
    %3877 = vmatpush.bf16.msra.mxu0 %v2254
    %3878 = vmatpush.bf16.msra.mxu0 %v2250
    %3879 = vmatpush.bf16.msra.mxu0 %v2246
    %3880 = vmatmul.bf16.gmra.mxu0 %v642
    %v3881 = vpop.f32.mrf.mxu0
    %v3882 = vadd.f32 %v3869, %v3881
    %v3883 = vpop.f32.mrf.mxu0
    %3884 = vdwg.mxu0
    %3885 = vmatpush.bf16.msra.mxu0 %v2306
    %3886 = vmatpush.bf16.msra.mxu0 %v2302
    %3887 = vmatpush.bf16.msra.mxu0 %v2298
    %3888 = vmatpush.bf16.msra.mxu0 %v2294
    %3889 = vmatpush.bf16.msra.mxu0 %v2290
    %3890 = vmatpush.bf16.msra.mxu0 %v2286
    %3891 = vmatpush.bf16.msra.mxu0 %v2282
    %3892 = vmatpush.bf16.msra.mxu0 %v2278
    %3893 = vmatmul.bf16.gmra.mxu0 %v643
    %v3894 = vpop.f32.mrf.mxu0
    %v3895 = vadd.f32 %v3882, %v3894
    %v3896 = vpop.f32.mrf.mxu0
    %3897 = vdwg.mxu0
    %3898 = vmatpush.bf16.msra.mxu0 %v2338
    %3899 = vmatpush.bf16.msra.mxu0 %v2334
    %3900 = vmatpush.bf16.msra.mxu0 %v2330
    %3901 = vmatpush.bf16.msra.mxu0 %v2326
    %3902 = vmatpush.bf16.msra.mxu0 %v2322
    %3903 = vmatpush.bf16.msra.mxu0 %v2318
    %3904 = vmatpush.bf16.msra.mxu0 %v2314
    %3905 = vmatpush.bf16.msra.mxu0 %v2310
    %3906 = vmatmul.bf16.gmra.mxu0 %v644
    %v3907 = vpop.f32.mrf.mxu0
    %v3908 = vadd.f32 %v3895, %v3907
    %v3909 = vpop.f32.mrf.mxu0
    %3910 = vdwg.mxu0
    %3911 = vmatpush.bf16.msra.mxu0 %v2370
    %3912 = vmatpush.bf16.msra.mxu0 %v2366
    %3913 = vmatpush.bf16.msra.mxu0 %v2362
    %3914 = vmatpush.bf16.msra.mxu0 %v2358
    %3915 = vmatpush.bf16.msra.mxu0 %v2354
    %3916 = vmatpush.bf16.msra.mxu0 %v2350
    %3917 = vmatpush.bf16.msra.mxu0 %v2346
    %3918 = vmatpush.bf16.msra.mxu0 %v2342
    %3919 = vmatmul.bf16.gmra.mxu0 %v645
    %v3920 = vpop.f32.mrf.mxu0
    %v3921 = vadd.f32 %v3908, %v3920
    %v3922 = vpop.f32.mrf.mxu0
    %3923 = vdwg.mxu0
    %3924 = vmatpush.bf16.msra.mxu0 %v2402
    %3925 = vmatpush.bf16.msra.mxu0 %v2398
    %3926 = vmatpush.bf16.msra.mxu0 %v2394
    %3927 = vmatpush.bf16.msra.mxu0 %v2390
    %3928 = vmatpush.bf16.msra.mxu0 %v2386
    %3929 = vmatpush.bf16.msra.mxu0 %v2382
    %3930 = vmatpush.bf16.msra.mxu0 %v2378
    %3931 = vmatpush.bf16.msra.mxu0 %v2374
    %3932 = vmatmul.bf16.gmra.mxu0 %v646
    %v3933 = vpop.f32.mrf.mxu0
    %v3934 = vadd.f32 %v3921, %v3933
    %v3935 = vpop.f32.mrf.mxu0
    %3936 = vdwg.mxu0
    %3937 = vmatpush.bf16.msra.mxu0 %v2434
    %3938 = vmatpush.bf16.msra.mxu0 %v2430
    %3939 = vmatpush.bf16.msra.mxu0 %v2426
    %3940 = vmatpush.bf16.msra.mxu0 %v2422
    %3941 = vmatpush.bf16.msra.mxu0 %v2418
    %3942 = vmatpush.bf16.msra.mxu0 %v2414
    %3943 = vmatpush.bf16.msra.mxu0 %v2410
    %3944 = vmatpush.bf16.msra.mxu0 %v2406
    %3945 = vmatmul.bf16.gmra.mxu0 %v647
    %v3946 = vpop.f32.mrf.mxu0
    %v3947 = vadd.f32 %v3934, %v3946
    %v3948 = vpop.f32.mrf.mxu0
    %3949 = vdwg.mxu0
    %3950 = vmatpush.bf16.msra.mxu0 %v2466
    %3951 = vmatpush.bf16.msra.mxu0 %v2462
    %3952 = vmatpush.bf16.msra.mxu0 %v2458
    %3953 = vmatpush.bf16.msra.mxu0 %v2454
    %3954 = vmatpush.bf16.msra.mxu0 %v2450
    %3955 = vmatpush.bf16.msra.mxu0 %v2446
    %3956 = vmatpush.bf16.msra.mxu0 %v2442
    %3957 = vmatpush.bf16.msra.mxu0 %v2438
    %3958 = vmatmul.bf16.gmra.mxu0 %v648
    %v3959 = vpop.f32.mrf.mxu0
    %v3960 = vadd.f32 %v3947, %v3959
    %v3961 = vpop.f32.mrf.mxu0
    %3962 = vdwg.mxu0
    %3963 = vmatpush.bf16.msra.mxu0 %v2498
    %3964 = vmatpush.bf16.msra.mxu0 %v2494
    %3965 = vmatpush.bf16.msra.mxu0 %v2490
    %3966 = vmatpush.bf16.msra.mxu0 %v2486
    %3967 = vmatpush.bf16.msra.mxu0 %v2482
    %3968 = vmatpush.bf16.msra.mxu0 %v2478
    %3969 = vmatpush.bf16.msra.mxu0 %v2474
    %3970 = vmatpush.bf16.msra.mxu0 %v2470
    %3971 = vmatmul.bf16.gmra.mxu0 %v651
    %v3972 = vpop.f32.mrf.mxu0
    %v3973 = vadd.f32 %v3960, %v3972
    %v3974 = vpop.f32.mrf.mxu0
    %3975 = vdwg.mxu0
    %3976 = vmatpush.bf16.msra.mxu0 %v2530
    %3977 = vmatpush.bf16.msra.mxu0 %v2526
    %3978 = vmatpush.bf16.msra.mxu0 %v2522
    %3979 = vmatpush.bf16.msra.mxu0 %v2518
    %3980 = vmatpush.bf16.msra.mxu0 %v2514
    %3981 = vmatpush.bf16.msra.mxu0 %v2510
    %3982 = vmatpush.bf16.msra.mxu0 %v2506
    %3983 = vmatpush.bf16.msra.mxu0 %v2502
    %3984 = vmatmul.bf16.gmra.mxu0 %v652
    %v3985 = vpop.f32.mrf.mxu0
    %v3986 = vadd.f32 %v3973, %v3985
    %v3987 = vpop.f32.mrf.mxu0
    %3988 = vdwg.mxu0
    %3989 = vmatpush.bf16.msra.mxu0 %v2562
    %3990 = vmatpush.bf16.msra.mxu0 %v2558
    %3991 = vmatpush.bf16.msra.mxu0 %v2554
    %3992 = vmatpush.bf16.msra.mxu0 %v2550
    %3993 = vmatpush.bf16.msra.mxu0 %v2546
    %3994 = vmatpush.bf16.msra.mxu0 %v2542
    %3995 = vmatpush.bf16.msra.mxu0 %v2538
    %3996 = vmatpush.bf16.msra.mxu0 %v2534
    %3997 = vmatmul.bf16.gmra.mxu0 %v653
    %v3998 = vpop.f32.mrf.mxu0
    %v3999 = vadd.f32 %v3986, %v3998
    %v4000 = vpop.f32.mrf.mxu0
    %4001 = vdwg.mxu0
    %4002 = vmatpush.bf16.msra.mxu0 %v2594
    %4003 = vmatpush.bf16.msra.mxu0 %v2590
    %4004 = vmatpush.bf16.msra.mxu0 %v2586
    %4005 = vmatpush.bf16.msra.mxu0 %v2582
    %4006 = vmatpush.bf16.msra.mxu0 %v2578
    %4007 = vmatpush.bf16.msra.mxu0 %v2574
    %4008 = vmatpush.bf16.msra.mxu0 %v2570
    %4009 = vmatpush.bf16.msra.mxu0 %v2566
    %4010 = vmatmul.bf16.gmra.mxu0 %v654
    %v4011 = vpop.f32.mrf.mxu0
    %v4012 = vadd.f32 %v3999, %v4011
    %v4013 = vpop.f32.mrf.mxu0
    %4014 = vdwg.mxu0
    %4015 = vmatpush.bf16.msra.mxu0 %v2626
    %4016 = vmatpush.bf16.msra.mxu0 %v2622
    %4017 = vmatpush.bf16.msra.mxu0 %v2618
    %4018 = vmatpush.bf16.msra.mxu0 %v2614
    %4019 = vmatpush.bf16.msra.mxu0 %v2610
    %4020 = vmatpush.bf16.msra.mxu0 %v2606
    %4021 = vmatpush.bf16.msra.mxu0 %v2602
    %4022 = vmatpush.bf16.msra.mxu0 %v2598
    %4023 = vmatmul.bf16.gmra.mxu0 %v655
    %v4024 = vpop.f32.mrf.mxu0
    %v4025 = vadd.f32 %v4012, %v4024
    %v4026 = vpop.f32.mrf.mxu0
    %4027 = vdwg.mxu0
    %4028 = vmatpush.bf16.msra.mxu0 %v2658
    %4029 = vmatpush.bf16.msra.mxu0 %v2654
    %4030 = vmatpush.bf16.msra.mxu0 %v2650
    %4031 = vmatpush.bf16.msra.mxu0 %v2646
    %4032 = vmatpush.bf16.msra.mxu0 %v2642
    %4033 = vmatpush.bf16.msra.mxu0 %v2638
    %4034 = vmatpush.bf16.msra.mxu0 %v2634
    %4035 = vmatpush.bf16.msra.mxu0 %v2630
    %4036 = vmatmul.bf16.gmra.mxu0 %v656
    %v4037 = vpop.f32.mrf.mxu0
    %v4038 = vadd.f32 %v4025, %v4037
    %v4039 = vpop.f32.mrf.mxu0
    %4040 = vdwg.mxu0
    %4041 = vmatpush.bf16.msra.mxu0 %v2690
    %4042 = vmatpush.bf16.msra.mxu0 %v2686
    %4043 = vmatpush.bf16.msra.mxu0 %v2682
    %4044 = vmatpush.bf16.msra.mxu0 %v2678
    %4045 = vmatpush.bf16.msra.mxu0 %v2674
    %4046 = vmatpush.bf16.msra.mxu0 %v2670
    %4047 = vmatpush.bf16.msra.mxu0 %v2666
    %4048 = vmatpush.bf16.msra.mxu0 %v2662
    %4049 = vmatmul.bf16.gmra.mxu0 %v657
    %v4050 = vpop.f32.mrf.mxu0
    %v4051 = vadd.f32 %v4038, %v4050
    %v4052 = vpop.f32.mrf.mxu0
    %4053 = vdwg.mxu0
    %4054 = vmatpush.bf16.msra.mxu0 %v2722
    %4055 = vmatpush.bf16.msra.mxu0 %v2718
    %4056 = vmatpush.bf16.msra.mxu0 %v2714
    %4057 = vmatpush.bf16.msra.mxu0 %v2710
    %4058 = vmatpush.bf16.msra.mxu0 %v2706
    %4059 = vmatpush.bf16.msra.mxu0 %v2702
    %4060 = vmatpush.bf16.msra.mxu0 %v2698
    %4061 = vmatpush.bf16.msra.mxu0 %v2694
    %4062 = vmatmul.bf16.gmra.mxu0 %v658
    %v4063 = vpop.f32.mrf.mxu0
    %v4064 = vadd.f32 %v4051, %v4063
    %v4065 = vpop.f32.mrf.mxu0
    %4066 = vdwg.mxu0
    %v4067 = vmax.f32 %v3440, 0.0
    %v4068 = vmax.f32 %v3648, 0.0
    %v4069 = vmax.f32 %v3856, 0.0
    %v4070 = vmax.f32 %v4064, 0.0
    %v4071 = vpack.c.bf16 %v4067, %v4067
    %v4072 = vpack.c.bf16 %v4068, %v4068
    %v4073 = vpack.c.bf16 %v4069, %v4069
    %v4074 = vpack.c.bf16 %v4070, %v4070
    %v4075 = vld [vmem:[#allocation7] sm:$0xf]
    %v4076 = vld [vmem:[#allocation7 + $0x4] sm:$0xf]
    %v4077 = vld [vmem:[#allocation7 + $0x8] sm:$0xf]
    %v4078 = vld [vmem:[#allocation7 + $0xc] sm:$0xf]
    %v4079 = vld [vmem:[#allocation7 + $0x10] sm:$0xf]
    %v4080 = vld [vmem:[#allocation7 + $0x14] sm:$0xf]
    %v4081 = vld [vmem:[#allocation7 + $0x18] sm:$0xf]
    %v4082 = vld [vmem:[#allocation7 + $0x1c] sm:$0xf]
    %v4083 = vld [vmem:[#allocation7 + $0x20] sm:$0xf]
    %v4084 = vld [vmem:[#allocation7 + $0x24] sm:$0xf]
    %v4085 = vld [vmem:[#allocation7 + $0x28] sm:$0xf]
    %v4086 = vld [vmem:[#allocation7 + $0x2c] sm:$0xf]
    %v4087 = vld [vmem:[#allocation7 + $0x30] sm:$0xf]
    %v4088 = vld [vmem:[#allocation7 + $0x34] sm:$0xf]
    %v4089 = vld [vmem:[#allocation7 + $0x38] sm:$0xf]
    %v4090 = vld [vmem:[#allocation7 + $0x3c] sm:$0xf]
    %v4091 = vld [vmem:[#allocation7 + $0x40] sm:$0xf]
    %v4092 = vld [vmem:[#allocation7 + $0x44] sm:$0xf]
    %v4093 = vld [vmem:[#allocation7 + $0x48] sm:$0xf]
    %v4094 = vld [vmem:[#allocation7 + $0x4c] sm:$0xf]
    %v4095 = vld [vmem:[#allocation7 + $0x50] sm:$0xf]
    %v4096 = vld [vmem:[#allocation7 + $0x54] sm:$0xf]
    %v4097 = vld [vmem:[#allocation7 + $0x58] sm:$0xf]
    %v4098 = vld [vmem:[#allocation7 + $0x5c] sm:$0xf]
    %v4099 = vld [vmem:[#allocation7 + $0x60] sm:$0xf]
    %v4100 = vld [vmem:[#allocation7 + $0x64] sm:$0xf]
    %v4101 = vld [vmem:[#allocation7 + $0x68] sm:$0xf]
    %v4102 = vld [vmem:[#allocation7 + $0x6c] sm:$0xf]
    %v4103 = vld [vmem:[#allocation7 + $0x70] sm:$0xf]
    %v4104 = vld [vmem:[#allocation7 + $0x74] sm:$0xf]
    %v4105 = vld [vmem:[#allocation7 + $0x78] sm:$0xf]
    %v4106 = vld [vmem:[#allocation7 + $0x7c] sm:$0xf]
    %v4107 = vld [vmem:[#allocation7 + $0x80] sm:$0xf]
    %v4108 = vld [vmem:[#allocation7 + $0x84] sm:$0xf]
    %v4109 = vld [vmem:[#allocation7 + $0x88] sm:$0xf]
    %v4110 = vld [vmem:[#allocation7 + $0x8c] sm:$0xf]
    %v4111 = vld [vmem:[#allocation7 + $0x90] sm:$0xf]
    %v4112 = vld [vmem:[#allocation7 + $0x94] sm:$0xf]
    %v4113 = vld [vmem:[#allocation7 + $0x98] sm:$0xf]
    %v4114 = vld [vmem:[#allocation7 + $0x9c] sm:$0xf]
    %v4115 = vld [vmem:[#allocation7 + $0xa0] sm:$0xf]
    %v4116 = vld [vmem:[#allocation7 + $0xa4] sm:$0xf]
    %v4117 = vld [vmem:[#allocation7 + $0xa8] sm:$0xf]
    %v4118 = vld [vmem:[#allocation7 + $0xac] sm:$0xf]
    %v4119 = vld [vmem:[#allocation7 + $0xb0] sm:$0xf]
    %v4120 = vld [vmem:[#allocation7 + $0xb4] sm:$0xf]
    %v4121 = vld [vmem:[#allocation7 + $0xb8] sm:$0xf]
    %v4122 = vld [vmem:[#allocation7 + $0xbc] sm:$0xf]
    %v4123 = vld [vmem:[#allocation7 + $0xc0] sm:$0xf]
    %v4124 = vld [vmem:[#allocation7 + $0xc4] sm:$0xf]
    %v4125 = vld [vmem:[#allocation7 + $0xc8] sm:$0xf]
    %v4126 = vld [vmem:[#allocation7 + $0xcc] sm:$0xf]
    %v4127 = vld [vmem:[#allocation7 + $0xd0] sm:$0xf]
    %v4128 = vld [vmem:[#allocation7 + $0xd4] sm:$0xf]
    %v4129 = vld [vmem:[#allocation7 + $0xd8] sm:$0xf]
    %v4130 = vld [vmem:[#allocation7 + $0xdc] sm:$0xf]
    %v4131 = vld [vmem:[#allocation7 + $0xe0] sm:$0xf]
    %v4132 = vld [vmem:[#allocation7 + $0xe4] sm:$0xf]
    %v4133 = vld [vmem:[#allocation7 + $0xe8] sm:$0xf]
    %v4134 = vld [vmem:[#allocation7 + $0xec] sm:$0xf]
    %v4135 = vld [vmem:[#allocation7 + $0xf0] sm:$0xf]
    %v4136 = vld [vmem:[#allocation7 + $0xf4] sm:$0xf]
    %v4137 = vld [vmem:[#allocation7 + $0xf8] sm:$0xf]
    %v4138 = vld [vmem:[#allocation7 + $0xfc] sm:$0xf]
    %v4139 = vld [vmem:[#allocation8] sm:$0x1]
    %v4141 = vperm.slane %v4139, 0
    %v4207 = vunpack.c.l.b16 %v4075
    %v4208 = vunpack.c.l.b16 %v4076
    %v4209 = vunpack.c.l.b16 %v4077
    %v4210 = vunpack.c.l.b16 %v4078
    %v4211 = vunpack.c.l.b16 %v4079
    %v4212 = vunpack.c.l.b16 %v4080
    %v4213 = vunpack.c.l.b16 %v4081
    %v4214 = vunpack.c.l.b16 %v4082
    %v4215 = vunpack.c.l.b16 %v4083
    %v4216 = vunpack.c.l.b16 %v4084
    %v4217 = vunpack.c.l.b16 %v4085
    %v4218 = vunpack.c.l.b16 %v4086
    %v4219 = vunpack.c.l.b16 %v4087
    %v4220 = vunpack.c.l.b16 %v4088
    %v4221 = vunpack.c.l.b16 %v4089
    %v4222 = vunpack.c.l.b16 %v4090
    %v4223 = vunpack.c.l.b16 %v4091
    %v4224 = vunpack.c.l.b16 %v4092
    %v4225 = vunpack.c.l.b16 %v4093
    %v4226 = vunpack.c.l.b16 %v4094
    %v4227 = vunpack.c.l.b16 %v4095
    %v4228 = vunpack.c.l.b16 %v4096
    %v4229 = vunpack.c.l.b16 %v4097
    %v4230 = vunpack.c.l.b16 %v4098
    %v4231 = vunpack.c.l.b16 %v4099
    %v4232 = vunpack.c.l.b16 %v4100
    %v4233 = vunpack.c.l.b16 %v4101
    %v4234 = vunpack.c.l.b16 %v4102
    %v4235 = vunpack.c.l.b16 %v4103
    %v4236 = vunpack.c.l.b16 %v4104
    %v4237 = vunpack.c.l.b16 %v4105
    %v4238 = vunpack.c.l.b16 %v4106
    %v4239 = vunpack.c.l.b16 %v4107
    %v4240 = vunpack.c.l.b16 %v4108
    %v4241 = vunpack.c.l.b16 %v4109
    %v4242 = vunpack.c.l.b16 %v4110
    %v4243 = vunpack.c.l.b16 %v4111
    %v4244 = vunpack.c.l.b16 %v4112
    %v4245 = vunpack.c.l.b16 %v4113
    %v4246 = vunpack.c.l.b16 %v4114
    %v4247 = vunpack.c.l.b16 %v4115
    %v4248 = vunpack.c.l.b16 %v4116
    %v4249 = vunpack.c.l.b16 %v4117
    %v4250 = vunpack.c.l.b16 %v4118
    %v4251 = vunpack.c.l.b16 %v4119
    %v4252 = vunpack.c.l.b16 %v4120
    %v4253 = vunpack.c.l.b16 %v4121
    %v4254 = vunpack.c.l.b16 %v4122
    %v4255 = vunpack.c.l.b16 %v4123
    %v4256 = vunpack.c.l.b16 %v4124
    %v4257 = vunpack.c.l.b16 %v4125
    %v4258 = vunpack.c.l.b16 %v4126
    %v4259 = vunpack.c.l.b16 %v4127
    %v4260 = vunpack.c.l.b16 %v4128
    %v4261 = vunpack.c.l.b16 %v4129
    %v4262 = vunpack.c.l.b16 %v4130
    %v4263 = vunpack.c.l.b16 %v4131
    %v4264 = vunpack.c.l.b16 %v4132
    %v4265 = vunpack.c.l.b16 %v4133
    %v4266 = vunpack.c.l.b16 %v4134
    %v4267 = vunpack.c.l.b16 %v4135
    %v4268 = vunpack.c.l.b16 %v4136
    %v4269 = vunpack.c.l.b16 %v4137
    %v4270 = vunpack.c.l.b16 %v4138
    %v4271 = vpack.c.b16 %v4208, %v4207
    %v4272 = vpack.c.b16 %v4210, %v4209
    %v4273 = vpack.c.b16 %v4212, %v4211
    %v4274 = vpack.c.b16 %v4214, %v4213
    %v4275 = vpack.c.b16 %v4216, %v4215
    %v4276 = vpack.c.b16 %v4218, %v4217
    %v4277 = vpack.c.b16 %v4220, %v4219
    %v4278 = vpack.c.b16 %v4222, %v4221
    %v4279 = vpack.c.b16 %v4224, %v4223
    %v4280 = vpack.c.b16 %v4226, %v4225
    %v4281 = vpack.c.b16 %v4228, %v4227
    %v4282 = vpack.c.b16 %v4230, %v4229
    %v4283 = vpack.c.b16 %v4232, %v4231
    %v4284 = vpack.c.b16 %v4234, %v4233
    %v4285 = vpack.c.b16 %v4236, %v4235
    %v4286 = vpack.c.b16 %v4238, %v4237
    %v4287 = vpack.c.b16 %v4240, %v4239
    %v4288 = vpack.c.b16 %v4242, %v4241
    %v4289 = vpack.c.b16 %v4244, %v4243
    %v4290 = vpack.c.b16 %v4246, %v4245
    %v4291 = vpack.c.b16 %v4248, %v4247
    %v4292 = vpack.c.b16 %v4250, %v4249
    %v4293 = vpack.c.b16 %v4252, %v4251
    %v4294 = vpack.c.b16 %v4254, %v4253
    %v4295 = vpack.c.b16 %v4256, %v4255
    %v4296 = vpack.c.b16 %v4258, %v4257
    %v4297 = vpack.c.b16 %v4260, %v4259
    %v4298 = vpack.c.b16 %v4262, %v4261
    %v4299 = vpack.c.b16 %v4264, %v4263
    %v4300 = vpack.c.b16 %v4266, %v4265
    %v4301 = vpack.c.b16 %v4268, %v4267
    %v4302 = vpack.c.b16 %v4270, %v4269
    %4335 = vmatpush.bf16.msra.mxu0 %v4278
    %4336 = vmatpush.bf16.msra.mxu0 %v4277
    %4337 = vmatpush.bf16.msra.mxu0 %v4276
    %4338 = vmatpush.bf16.msra.mxu0 %v4275
    %4339 = vmatpush.bf16.msra.mxu0 %v4274
    %4340 = vmatpush.bf16.msra.mxu0 %v4273
    %4341 = vmatpush.bf16.msra.mxu0 %v4272
    %4342 = vmatpush.bf16.msra.mxu0 %v4271
    %4343 = vmatmul.bf16.gmra.mxu0 %v4071
    %v4344 = vpop.f32.mrf.mxu0
    %v4345 = vadd.f32 %v4141, %v4344
    %v4346 = vpop.f32.mrf.mxu0
    %4347 = vdwg.mxu0
    %4348 = vmatpush.bf16.msra.mxu0 %v4286
    %4349 = vmatpush.bf16.msra.mxu0 %v4285
    %4350 = vmatpush.bf16.msra.mxu0 %v4284
    %4351 = vmatpush.bf16.msra.mxu0 %v4283
    %4352 = vmatpush.bf16.msra.mxu0 %v4282
    %4353 = vmatpush.bf16.msra.mxu0 %v4281
    %4354 = vmatpush.bf16.msra.mxu0 %v4280
    %4355 = vmatpush.bf16.msra.mxu0 %v4279
    %4356 = vmatmul.bf16.gmra.mxu0 %v4072
    %v4357 = vpop.f32.mrf.mxu0
    %v4358 = vadd.f32 %v4345, %v4357
    %v4359 = vpop.f32.mrf.mxu0
    %4360 = vdwg.mxu0
    %4361 = vmatpush.bf16.msra.mxu0 %v4294
    %4362 = vmatpush.bf16.msra.mxu0 %v4293
    %4363 = vmatpush.bf16.msra.mxu0 %v4292
    %4364 = vmatpush.bf16.msra.mxu0 %v4291
    %4365 = vmatpush.bf16.msra.mxu0 %v4290
    %4366 = vmatpush.bf16.msra.mxu0 %v4289
    %4367 = vmatpush.bf16.msra.mxu0 %v4288
    %4368 = vmatpush.bf16.msra.mxu0 %v4287
    %4369 = vmatmul.bf16.gmra.mxu0 %v4073
    %v4370 = vpop.f32.mrf.mxu0
    %v4371 = vadd.f32 %v4358, %v4370
    %v4372 = vpop.f32.mrf.mxu0
    %4373 = vdwg.mxu0
    %4374 = vmatpush.bf16.msra.mxu0 %v4302
    %4375 = vmatpush.bf16.msra.mxu0 %v4301
    %4376 = vmatpush.bf16.msra.mxu0 %v4300
    %4377 = vmatpush.bf16.msra.mxu0 %v4299
    %4378 = vmatpush.bf16.msra.mxu0 %v4298
    %4379 = vmatpush.bf16.msra.mxu0 %v4297
    %4380 = vmatpush.bf16.msra.mxu0 %v4296
    %4381 = vmatpush.bf16.msra.mxu0 %v4295
    %4382 = vmatmul.bf16.gmra.mxu0 %v4074
    %v4383 = vpop.f32.mrf.mxu0
    %v4384 = vadd.f32 %v4371, %v4383
    %v4385 = vpop.f32.mrf.mxu0
    %4386 = vdwg.mxu0
    %v4387 = vmax.f32 %v4384, 0.0
    %v4388 = vpack.c.bf16 %v4387, %v4387
    %v4389 = vld [vmem:[#allocation10] sm:$0xf]
    %v4390 = vld [vmem:[#allocation10 + $0x4] sm:$0xf]
    %v4391 = vld [vmem:[#allocation10 + $0x8] sm:$0xf]
    %v4392 = vld [vmem:[#allocation10 + $0xc] sm:$0xf]
    %v4393 = vld [vmem:[#allocation10 + $0x10] sm:$0xf]
    %v4394 = vld [vmem:[#allocation10 + $0x14] sm:$0xf]
    %v4395 = vld [vmem:[#allocation10 + $0x18] sm:$0xf]
    %v4396 = vld [vmem:[#allocation10 + $0x1c] sm:$0xf]
    %v4397 = vld [vmem:[#allocation10 + $0x20] sm:$0xf]
    %v4398 = vld [vmem:[#allocation10 + $0x24] sm:$0xf]
    %v4399 = vld [vmem:[#allocation10 + $0x28] sm:$0xf]
    %v4400 = vld [vmem:[#allocation10 + $0x2c] sm:$0xf]
    %v4401 = vld [vmem:[#allocation10 + $0x30] sm:$0xf]
    %v4402 = vld [vmem:[#allocation10 + $0x34] sm:$0xf]
    %v4403 = vld [vmem:[#allocation10 + $0x38] sm:$0xf]
    %v4404 = vld [vmem:[#allocation10 + $0x3c] sm:$0xf]
    %v4405 = vld [vmem:[#allocation11] sm:$0x1]
    %v4407 = vperm.slane %v4405, 0
    %v4425 = vunpack.c.l.b16 %v4389
    %v4426 = vunpack.c.l.b16 %v4390
    %v4427 = vunpack.c.l.b16 %v4391
    %v4428 = vunpack.c.l.b16 %v4392
    %v4429 = vunpack.c.l.b16 %v4393
    %v4430 = vunpack.c.l.b16 %v4394
    %v4431 = vunpack.c.l.b16 %v4395
    %v4432 = vunpack.c.l.b16 %v4396
    %v4433 = vunpack.c.l.b16 %v4397
    %v4434 = vunpack.c.l.b16 %v4398
    %v4435 = vunpack.c.l.b16 %v4399
    %v4436 = vunpack.c.l.b16 %v4400
    %v4437 = vunpack.c.l.b16 %v4401
    %v4438 = vunpack.c.l.b16 %v4402
    %v4439 = vunpack.c.l.b16 %v4403
    %v4440 = vunpack.c.l.b16 %v4404
    %v4441 = vpack.c.b16 %v4426, %v4425
    %v4442 = vpack.c.b16 %v4428, %v4427
    %v4443 = vpack.c.b16 %v4430, %v4429
    %v4444 = vpack.c.b16 %v4432, %v4431
    %v4445 = vpack.c.b16 %v4434, %v4433
    %v4446 = vpack.c.b16 %v4436, %v4435
    %v4447 = vpack.c.b16 %v4438, %v4437
    %v4448 = vpack.c.b16 %v4440, %v4439
    %4457 = vmatpush.bf16.msra.mxu0 %v4448
    %4458 = vmatpush.bf16.msra.mxu0 %v4447
    %4459 = vmatpush.bf16.msra.mxu0 %v4446
    %4460 = vmatpush.bf16.msra.mxu0 %v4445
    %4461 = vmatpush.bf16.msra.mxu0 %v4444
    %4462 = vmatpush.bf16.msra.mxu0 %v4443
    %4463 = vmatpush.bf16.msra.mxu0 %v4442
    %4464 = vmatpush.bf16.msra.mxu0 %v4441
    %4465 = vmatmul.bf16.gmra.mxu0 %v4388
    %v4466 = vpop.f32.mrf.mxu0
    %v4467 = vadd.f32 %v4407, %v4466
    %v4468 = vpop.f32.mrf.mxu0
    %4469 = vdwg.mxu0
    %vm4470 = vcmask 25600
    %v4471 = vsel %vm4470, %v4467, -inf
    %4472 = vmax.xlane.f32.xlu0 %v4471
    %v4473 = vpop.xlane.xlu0 %4472
    %v4474 = vsub.f32 %v4467, %v4473
    %v4475 = vmul.f32 %v4474, 1.442695
    %v4476 = vpow.pop %v4475
    %v4477 = vsel %vm4470, %v4476, 0.0
    %4478 = vadd.xlane.f32.xlu0 %v4477
    %v4479 = vpop.xlane.xlu0 %4478
    %v4480 = vlog2.pop %v4479
    %v4481 = vmul.f32 %v4480, 0.6931472
    %v4482 = vadd.f32 %v4473, %v4481
    %v4483 = vsub.f32 %v4467, %v4482
    %4484 = vst.msk [vmem:[#allocation13] sm:$0x3] %vm4470, %v4483
    // Predicated region
    $region54: #{gcn_forward.3} parent=1 // pred_check
      _
    $region55: #{gcn_forward.3} parent=1 // pred_check_branch
      %4486 = sbr.rel (0) target = $region57
    $region56: #{gcn_forward.3} parent=1 // pred_region
      %4488 = vsyncadd [#allocation4], 0
      %s4490 = sshll.u32 [#allocation13], 4
      %s4491 = int_to_ptr.vmem [resolvable:$true] %s4490
      %s4492 = sshll.u32 %s7, 4
      %s4493 = int_to_ptr.hbm [resolvable:$true] %s4492
      %4495 = dma.vmem_to_hbm [thread:$0]  %s4491, 32, %s4493, [#allocation4]
    $region57: #{gcn_forward.3} parent=1 // pred_fallthru
      _
    // Predicated region
    $region58: #{gcn_forward.3} parent=1 // pred_check
      _
    $region59: #{gcn_forward.3} parent=1 // pred_check_branch
      %4497 = sbr.rel (0) target = $region61
    $region60: #{gcn_forward.3} parent=1 // pred_region
      %4499 = dma.done [#allocation4], 32
    $region61: #{gcn_forward.3} parent=1 // pred_fallthru
      _
    %4500 = vsyncpa [#allocation3], 1
    %4501 = vsyncpa [#allocation6], 1
    %4502 = vsyncpa [#allocation9], 1
    %4503 = vsyncpa [#allocation12], 1
    %4504 = vsyncpa [#allocation4], 1

</llo_original>
